<compile_context>
chip_gen: v7x
topology: tpu7x:2x2x1
jax: 0.10.0
libtpu: 0.0.40
codegen_flags: <defaults>
</compile_context>

<pallas_src>
import functools

import jax
import jax.numpy as jnp
from jax import lax
from jax.experimental import pallas as pl
from jax.experimental.pallas import tpu as pltpu


# ------------------------------ fused kernel -------------------------------
def fused_kernel(idx_ref, git_r_ref, git_z_ref, git_n_ref,
                 w_hr_ref, w_hz_ref, w_hn_ref, bhn_ref,
                 w_cat_ref, b1_ref, bf_ref, wf2_ref, out_ref, *, jump):
    bt, L = idx_ref.shape                  # batch tile, sequence length
    V = git_r_ref.shape[0]                 # vocab
    H = git_r_ref.shape[1]                 # hdim1
    K = L // jump
    hdim2 = b1_ref.shape[1]

    idx = idx_ref[...]                                             # (bt, L) int32
    vio = lax.broadcasted_iota(jnp.int32, (bt, V), 1)              # vocab iota (reused)

    git_r = git_r_ref[...]; git_z = git_z_ref[...]; git_n = git_n_ref[...]   # f32
    w_hr = w_hr_ref[...]; w_hz = w_hz_ref[...]; w_hn = w_hn_ref[...]         # bf16
    bhn = bhn_ref[...]                                                        # (1, H) f32

    # flip(output,[1])[:, ::jump] -> slot j holds hidden state at t = L-1-j*jump
    needed = {L - 1 - j * jump: j for j in range(K)}
    parts = [None] * K

    h = None
    for t in range(L):                     # L is static -> fully unrolled
        # ---- exact one-hot gather of the prefolded input gates (off the serial chain)
        oh = jnp.where(idx[:, t:t + 1] == vio, 1.0, 0.0).astype(jnp.float32)   # (bt, V)
        gi_r = jnp.dot(oh, git_r, preferred_element_type=jnp.float32)          # (bt, H)
        gi_z = jnp.dot(oh, git_z, preferred_element_type=jnp.float32)
        gi_n = jnp.dot(oh, git_n, preferred_element_type=jnp.float32)

        if h is None:
            # h0 == 0: skip the three hidden GEMMs entirely.
            r = jax.nn.sigmoid(gi_r)
            z = jax.nn.sigmoid(gi_z)
            n = jnp.tanh(gi_n + r * bhn)
            h = (1.0 - z) * n
        else:
            # ---- serial chain: bf16 operands, f32 accumulation, lane-aligned gates
            hb = h.astype(jnp.bfloat16)
            gh_r = jnp.dot(hb, w_hr, preferred_element_type=jnp.float32)        # (bt, H)
            gh_z = jnp.dot(hb, w_hz, preferred_element_type=jnp.float32)
            gh_n = jnp.dot(hb, w_hn, preferred_element_type=jnp.float32)
            r = jax.nn.sigmoid(gi_r + gh_r)
            z = jax.nn.sigmoid(gi_z + gh_z)
            n = jnp.tanh(gi_n + r * (gh_n + bhn))
            h = (1.0 - z) * n + z * h

        if t in needed:
            parts[needed[t]] = h

    flat = jnp.concatenate(parts, axis=1)                          # (bt, K*H) lane-dense

    # ---- head: fused [w1 | wf1] GEMM (bf16 operands), second GEMM, log_softmax
    cat = jnp.dot(flat.astype(jnp.bfloat16), w_cat_ref[...],
                  preferred_element_type=jnp.float32)              # (bt, hdim2+V)
    pre = jnp.maximum(cat[:, :hdim2] + b1_ref[...], 0.0)           # lin1 = Linear + ReLU
    x = (cat[:, hdim2:] + bf_ref[...]                              # bf = bf1 + bf2 prefolded
         + jnp.dot(pre.astype(jnp.bfloat16), wf2_ref[...],
                   preferred_element_type=jnp.float32))
    m = jnp.max(x, axis=1, keepdims=True)
    s = x - m
    out_ref[...] = s - jnp.log(jnp.sum(jnp.exp(s), axis=1, keepdims=True))


# ------------------------------ forward wrapper -----------------------------
def bootstrap_nn_forward(inp, packed, *, jump, block_b=None):
    B, L = inp.shape
    V = packed["wf2"].shape[1]
    if block_b is None:
        block_b = B
    assert B % block_b == 0, "batch must be a multiple of the batch tile"
    grid = (B // block_b,)

    def const_spec(arr):
        nd = arr.ndim
        return pl.BlockSpec(arr.shape, lambda i, nd=nd: (0,) * nd)

    weights = (packed["git_r"], packed["git_z"], packed["git_n"],
               packed["w_hr"], packed["w_hz"], packed["w_hn"], packed["bhn"],
               packed["w_cat"], packed["b1"], packed["bf"], packed["wf2"])

    return pl.pallas_call(
        functools.partial(fused_kernel, jump=jump),
        out_shape=jax.ShapeDtypeStruct((B, V), jnp.float32),
        grid=grid,
        in_specs=[pl.BlockSpec((block_b, L), lambda i: (i, 0))]
                 + [const_spec(w) for w in weights],
        out_specs=pl.BlockSpec((block_b, V), lambda i: (i, 0)),
        compiler_params=pltpu.CompilerParams(
            dimension_semantics=("parallel",)),      # shards batch tiles across TCs on v7x
    )(inp.astype(jnp.int32), *weights)


# ------------------------- parameter packing for the kernel ------------------
def pack_params(params):
    g = params["gru"]
    hd = params["head"]
    emb = params["embedding"].astype(jnp.float32)
    # Fold the embedding into the per-gate input GEMMs (exact, done once at pack
    # time): git_g[v] = embedding[v] @ W_ig + biases.  r/z get both biases; n
    # keeps only b_in (b_hn stays inside r*(...) to match torch GRU exactly).
    git_r = (emb @ g["wir"] + g["bir"] + g["bhr"]).astype(jnp.float32)   # (V, H)
    git_z = (emb @ g["wiz"] + g["biz"] + g["bhz"]).astype(jnp.float32)   # (V, H)
    git_n = (emb @ g["win"] + g["bin"]).astype(jnp.float32)              # (V, H)
    w_cat = jnp.concatenate([hd["w1"], hd["wf1"]], axis=1)               # (D, hdim2+V)
    return dict(
        git_r=git_r, git_z=git_z, git_n=git_n,
        w_hr=g["whr"].astype(jnp.bfloat16),
        w_hz=g["whz"].astype(jnp.bfloat16),
        w_hn=g["whn"].astype(jnp.bfloat16),
        bhn=g["bhn"].astype(jnp.float32),
        w_cat=w_cat.astype(jnp.bfloat16),
        b1=hd["b1"].astype(jnp.float32),
        bf=(hd["bf1"] + hd["bf2"]).astype(jnp.float32),
        wf2=hd["wf2"].astype(jnp.bfloat16),
    )


# ------------------------------ pure-JAX reference --------------------------
def reference_forward(inp, params, *, jump):
    emb = params["embedding"][inp].astype(jnp.float32)            # (B, L, E)
    g = params["gru"]
    B, L, _ = emb.shape
    H = g["whr"].shape[0]
    h = jnp.zeros((B, H), jnp.float32)
    outs = []
    for t in range(L):
        x_t = emb[:, t, :]
        r = jax.nn.sigmoid(x_t @ g["wir"] + g["bir"] + h @ g["whr"] + g["bhr"])
        z = jax.nn.sigmoid(x_t @ g["wiz"] + g["biz"] + h @ g["whz"] + g["bhz"])
        n = jnp.tanh(x_t @ g["win"] + g["bin"] + r * (h @ g["whn"] + g["bhn"]))
        h = (1.0 - z) * n + z * h
        outs.append(h)
    out = jnp.stack(outs, axis=1)                                 # (B, L, H)
    sliced = out[:, ::-1, :][:, ::jump, :]
    flat = sliced.reshape(B, -1)
    hd = params["head"]
    pre = jnp.maximum(flat @ hd["w1"] + hd["b1"], 0.0)
    x = flat @ hd["wf1"] + hd["bf1"] + pre @ hd["wf2"] + hd["bf2"]
    return jax.nn.log_softmax(x, axis=1)


# ------------------------------ parameter init ------------------------------
def init_params(key, vocab_size, emb_size, length, jump, hdim1, hdim2):
    ks = jax.random.split(key, 20)
    D = hdim1 * (length // jump)
    scale = 0.1

    def mat(k, shape):
        return (scale * jax.random.normal(k, shape)).astype(jnp.float32)

    gru = dict(
        wir=mat(ks[0], (emb_size, hdim1)), wiz=mat(ks[1], (emb_size, hdim1)),
        win=mat(ks[2], (emb_size, hdim1)),
        whr=mat(ks[3], (hdim1, hdim1)), whz=mat(ks[4], (hdim1, hdim1)),
        whn=mat(ks[5], (hdim1, hdim1)),
        bir=mat(ks[6], (1, hdim1)), biz=mat(ks[7], (1, hdim1)),
        bin=mat(ks[8], (1, hdim1)),
        bhr=mat(ks[9], (1, hdim1)), bhz=mat(ks[10], (1, hdim1)),
        bhn=mat(ks[11], (1, hdim1)),
    )
    head = dict(
        w1=mat(ks[12], (D, hdim2)), b1=mat(ks[13], (1, hdim2)),
        wf1=mat(ks[14], (D, vocab_size)), bf1=mat(ks[15], (1, vocab_size)),
        wf2=mat(ks[16], (hdim2, vocab_size)), bf2=mat(ks[17], (1, vocab_size)),
    )
    embedding = mat(ks[18], (vocab_size, emb_size))
    return dict(embedding=embedding, gru=gru, head=head)


if __name__ == "__main__":
    # Module config: BootstrapNN(vocab_size=16, emb_size=8, length=8, jump=2,
    #                            hdim1=32, hdim2=32, n_layers=1, bidirectional=False)
    vocab_size, emb_size, length, jump, hdim1, hdim2 = 16, 8, 8, 2, 32, 32

    key = jax.random.PRNGKey(0)
    k_param, k_inp, k_inp2 = jax.random.split(key, 3)
    params = init_params(k_param, vocab_size, emb_size, length, jump, hdim1, hdim2)
    packed = pack_params(params)

    # Mixed-precision tolerance: MXU operands are bf16 (f32 accumulation / gates);
    # error vs the pure-f32 reference is ~1e-3 at these weight scales.
    TOL = dict(atol=1e-2, rtol=1e-2)

    # ---- small-shape check (batch=2): single program, grid=(1,) ----
    inp = jax.random.randint(k_inp, (2, length), 0, vocab_size, dtype=jnp.int32)
    fwd = jax.jit(functools.partial(bootstrap_nn_forward, jump=jump))
    out = jax.block_until_ready(fwd(inp, packed))
    ref = reference_forward(inp, params, jump=jump)
    assert out.shape == (2, vocab_size)
    assert jnp.allclose(out, ref, **TOL), "mismatch vs pure-JAX reference (batch=2)"

    # ---- batch-tiled check (batch=16, tile=8): exercises the parallel batch grid
    #      (sharded across both TensorCores on v7x) ----
    inp16 = jax.random.randint(k_inp2, (16, length), 0, vocab_size, dtype=jnp.int32)
    fwd_tiled = jax.jit(functools.partial(bootstrap_nn_forward, jump=jump, block_b=8))
    out16 = jax.block_until_ready(fwd_tiled(inp16, packed))
    ref16 = reference_forward(inp16, params, jump=jump)
    assert jnp.allclose(out16, ref16, **TOL), "mismatch vs pure-JAX reference (batch=16)"

    print("KERNEL_OK")
</pallas_src>

<mosaic_0001>
module attributes {stable_mosaic.version = 11 : i64} {
  func.func @fused_kernel(%arg0: i32, %arg1: memref<2x8xi32, #tpu.memory_space<vmem>>, %arg2: memref<16x32xf32, #tpu.memory_space<vmem>>, %arg3: memref<16x32xf32, #tpu.memory_space<vmem>>, %arg4: memref<16x32xf32, #tpu.memory_space<vmem>>, %arg5: memref<32x32xbf16, #tpu.memory_space<vmem>>, %arg6: memref<32x32xbf16, #tpu.memory_space<vmem>>, %arg7: memref<32x32xbf16, #tpu.memory_space<vmem>>, %arg8: memref<1x32xf32, #tpu.memory_space<vmem>>, %arg9: memref<128x48xbf16, #tpu.memory_space<vmem>>, %arg10: memref<1x32xf32, #tpu.memory_space<vmem>>, %arg11: memref<1x16xf32, #tpu.memory_space<vmem>>, %arg12: memref<32x16xbf16, #tpu.memory_space<vmem>>, %arg13: memref<2x16xf32, #tpu.memory_space<vmem>>) attributes {dimension_semantics = [#tpu.dimension_semantics<parallel>], iteration_bounds = array<i64: 1>, scalar_prefetch = 0 : i64, scratch_operands = 0 : i64, tpu.core_type = #tpu.core_type<tc>, window_params = [{transform_indices = @transform_0, window_bounds = array<i64: 2, 8>}, {pipeline_mode = #tpu.pipeline_mode<synchronous>, transform_indices = @transform_1, window_bounds = array<i64: 16, 32>}, {pipeline_mode = #tpu.pipeline_mode<synchronous>, transform_indices = @transform_2, window_bounds = array<i64: 16, 32>}, {pipeline_mode = #tpu.pipeline_mode<synchronous>, transform_indices = @transform_3, window_bounds = array<i64: 16, 32>}, {pipeline_mode = #tpu.pipeline_mode<synchronous>, transform_indices = @transform_4, window_bounds = array<i64: 32, 32>}, {pipeline_mode = #tpu.pipeline_mode<synchronous>, transform_indices = @transform_5, window_bounds = array<i64: 32, 32>}, {pipeline_mode = #tpu.pipeline_mode<synchronous>, transform_indices = @transform_6, window_bounds = array<i64: 32, 32>}, {pipeline_mode = #tpu.pipeline_mode<synchronous>, transform_indices = @transform_7, window_bounds = array<i64: 1, 32>}, {pipeline_mode = #tpu.pipeline_mode<synchronous>, transform_indices = @transform_8, window_bounds = array<i64: 128, 48>}, {pipeline_mode = #tpu.pipeline_mode<synchronous>, transform_indices = @transform_9, window_bounds = array<i64: 1, 32>}, {pipeline_mode = #tpu.pipeline_mode<synchronous>, transform_indices = @transform_10, window_bounds = array<i64: 1, 16>}, {pipeline_mode = #tpu.pipeline_mode<synchronous>, transform_indices = @transform_11, window_bounds = array<i64: 32, 16>}, {transform_indices = @transform_12, window_bounds = array<i64: 2, 16>}]} {
    %c0 = arith.constant 0 : index
    %c0_0 = arith.constant 0 : index
    %0 = vector.load %arg1[%c0, %c0_0] : memref<2x8xi32, #tpu.memory_space<vmem>>, vector<2x8xi32>
    %1 = tpu.iota {dimensions = array<i32: 1>} : vector<2x16xi32>
    %c0_1 = arith.constant 0 : index
    %c0_2 = arith.constant 0 : index
    %2 = vector.load %arg2[%c0_1, %c0_2] : memref<16x32xf32, #tpu.memory_space<vmem>>, vector<16x32xf32>
    %c0_3 = arith.constant 0 : index
    %c0_4 = arith.constant 0 : index
    %3 = vector.load %arg3[%c0_3, %c0_4] : memref<16x32xf32, #tpu.memory_space<vmem>>, vector<16x32xf32>
    %c0_5 = arith.constant 0 : index
    %c0_6 = arith.constant 0 : index
    %4 = vector.load %arg4[%c0_5, %c0_6] : memref<16x32xf32, #tpu.memory_space<vmem>>, vector<16x32xf32>
    %c0_7 = arith.constant 0 : index
    %c0_8 = arith.constant 0 : index
    %5 = vector.load %arg5[%c0_7, %c0_8] : memref<32x32xbf16, #tpu.memory_space<vmem>>, vector<32x32xbf16>
    %c0_9 = arith.constant 0 : index
    %c0_10 = arith.constant 0 : index
    %6 = vector.load %arg6[%c0_9, %c0_10] : memref<32x32xbf16, #tpu.memory_space<vmem>>, vector<32x32xbf16>
    %c0_11 = arith.constant 0 : index
    %c0_12 = arith.constant 0 : index
    %7 = vector.load %arg7[%c0_11, %c0_12] : memref<32x32xbf16, #tpu.memory_space<vmem>>, vector<32x32xbf16>
    %c0_13 = arith.constant 0 : index
    %c0_14 = arith.constant 0 : index
    %8 = vector.load %arg8[%c0_13, %c0_14] : memref<1x32xf32, #tpu.memory_space<vmem>>, vector<1x32xf32>
    %9 = vector.extract_strided_slice %0 {offsets = [0, 0], sizes = [2, 1], strides = [1, 1]} : vector<2x8xi32> to vector<2x1xi32>
    %10 = vector.broadcast %9 : vector<2x1xi32> to vector<2x16xi32>
    %11 = arith.cmpi eq, %10, %1 : vector<2x16xi32>
    %cst = arith.constant 1.000000e+00 : f32
    %cst_15 = arith.constant 0.000000e+00 : f32
    %12 = vector.broadcast %cst : f32 to vector<2x16xf32>
    %13 = vector.broadcast %cst_15 : f32 to vector<2x16xf32>
    %14 = arith.select %11, %12, %13 : vector<2x16xi1>, vector<2x16xf32>
    %cst_16 = arith.constant dense<0.000000e+00> : vector<2x32xf32>
    %15 = tpu.matmul %14, %2, %cst_16 {dimension_numbers = #tpu.dot_dimension_numbers<[1], [0], [0], [1], [0, 0, 1, 1], [], []>} : vector<2x16xf32>, vector<16x32xf32>, vector<2x32xf32> -> vector<2x32xf32>
    %cst_17 = arith.constant dense<0.000000e+00> : vector<2x32xf32>
    %16 = tpu.matmul %14, %3, %cst_17 {dimension_numbers = #tpu.dot_dimension_numbers<[1], [0], [0], [1], [0, 0, 1, 1], [], []>} : vector<2x16xf32>, vector<16x32xf32>, vector<2x32xf32> -> vector<2x32xf32>
    %cst_18 = arith.constant dense<0.000000e+00> : vector<2x32xf32>
    %17 = tpu.matmul %14, %4, %cst_18 {dimension_numbers = #tpu.dot_dimension_numbers<[1], [0], [0], [1], [0, 0, 1, 1], [], []>} : vector<2x16xf32>, vector<16x32xf32>, vector<2x32xf32> -> vector<2x32xf32>
    %18 = arith.negf %15 : vector<2x32xf32>
    %19 = math.exp %18 : vector<2x32xf32>
    %cst_19 = arith.constant 1.000000e+00 : f32
    %20 = vector.broadcast %cst_19 : f32 to vector<2x32xf32>
    %21 = arith.addf %20, %19 : vector<2x32xf32>
    %22 = arith.divf %20, %21 : vector<2x32xf32>
    %23 = arith.negf %16 : vector<2x32xf32>
    %24 = math.exp %23 : vector<2x32xf32>
    %cst_20 = arith.constant 1.000000e+00 : f32
    %25 = vector.broadcast %cst_20 : f32 to vector<2x32xf32>
    %26 = arith.addf %25, %24 : vector<2x32xf32>
    %27 = arith.divf %25, %26 : vector<2x32xf32>
    %28 = vector.broadcast %8 : vector<1x32xf32> to vector<2x32xf32>
    %29 = arith.mulf %22, %28 : vector<2x32xf32>
    %30 = arith.addf %17, %29 : vector<2x32xf32>
    %31 = math.tanh %30 : vector<2x32xf32>
    %cst_21 = arith.constant 1.000000e+00 : f32
    %32 = vector.broadcast %cst_21 : f32 to vector<2x32xf32>
    %33 = arith.subf %32, %27 : vector<2x32xf32>
    %34 = arith.mulf %33, %31 : vector<2x32xf32>
    %35 = vector.extract_strided_slice %0 {offsets = [0, 1], sizes = [2, 1], strides = [1, 1]} : vector<2x8xi32> to vector<2x1xi32>
    %36 = vector.broadcast %35 : vector<2x1xi32> to vector<2x16xi32>
    %37 = arith.cmpi eq, %36, %1 : vector<2x16xi32>
    %cst_22 = arith.constant 1.000000e+00 : f32
    %cst_23 = arith.constant 0.000000e+00 : f32
    %38 = vector.broadcast %cst_22 : f32 to vector<2x16xf32>
    %39 = vector.broadcast %cst_23 : f32 to vector<2x16xf32>
    %40 = arith.select %37, %38, %39 : vector<2x16xi1>, vector<2x16xf32>
    %cst_24 = arith.constant dense<0.000000e+00> : vector<2x32xf32>
    %41 = tpu.matmul %40, %2, %cst_24 {dimension_numbers = #tpu.dot_dimension_numbers<[1], [0], [0], [1], [0, 0, 1, 1], [], []>} : vector<2x16xf32>, vector<16x32xf32>, vector<2x32xf32> -> vector<2x32xf32>
    %cst_25 = arith.constant dense<0.000000e+00> : vector<2x32xf32>
    %42 = tpu.matmul %40, %3, %cst_25 {dimension_numbers = #tpu.dot_dimension_numbers<[1], [0], [0], [1], [0, 0, 1, 1], [], []>} : vector<2x16xf32>, vector<16x32xf32>, vector<2x32xf32> -> vector<2x32xf32>
    %cst_26 = arith.constant dense<0.000000e+00> : vector<2x32xf32>
    %43 = tpu.matmul %40, %4, %cst_26 {dimension_numbers = #tpu.dot_dimension_numbers<[1], [0], [0], [1], [0, 0, 1, 1], [], []>} : vector<2x16xf32>, vector<16x32xf32>, vector<2x32xf32> -> vector<2x32xf32>
    %44 = arith.truncf %34 : vector<2x32xf32> to vector<2x32xbf16>
    %cst_27 = arith.constant dense<0.000000e+00> : vector<2x32xf32>
    %45 = tpu.matmul %44, %5, %cst_27 {dimension_numbers = #tpu.dot_dimension_numbers<[1], [0], [0], [1], [0, 0, 1, 1], [], []>} : vector<2x32xbf16>, vector<32x32xbf16>, vector<2x32xf32> -> vector<2x32xf32>
    %cst_28 = arith.constant dense<0.000000e+00> : vector<2x32xf32>
    %46 = tpu.matmul %44, %6, %cst_28 {dimension_numbers = #tpu.dot_dimension_numbers<[1], [0], [0], [1], [0, 0, 1, 1], [], []>} : vector<2x32xbf16>, vector<32x32xbf16>, vector<2x32xf32> -> vector<2x32xf32>
    %cst_29 = arith.constant dense<0.000000e+00> : vector<2x32xf32>
    %47 = tpu.matmul %44, %7, %cst_29 {dimension_numbers = #tpu.dot_dimension_numbers<[1], [0], [0], [1], [0, 0, 1, 1], [], []>} : vector<2x32xbf16>, vector<32x32xbf16>, vector<2x32xf32> -> vector<2x32xf32>
    %48 = arith.addf %41, %45 : vector<2x32xf32>
    %49 = arith.negf %48 : vector<2x32xf32>
    %50 = math.exp %49 : vector<2x32xf32>
    %cst_30 = arith.constant 1.000000e+00 : f32
    %51 = vector.broadcast %cst_30 : f32 to vector<2x32xf32>
    %52 = arith.addf %51, %50 : vector<2x32xf32>
    %53 = arith.divf %51, %52 : vector<2x32xf32>
    %54 = arith.addf %42, %46 : vector<2x32xf32>
    %55 = arith.negf %54 : vector<2x32xf32>
    %56 = math.exp %55 : vector<2x32xf32>
    %cst_31 = arith.constant 1.000000e+00 : f32
    %57 = vector.broadcast %cst_31 : f32 to vector<2x32xf32>
    %58 = arith.addf %57, %56 : vector<2x32xf32>
    %59 = arith.divf %57, %58 : vector<2x32xf32>
    %60 = vector.broadcast %8 : vector<1x32xf32> to vector<2x32xf32>
    %61 = arith.addf %47, %60 : vector<2x32xf32>
    %62 = arith.mulf %53, %61 : vector<2x32xf32>
    %63 = arith.addf %43, %62 : vector<2x32xf32>
    %64 = math.tanh %63 : vector<2x32xf32>
    %cst_32 = arith.constant 1.000000e+00 : f32
    %65 = vector.broadcast %cst_32 : f32 to vector<2x32xf32>
    %66 = arith.subf %65, %59 : vector<2x32xf32>
    %67 = arith.mulf %66, %64 : vector<2x32xf32>
    %68 = arith.mulf %59, %34 : vector<2x32xf32>
    %69 = arith.addf %67, %68 : vector<2x32xf32>
    %70 = vector.extract_strided_slice %0 {offsets = [0, 2], sizes = [2, 1], strides = [1, 1]} : vector<2x8xi32> to vector<2x1xi32>
    %71 = vector.broadcast %70 : vector<2x1xi32> to vector<2x16xi32>
    %72 = arith.cmpi eq, %71, %1 : vector<2x16xi32>
    %cst_33 = arith.constant 1.000000e+00 : f32
    %cst_34 = arith.constant 0.000000e+00 : f32
    %73 = vector.broadcast %cst_33 : f32 to vector<2x16xf32>
    %74 = vector.broadcast %cst_34 : f32 to vector<2x16xf32>
    %75 = arith.select %72, %73, %74 : vector<2x16xi1>, vector<2x16xf32>
    %cst_35 = arith.constant dense<0.000000e+00> : vector<2x32xf32>
    %76 = tpu.matmul %75, %2, %cst_35 {dimension_numbers = #tpu.dot_dimension_numbers<[1], [0], [0], [1], [0, 0, 1, 1], [], []>} : vector<2x16xf32>, vector<16x32xf32>, vector<2x32xf32> -> vector<2x32xf32>
    %cst_36 = arith.constant dense<0.000000e+00> : vector<2x32xf32>
    %77 = tpu.matmul %75, %3, %cst_36 {dimension_numbers = #tpu.dot_dimension_numbers<[1], [0], [0], [1], [0, 0, 1, 1], [], []>} : vector<2x16xf32>, vector<16x32xf32>, vector<2x32xf32> -> vector<2x32xf32>
    %cst_37 = arith.constant dense<0.000000e+00> : vector<2x32xf32>
    %78 = tpu.matmul %75, %4, %cst_37 {dimension_numbers = #tpu.dot_dimension_numbers<[1], [0], [0], [1], [0, 0, 1, 1], [], []>} : vector<2x16xf32>, vector<16x32xf32>, vector<2x32xf32> -> vector<2x32xf32>
    %79 = arith.truncf %69 : vector<2x32xf32> to vector<2x32xbf16>
    %cst_38 = arith.constant dense<0.000000e+00> : vector<2x32xf32>
    %80 = tpu.matmul %79, %5, %cst_38 {dimension_numbers = #tpu.dot_dimension_numbers<[1], [0], [0], [1], [0, 0, 1, 1], [], []>} : vector<2x32xbf16>, vector<32x32xbf16>, vector<2x32xf32> -> vector<2x32xf32>
    %cst_39 = arith.constant dense<0.000000e+00> : vector<2x32xf32>
    %81 = tpu.matmul %79, %6, %cst_39 {dimension_numbers = #tpu.dot_dimension_numbers<[1], [0], [0], [1], [0, 0, 1, 1], [], []>} : vector<2x32xbf16>, vector<32x32xbf16>, vector<2x32xf32> -> vector<2x32xf32>
    %cst_40 = arith.constant dense<0.000000e+00> : vector<2x32xf32>
    %82 = tpu.matmul %79, %7, %cst_40 {dimension_numbers = #tpu.dot_dimension_numbers<[1], [0], [0], [1], [0, 0, 1, 1], [], []>} : vector<2x32xbf16>, vector<32x32xbf16>, vector<2x32xf32> -> vector<2x32xf32>
    %83 = arith.addf %76, %80 : vector<2x32xf32>
    %84 = arith.negf %83 : vector<2x32xf32>
    %85 = math.exp %84 : vector<2x32xf32>
    %cst_41 = arith.constant 1.000000e+00 : f32
    %86 = vector.broadcast %cst_41 : f32 to vector<2x32xf32>
    %87 = arith.addf %86, %85 : vector<2x32xf32>
    %88 = arith.divf %86, %87 : vector<2x32xf32>
    %89 = arith.addf %77, %81 : vector<2x32xf32>
    %90 = arith.negf %89 : vector<2x32xf32>
    %91 = math.exp %90 : vector<2x32xf32>
    %cst_42 = arith.constant 1.000000e+00 : f32
    %92 = vector.broadcast %cst_42 : f32 to vector<2x32xf32>
    %93 = arith.addf %92, %91 : vector<2x32xf32>
    %94 = arith.divf %92, %93 : vector<2x32xf32>
    %95 = vector.broadcast %8 : vector<1x32xf32> to vector<2x32xf32>
    %96 = arith.addf %82, %95 : vector<2x32xf32>
    %97 = arith.mulf %88, %96 : vector<2x32xf32>
    %98 = arith.addf %78, %97 : vector<2x32xf32>
    %99 = math.tanh %98 : vector<2x32xf32>
    %cst_43 = arith.constant 1.000000e+00 : f32
    %100 = vector.broadcast %cst_43 : f32 to vector<2x32xf32>
    %101 = arith.subf %100, %94 : vector<2x32xf32>
    %102 = arith.mulf %101, %99 : vector<2x32xf32>
    %103 = arith.mulf %94, %69 : vector<2x32xf32>
    %104 = arith.addf %102, %103 : vector<2x32xf32>
    %105 = vector.extract_strided_slice %0 {offsets = [0, 3], sizes = [2, 1], strides = [1, 1]} : vector<2x8xi32> to vector<2x1xi32>
    %106 = vector.broadcast %105 : vector<2x1xi32> to vector<2x16xi32>
    %107 = arith.cmpi eq, %106, %1 : vector<2x16xi32>
    %cst_44 = arith.constant 1.000000e+00 : f32
    %cst_45 = arith.constant 0.000000e+00 : f32
    %108 = vector.broadcast %cst_44 : f32 to vector<2x16xf32>
    %109 = vector.broadcast %cst_45 : f32 to vector<2x16xf32>
    %110 = arith.select %107, %108, %109 : vector<2x16xi1>, vector<2x16xf32>
    %cst_46 = arith.constant dense<0.000000e+00> : vector<2x32xf32>
    %111 = tpu.matmul %110, %2, %cst_46 {dimension_numbers = #tpu.dot_dimension_numbers<[1], [0], [0], [1], [0, 0, 1, 1], [], []>} : vector<2x16xf32>, vector<16x32xf32>, vector<2x32xf32> -> vector<2x32xf32>
    %cst_47 = arith.constant dense<0.000000e+00> : vector<2x32xf32>
    %112 = tpu.matmul %110, %3, %cst_47 {dimension_numbers = #tpu.dot_dimension_numbers<[1], [0], [0], [1], [0, 0, 1, 1], [], []>} : vector<2x16xf32>, vector<16x32xf32>, vector<2x32xf32> -> vector<2x32xf32>
    %cst_48 = arith.constant dense<0.000000e+00> : vector<2x32xf32>
    %113 = tpu.matmul %110, %4, %cst_48 {dimension_numbers = #tpu.dot_dimension_numbers<[1], [0], [0], [1], [0, 0, 1, 1], [], []>} : vector<2x16xf32>, vector<16x32xf32>, vector<2x32xf32> -> vector<2x32xf32>
    %114 = arith.truncf %104 : vector<2x32xf32> to vector<2x32xbf16>
    %cst_49 = arith.constant dense<0.000000e+00> : vector<2x32xf32>
    %115 = tpu.matmul %114, %5, %cst_49 {dimension_numbers = #tpu.dot_dimension_numbers<[1], [0], [0], [1], [0, 0, 1, 1], [], []>} : vector<2x32xbf16>, vector<32x32xbf16>, vector<2x32xf32> -> vector<2x32xf32>
    %cst_50 = arith.constant dense<0.000000e+00> : vector<2x32xf32>
    %116 = tpu.matmul %114, %6, %cst_50 {dimension_numbers = #tpu.dot_dimension_numbers<[1], [0], [0], [1], [0, 0, 1, 1], [], []>} : vector<2x32xbf16>, vector<32x32xbf16>, vector<2x32xf32> -> vector<2x32xf32>
    %cst_51 = arith.constant dense<0.000000e+00> : vector<2x32xf32>
    %117 = tpu.matmul %114, %7, %cst_51 {dimension_numbers = #tpu.dot_dimension_numbers<[1], [0], [0], [1], [0, 0, 1, 1], [], []>} : vector<2x32xbf16>, vector<32x32xbf16>, vector<2x32xf32> -> vector<2x32xf32>
    %118 = arith.addf %111, %115 : vector<2x32xf32>
    %119 = arith.negf %118 : vector<2x32xf32>
    %120 = math.exp %119 : vector<2x32xf32>
    %cst_52 = arith.constant 1.000000e+00 : f32
    %121 = vector.broadcast %cst_52 : f32 to vector<2x32xf32>
    %122 = arith.addf %121, %120 : vector<2x32xf32>
    %123 = arith.divf %121, %122 : vector<2x32xf32>
    %124 = arith.addf %112, %116 : vector<2x32xf32>
    %125 = arith.negf %124 : vector<2x32xf32>
    %126 = math.exp %125 : vector<2x32xf32>
    %cst_53 = arith.constant 1.000000e+00 : f32
    %127 = vector.broadcast %cst_53 : f32 to vector<2x32xf32>
    %128 = arith.addf %127, %126 : vector<2x32xf32>
    %129 = arith.divf %127, %128 : vector<2x32xf32>
    %130 = vector.broadcast %8 : vector<1x32xf32> to vector<2x32xf32>
    %131 = arith.addf %117, %130 : vector<2x32xf32>
    %132 = arith.mulf %123, %131 : vector<2x32xf32>
    %133 = arith.addf %113, %132 : vector<2x32xf32>
    %134 = math.tanh %133 : vector<2x32xf32>
    %cst_54 = arith.constant 1.000000e+00 : f32
    %135 = vector.broadcast %cst_54 : f32 to vector<2x32xf32>
    %136 = arith.subf %135, %129 : vector<2x32xf32>
    %137 = arith.mulf %136, %134 : vector<2x32xf32>
    %138 = arith.mulf %129, %104 : vector<2x32xf32>
    %139 = arith.addf %137, %138 : vector<2x32xf32>
    %140 = vector.extract_strided_slice %0 {offsets = [0, 4], sizes = [2, 1], strides = [1, 1]} : vector<2x8xi32> to vector<2x1xi32>
    %141 = vector.broadcast %140 : vector<2x1xi32> to vector<2x16xi32>
    %142 = arith.cmpi eq, %141, %1 : vector<2x16xi32>
    %cst_55 = arith.constant 1.000000e+00 : f32
    %cst_56 = arith.constant 0.000000e+00 : f32
    %143 = vector.broadcast %cst_55 : f32 to vector<2x16xf32>
    %144 = vector.broadcast %cst_56 : f32 to vector<2x16xf32>
    %145 = arith.select %142, %143, %144 : vector<2x16xi1>, vector<2x16xf32>
    %cst_57 = arith.constant dense<0.000000e+00> : vector<2x32xf32>
    %146 = tpu.matmul %145, %2, %cst_57 {dimension_numbers = #tpu.dot_dimension_numbers<[1], [0], [0], [1], [0, 0, 1, 1], [], []>} : vector<2x16xf32>, vector<16x32xf32>, vector<2x32xf32> -> vector<2x32xf32>
    %cst_58 = arith.constant dense<0.000000e+00> : vector<2x32xf32>
    %147 = tpu.matmul %145, %3, %cst_58 {dimension_numbers = #tpu.dot_dimension_numbers<[1], [0], [0], [1], [0, 0, 1, 1], [], []>} : vector<2x16xf32>, vector<16x32xf32>, vector<2x32xf32> -> vector<2x32xf32>
    %cst_59 = arith.constant dense<0.000000e+00> : vector<2x32xf32>
    %148 = tpu.matmul %145, %4, %cst_59 {dimension_numbers = #tpu.dot_dimension_numbers<[1], [0], [0], [1], [0, 0, 1, 1], [], []>} : vector<2x16xf32>, vector<16x32xf32>, vector<2x32xf32> -> vector<2x32xf32>
    %149 = arith.truncf %139 : vector<2x32xf32> to vector<2x32xbf16>
    %cst_60 = arith.constant dense<0.000000e+00> : vector<2x32xf32>
    %150 = tpu.matmul %149, %5, %cst_60 {dimension_numbers = #tpu.dot_dimension_numbers<[1], [0], [0], [1], [0, 0, 1, 1], [], []>} : vector<2x32xbf16>, vector<32x32xbf16>, vector<2x32xf32> -> vector<2x32xf32>
    %cst_61 = arith.constant dense<0.000000e+00> : vector<2x32xf32>
    %151 = tpu.matmul %149, %6, %cst_61 {dimension_numbers = #tpu.dot_dimension_numbers<[1], [0], [0], [1], [0, 0, 1, 1], [], []>} : vector<2x32xbf16>, vector<32x32xbf16>, vector<2x32xf32> -> vector<2x32xf32>
    %cst_62 = arith.constant dense<0.000000e+00> : vector<2x32xf32>
    %152 = tpu.matmul %149, %7, %cst_62 {dimension_numbers = #tpu.dot_dimension_numbers<[1], [0], [0], [1], [0, 0, 1, 1], [], []>} : vector<2x32xbf16>, vector<32x32xbf16>, vector<2x32xf32> -> vector<2x32xf32>
    %153 = arith.addf %146, %150 : vector<2x32xf32>
    %154 = arith.negf %153 : vector<2x32xf32>
    %155 = math.exp %154 : vector<2x32xf32>
    %cst_63 = arith.constant 1.000000e+00 : f32
    %156 = vector.broadcast %cst_63 : f32 to vector<2x32xf32>
    %157 = arith.addf %156, %155 : vector<2x32xf32>
    %158 = arith.divf %156, %157 : vector<2x32xf32>
    %159 = arith.addf %147, %151 : vector<2x32xf32>
    %160 = arith.negf %159 : vector<2x32xf32>
    %161 = math.exp %160 : vector<2x32xf32>
    %cst_64 = arith.constant 1.000000e+00 : f32
    %162 = vector.broadcast %cst_64 : f32 to vector<2x32xf32>
    %163 = arith.addf %162, %161 : vector<2x32xf32>
    %164 = arith.divf %162, %163 : vector<2x32xf32>
    %165 = vector.broadcast %8 : vector<1x32xf32> to vector<2x32xf32>
    %166 = arith.addf %152, %165 : vector<2x32xf32>
    %167 = arith.mulf %158, %166 : vector<2x32xf32>
    %168 = arith.addf %148, %167 : vector<2x32xf32>
    %169 = math.tanh %168 : vector<2x32xf32>
    %cst_65 = arith.constant 1.000000e+00 : f32
    %170 = vector.broadcast %cst_65 : f32 to vector<2x32xf32>
    %171 = arith.subf %170, %164 : vector<2x32xf32>
    %172 = arith.mulf %171, %169 : vector<2x32xf32>
    %173 = arith.mulf %164, %139 : vector<2x32xf32>
    %174 = arith.addf %172, %173 : vector<2x32xf32>
    %175 = vector.extract_strided_slice %0 {offsets = [0, 5], sizes = [2, 1], strides = [1, 1]} : vector<2x8xi32> to vector<2x1xi32>
    %176 = vector.broadcast %175 : vector<2x1xi32> to vector<2x16xi32>
    %177 = arith.cmpi eq, %176, %1 : vector<2x16xi32>
    %cst_66 = arith.constant 1.000000e+00 : f32
    %cst_67 = arith.constant 0.000000e+00 : f32
    %178 = vector.broadcast %cst_66 : f32 to vector<2x16xf32>
    %179 = vector.broadcast %cst_67 : f32 to vector<2x16xf32>
    %180 = arith.select %177, %178, %179 : vector<2x16xi1>, vector<2x16xf32>
    %cst_68 = arith.constant dense<0.000000e+00> : vector<2x32xf32>
    %181 = tpu.matmul %180, %2, %cst_68 {dimension_numbers = #tpu.dot_dimension_numbers<[1], [0], [0], [1], [0, 0, 1, 1], [], []>} : vector<2x16xf32>, vector<16x32xf32>, vector<2x32xf32> -> vector<2x32xf32>
    %cst_69 = arith.constant dense<0.000000e+00> : vector<2x32xf32>
    %182 = tpu.matmul %180, %3, %cst_69 {dimension_numbers = #tpu.dot_dimension_numbers<[1], [0], [0], [1], [0, 0, 1, 1], [], []>} : vector<2x16xf32>, vector<16x32xf32>, vector<2x32xf32> -> vector<2x32xf32>
    %cst_70 = arith.constant dense<0.000000e+00> : vector<2x32xf32>
    %183 = tpu.matmul %180, %4, %cst_70 {dimension_numbers = #tpu.dot_dimension_numbers<[1], [0], [0], [1], [0, 0, 1, 1], [], []>} : vector<2x16xf32>, vector<16x32xf32>, vector<2x32xf32> -> vector<2x32xf32>
    %184 = arith.truncf %174 : vector<2x32xf32> to vector<2x32xbf16>
    %cst_71 = arith.constant dense<0.000000e+00> : vector<2x32xf32>
    %185 = tpu.matmul %184, %5, %cst_71 {dimension_numbers = #tpu.dot_dimension_numbers<[1], [0], [0], [1], [0, 0, 1, 1], [], []>} : vector<2x32xbf16>, vector<32x32xbf16>, vector<2x32xf32> -> vector<2x32xf32>
    %cst_72 = arith.constant dense<0.000000e+00> : vector<2x32xf32>
    %186 = tpu.matmul %184, %6, %cst_72 {dimension_numbers = #tpu.dot_dimension_numbers<[1], [0], [0], [1], [0, 0, 1, 1], [], []>} : vector<2x32xbf16>, vector<32x32xbf16>, vector<2x32xf32> -> vector<2x32xf32>
    %cst_73 = arith.constant dense<0.000000e+00> : vector<2x32xf32>
    %187 = tpu.matmul %184, %7, %cst_73 {dimension_numbers = #tpu.dot_dimension_numbers<[1], [0], [0], [1], [0, 0, 1, 1], [], []>} : vector<2x32xbf16>, vector<32x32xbf16>, vector<2x32xf32> -> vector<2x32xf32>
    %188 = arith.addf %181, %185 : vector<2x32xf32>
    %189 = arith.negf %188 : vector<2x32xf32>
    %190 = math.exp %189 : vector<2x32xf32>
    %cst_74 = arith.constant 1.000000e+00 : f32
    %191 = vector.broadcast %cst_74 : f32 to vector<2x32xf32>
    %192 = arith.addf %191, %190 : vector<2x32xf32>
    %193 = arith.divf %191, %192 : vector<2x32xf32>
    %194 = arith.addf %182, %186 : vector<2x32xf32>
    %195 = arith.negf %194 : vector<2x32xf32>
    %196 = math.exp %195 : vector<2x32xf32>
    %cst_75 = arith.constant 1.000000e+00 : f32
    %197 = vector.broadcast %cst_75 : f32 to vector<2x32xf32>
    %198 = arith.addf %197, %196 : vector<2x32xf32>
    %199 = arith.divf %197, %198 : vector<2x32xf32>
    %200 = vector.broadcast %8 : vector<1x32xf32> to vector<2x32xf32>
    %201 = arith.addf %187, %200 : vector<2x32xf32>
    %202 = arith.mulf %193, %201 : vector<2x32xf32>
    %203 = arith.addf %183, %202 : vector<2x32xf32>
    %204 = math.tanh %203 : vector<2x32xf32>
    %cst_76 = arith.constant 1.000000e+00 : f32
    %205 = vector.broadcast %cst_76 : f32 to vector<2x32xf32>
    %206 = arith.subf %205, %199 : vector<2x32xf32>
    %207 = arith.mulf %206, %204 : vector<2x32xf32>
    %208 = arith.mulf %199, %174 : vector<2x32xf32>
    %209 = arith.addf %207, %208 : vector<2x32xf32>
    %210 = vector.extract_strided_slice %0 {offsets = [0, 6], sizes = [2, 1], strides = [1, 1]} : vector<2x8xi32> to vector<2x1xi32>
    %211 = vector.broadcast %210 : vector<2x1xi32> to vector<2x16xi32>
    %212 = arith.cmpi eq, %211, %1 : vector<2x16xi32>
    %cst_77 = arith.constant 1.000000e+00 : f32
    %cst_78 = arith.constant 0.000000e+00 : f32
    %213 = vector.broadcast %cst_77 : f32 to vector<2x16xf32>
    %214 = vector.broadcast %cst_78 : f32 to vector<2x16xf32>
    %215 = arith.select %212, %213, %214 : vector<2x16xi1>, vector<2x16xf32>
    %cst_79 = arith.constant dense<0.000000e+00> : vector<2x32xf32>
    %216 = tpu.matmul %215, %2, %cst_79 {dimension_numbers = #tpu.dot_dimension_numbers<[1], [0], [0], [1], [0, 0, 1, 1], [], []>} : vector<2x16xf32>, vector<16x32xf32>, vector<2x32xf32> -> vector<2x32xf32>
    %cst_80 = arith.constant dense<0.000000e+00> : vector<2x32xf32>
    %217 = tpu.matmul %215, %3, %cst_80 {dimension_numbers = #tpu.dot_dimension_numbers<[1], [0], [0], [1], [0, 0, 1, 1], [], []>} : vector<2x16xf32>, vector<16x32xf32>, vector<2x32xf32> -> vector<2x32xf32>
    %cst_81 = arith.constant dense<0.000000e+00> : vector<2x32xf32>
    %218 = tpu.matmul %215, %4, %cst_81 {dimension_numbers = #tpu.dot_dimension_numbers<[1], [0], [0], [1], [0, 0, 1, 1], [], []>} : vector<2x16xf32>, vector<16x32xf32>, vector<2x32xf32> -> vector<2x32xf32>
    %219 = arith.truncf %209 : vector<2x32xf32> to vector<2x32xbf16>
    %cst_82 = arith.constant dense<0.000000e+00> : vector<2x32xf32>
    %220 = tpu.matmul %219, %5, %cst_82 {dimension_numbers = #tpu.dot_dimension_numbers<[1], [0], [0], [1], [0, 0, 1, 1], [], []>} : vector<2x32xbf16>, vector<32x32xbf16>, vector<2x32xf32> -> vector<2x32xf32>
    %cst_83 = arith.constant dense<0.000000e+00> : vector<2x32xf32>
    %221 = tpu.matmul %219, %6, %cst_83 {dimension_numbers = #tpu.dot_dimension_numbers<[1], [0], [0], [1], [0, 0, 1, 1], [], []>} : vector<2x32xbf16>, vector<32x32xbf16>, vector<2x32xf32> -> vector<2x32xf32>
    %cst_84 = arith.constant dense<0.000000e+00> : vector<2x32xf32>
    %222 = tpu.matmul %219, %7, %cst_84 {dimension_numbers = #tpu.dot_dimension_numbers<[1], [0], [0], [1], [0, 0, 1, 1], [], []>} : vector<2x32xbf16>, vector<32x32xbf16>, vector<2x32xf32> -> vector<2x32xf32>
    %223 = arith.addf %216, %220 : vector<2x32xf32>
    %224 = arith.negf %223 : vector<2x32xf32>
    %225 = math.exp %224 : vector<2x32xf32>
    %cst_85 = arith.constant 1.000000e+00 : f32
    %226 = vector.broadcast %cst_85 : f32 to vector<2x32xf32>
    %227 = arith.addf %226, %225 : vector<2x32xf32>
    %228 = arith.divf %226, %227 : vector<2x32xf32>
    %229 = arith.addf %217, %221 : vector<2x32xf32>
    %230 = arith.negf %229 : vector<2x32xf32>
    %231 = math.exp %230 : vector<2x32xf32>
    %cst_86 = arith.constant 1.000000e+00 : f32
    %232 = vector.broadcast %cst_86 : f32 to vector<2x32xf32>
    %233 = arith.addf %232, %231 : vector<2x32xf32>
    %234 = arith.divf %232, %233 : vector<2x32xf32>
    %235 = vector.broadcast %8 : vector<1x32xf32> to vector<2x32xf32>
    %236 = arith.addf %222, %235 : vector<2x32xf32>
    %237 = arith.mulf %228, %236 : vector<2x32xf32>
    %238 = arith.addf %218, %237 : vector<2x32xf32>
    %239 = math.tanh %238 : vector<2x32xf32>
    %cst_87 = arith.constant 1.000000e+00 : f32
    %240 = vector.broadcast %cst_87 : f32 to vector<2x32xf32>
    %241 = arith.subf %240, %234 : vector<2x32xf32>
    %242 = arith.mulf %241, %239 : vector<2x32xf32>
    %243 = arith.mulf %234, %209 : vector<2x32xf32>
    %244 = arith.addf %242, %243 : vector<2x32xf32>
    %245 = vector.extract_strided_slice %0 {offsets = [0, 7], sizes = [2, 1], strides = [1, 1]} : vector<2x8xi32> to vector<2x1xi32>
    %246 = vector.broadcast %245 : vector<2x1xi32> to vector<2x16xi32>
    %247 = arith.cmpi eq, %246, %1 : vector<2x16xi32>
    %cst_88 = arith.constant 1.000000e+00 : f32
    %cst_89 = arith.constant 0.000000e+00 : f32
    %248 = vector.broadcast %cst_88 : f32 to vector<2x16xf32>
    %249 = vector.broadcast %cst_89 : f32 to vector<2x16xf32>
    %250 = arith.select %247, %248, %249 : vector<2x16xi1>, vector<2x16xf32>
    %cst_90 = arith.constant dense<0.000000e+00> : vector<2x32xf32>
    %251 = tpu.matmul %250, %2, %cst_90 {dimension_numbers = #tpu.dot_dimension_numbers<[1], [0], [0], [1], [0, 0, 1, 1], [], []>} : vector<2x16xf32>, vector<16x32xf32>, vector<2x32xf32> -> vector<2x32xf32>
    %cst_91 = arith.constant dense<0.000000e+00> : vector<2x32xf32>
    %252 = tpu.matmul %250, %3, %cst_91 {dimension_numbers = #tpu.dot_dimension_numbers<[1], [0], [0], [1], [0, 0, 1, 1], [], []>} : vector<2x16xf32>, vector<16x32xf32>, vector<2x32xf32> -> vector<2x32xf32>
    %cst_92 = arith.constant dense<0.000000e+00> : vector<2x32xf32>
    %253 = tpu.matmul %250, %4, %cst_92 {dimension_numbers = #tpu.dot_dimension_numbers<[1], [0], [0], [1], [0, 0, 1, 1], [], []>} : vector<2x16xf32>, vector<16x32xf32>, vector<2x32xf32> -> vector<2x32xf32>
    %254 = arith.truncf %244 : vector<2x32xf32> to vector<2x32xbf16>
    %cst_93 = arith.constant dense<0.000000e+00> : vector<2x32xf32>
    %255 = tpu.matmul %254, %5, %cst_93 {dimension_numbers = #tpu.dot_dimension_numbers<[1], [0], [0], [1], [0, 0, 1, 1], [], []>} : vector<2x32xbf16>, vector<32x32xbf16>, vector<2x32xf32> -> vector<2x32xf32>
    %cst_94 = arith.constant dense<0.000000e+00> : vector<2x32xf32>
    %256 = tpu.matmul %254, %6, %cst_94 {dimension_numbers = #tpu.dot_dimension_numbers<[1], [0], [0], [1], [0, 0, 1, 1], [], []>} : vector<2x32xbf16>, vector<32x32xbf16>, vector<2x32xf32> -> vector<2x32xf32>
    %cst_95 = arith.constant dense<0.000000e+00> : vector<2x32xf32>
    %257 = tpu.matmul %254, %7, %cst_95 {dimension_numbers = #tpu.dot_dimension_numbers<[1], [0], [0], [1], [0, 0, 1, 1], [], []>} : vector<2x32xbf16>, vector<32x32xbf16>, vector<2x32xf32> -> vector<2x32xf32>
    %258 = arith.addf %251, %255 : vector<2x32xf32>
    %259 = arith.negf %258 : vector<2x32xf32>
    %260 = math.exp %259 : vector<2x32xf32>
    %cst_96 = arith.constant 1.000000e+00 : f32
    %261 = vector.broadcast %cst_96 : f32 to vector<2x32xf32>
    %262 = arith.addf %261, %260 : vector<2x32xf32>
    %263 = arith.divf %261, %262 : vector<2x32xf32>
    %264 = arith.addf %252, %256 : vector<2x32xf32>
    %265 = arith.negf %264 : vector<2x32xf32>
    %266 = math.exp %265 : vector<2x32xf32>
    %cst_97 = arith.constant 1.000000e+00 : f32
    %267 = vector.broadcast %cst_97 : f32 to vector<2x32xf32>
    %268 = arith.addf %267, %266 : vector<2x32xf32>
    %269 = arith.divf %267, %268 : vector<2x32xf32>
    %270 = vector.broadcast %8 : vector<1x32xf32> to vector<2x32xf32>
    %271 = arith.addf %257, %270 : vector<2x32xf32>
    %272 = arith.mulf %263, %271 : vector<2x32xf32>
    %273 = arith.addf %253, %272 : vector<2x32xf32>
    %274 = math.tanh %273 : vector<2x32xf32>
    %cst_98 = arith.constant 1.000000e+00 : f32
    %275 = vector.broadcast %cst_98 : f32 to vector<2x32xf32>
    %276 = arith.subf %275, %269 : vector<2x32xf32>
    %277 = arith.mulf %276, %274 : vector<2x32xf32>
    %278 = arith.mulf %269, %244 : vector<2x32xf32>
    %279 = arith.addf %277, %278 : vector<2x32xf32>
    %280 = tpu.concatenate %279, %209, %139, %69 in 1 : vector<2x32xf32>, vector<2x32xf32>, vector<2x32xf32>, vector<2x32xf32> -> vector<2x128xf32>
    %281 = arith.truncf %280 : vector<2x128xf32> to vector<2x128xbf16>
    %c0_99 = arith.constant 0 : index
    %c0_100 = arith.constant 0 : index
    %282 = vector.load %arg9[%c0_99, %c0_100] : memref<128x48xbf16, #tpu.memory_space<vmem>>, vector<128x48xbf16>
    %cst_101 = arith.constant dense<0.000000e+00> : vector<2x48xf32>
    %283 = tpu.matmul %281, %282, %cst_101 {dimension_numbers = #tpu.dot_dimension_numbers<[1], [0], [0], [1], [0, 0, 1, 1], [], []>} : vector<2x128xbf16>, vector<128x48xbf16>, vector<2x48xf32> -> vector<2x48xf32>
    %284 = vector.extract_strided_slice %283 {offsets = [0, 0], sizes = [2, 32], strides = [1, 1]} : vector<2x48xf32> to vector<2x32xf32>
    %c0_102 = arith.constant 0 : index
    %c0_103 = arith.constant 0 : index
    %285 = vector.load %arg10[%c0_102, %c0_103] : memref<1x32xf32, #tpu.memory_space<vmem>>, vector<1x32xf32>
    %286 = vector.broadcast %285 : vector<1x32xf32> to vector<2x32xf32>
    %287 = arith.addf %284, %286 : vector<2x32xf32>
    %cst_104 = arith.constant 0.000000e+00 : f32
    %288 = vector.broadcast %cst_104 : f32 to vector<2x32xf32>
    %289 = arith.maximumf %287, %288 : vector<2x32xf32>
    %290 = vector.extract_strided_slice %283 {offsets = [0, 32], sizes = [2, 16], strides = [1, 1]} : vector<2x48xf32> to vector<2x16xf32>
    %c0_105 = arith.constant 0 : index
    %c0_106 = arith.constant 0 : index
    %291 = vector.load %arg11[%c0_105, %c0_106] : memref<1x16xf32, #tpu.memory_space<vmem>>, vector<1x16xf32>
    %292 = vector.broadcast %291 : vector<1x16xf32> to vector<2x16xf32>
    %293 = arith.addf %290, %292 : vector<2x16xf32>
    %294 = arith.truncf %289 : vector<2x32xf32> to vector<2x32xbf16>
    %c0_107 = arith.constant 0 : index
    %c0_108 = arith.constant 0 : index
    %295 = vector.load %arg12[%c0_107, %c0_108] : memref<32x16xbf16, #tpu.memory_space<vmem>>, vector<32x16xbf16>
    %cst_109 = arith.constant dense<0.000000e+00> : vector<2x16xf32>
    %296 = tpu.matmul %294, %295, %cst_109 {dimension_numbers = #tpu.dot_dimension_numbers<[1], [0], [0], [1], [0, 0, 1, 1], [], []>} : vector<2x32xbf16>, vector<32x16xbf16>, vector<2x16xf32> -> vector<2x16xf32>
    %297 = arith.addf %293, %296 : vector<2x16xf32>
    %cst_110 = arith.constant dense<0xFF800000> : vector<2xf32>
    %298 = vector.multi_reduction <maximumf>, %297, %cst_110 [1] : vector<2x16xf32> to vector<2xf32>
    %299 = vector.shape_cast %298 : vector<2xf32> to vector<2x1xf32>
    %300 = vector.broadcast %299 : vector<2x1xf32> to vector<2x16xf32>
    %301 = arith.subf %297, %300 : vector<2x16xf32>
    %302 = math.exp %301 : vector<2x16xf32>
    %cst_111 = arith.constant dense<0.000000e+00> : vector<2xf32>
    %303 = vector.multi_reduction <add>, %302, %cst_111 [1] : vector<2x16xf32> to vector<2xf32>
    %304 = vector.shape_cast %303 : vector<2xf32> to vector<2x1xf32>
    %305 = math.log %304 : vector<2x1xf32>
    %306 = vector.broadcast %305 : vector<2x1xf32> to vector<2x16xf32>
    %307 = arith.subf %301, %306 : vector<2x16xf32>
    %c0_112 = arith.constant 0 : index
    %c0_113 = arith.constant 0 : index
    %308 = vector.load %arg13[%c0_112, %c0_113] : memref<2x16xf32, #tpu.memory_space<vmem>>, vector<2x16xf32>
    tpu.vector_store %arg13[%c0_112, %c0_113], %307 {strides = array<i32>} : memref<2x16xf32, #tpu.memory_space<vmem>>, vector<2x16xf32>,
    return
  }
  func.func @transform_0(%arg0: i32) -> (i32, i32) {
    %c0_i32 = arith.constant 0 : i32
    %c0_i32_0 = arith.constant 0 : i32
    return %arg0, %c0_i32 : i32, i32
  }
  func.func @transform_1(%arg0: i32) -> (i32, i32) {
    %c0_i32 = arith.constant 0 : i32
    %c0_i32_0 = arith.constant 0 : i32
    %c0_i32_1 = arith.constant 0 : i32
    return %c0_i32, %c0_i32_0 : i32, i32
  }
  func.func @transform_2(%arg0: i32) -> (i32, i32) {
    %c0_i32 = arith.constant 0 : i32
    %c0_i32_0 = arith.constant 0 : i32
    %c0_i32_1 = arith.constant 0 : i32
    return %c0_i32, %c0_i32_0 : i32, i32
  }
  func.func @transform_3(%arg0: i32) -> (i32, i32) {
    %c0_i32 = arith.constant 0 : i32
    %c0_i32_0 = arith.constant 0 : i32
    %c0_i32_1 = arith.constant 0 : i32
    return %c0_i32, %c0_i32_0 : i32, i32
  }
  func.func @transform_4(%arg0: i32) -> (i32, i32) {
    %c0_i32 = arith.constant 0 : i32
    %c0_i32_0 = arith.constant 0 : i32
    %c0_i32_1 = arith.constant 0 : i32
    return %c0_i32, %c0_i32_0 : i32, i32
  }
  func.func @transform_5(%arg0: i32) -> (i32, i32) {
    %c0_i32 = arith.constant 0 : i32
    %c0_i32_0 = arith.constant 0 : i32
    %c0_i32_1 = arith.constant 0 : i32
    return %c0_i32, %c0_i32_0 : i32, i32
  }
  func.func @transform_6(%arg0: i32) -> (i32, i32) {
    %c0_i32 = arith.constant 0 : i32
    %c0_i32_0 = arith.constant 0 : i32
    %c0_i32_1 = arith.constant 0 : i32
    return %c0_i32, %c0_i32_0 : i32, i32
  }
  func.func @transform_7(%arg0: i32) -> (i32, i32) {
    %c0_i32 = arith.constant 0 : i32
    %c0_i32_0 = arith.constant 0 : i32
    %c0_i32_1 = arith.constant 0 : i32
    return %c0_i32, %c0_i32_0 : i32, i32
  }
  func.func @transform_8(%arg0: i32) -> (i32, i32) {
    %c0_i32 = arith.constant 0 : i32
    %c0_i32_0 = arith.constant 0 : i32
    %c0_i32_1 = arith.constant 0 : i32
    return %c0_i32, %c0_i32_0 : i32, i32
  }
  func.func @transform_9(%arg0: i32) -> (i32, i32) {
    %c0_i32 = arith.constant 0 : i32
    %c0_i32_0 = arith.constant 0 : i32
    %c0_i32_1 = arith.constant 0 : i32
    return %c0_i32, %c0_i32_0 : i32, i32
  }
  func.func @transform_10(%arg0: i32) -> (i32, i32) {
    %c0_i32 = arith.constant 0 : i32
    %c0_i32_0 = arith.constant 0 : i32
    %c0_i32_1 = arith.constant 0 : i32
    return %c0_i32, %c0_i32_0 : i32, i32
  }
  func.func @transform_11(%arg0: i32) -> (i32, i32) {
    %c0_i32 = arith.constant 0 : i32
    %c0_i32_0 = arith.constant 0 : i32
    %c0_i32_1 = arith.constant 0 : i32
    return %c0_i32, %c0_i32_0 : i32, i32
  }
  func.func @transform_12(%arg0: i32) -> (i32, i32) {
    %c0_i32 = arith.constant 0 : i32
    %c0_i32_0 = arith.constant 0 : i32
    return %arg0, %c0_i32 : i32, i32
  }
}

</mosaic_0001>

<llo_original>
// kernel: bootstrap_nn_forward.1
$region0: #{bootstrap_nn_forward.1}
  #allocation0 [shape = 'u32[]', space=smem, size = 0x4, offset = 0x4, fixed_abs, tag = 'smem constant byte address 0x4 - core index']
  #allocation1 [shape = 'u32[144,128]{1,0:T(1,128)}', space=vmem, size = 0x12000, scoped, tag = 'internal scratch']
  %s0 = inlined_call_operand.vmem [shape: s32[2,8], index: 0, kind: input, shape index: {}]
  %s1 = inlined_call_operand.vmem [shape: f32[16,32], index: 1, kind: input, shape index: {}]
  %s2 = inlined_call_operand.vmem [shape: f32[16,32], index: 2, kind: input, shape index: {}]
  %s3 = inlined_call_operand.vmem [shape: f32[16,32], index: 3, kind: input, shape index: {}]
  %s4 = inlined_call_operand.vmem [shape: bf16[32,32], index: 4, kind: input, shape index: {}]
  %s5 = inlined_call_operand.vmem [shape: bf16[32,32], index: 5, kind: input, shape index: {}]
  %s6 = inlined_call_operand.vmem [shape: bf16[32,32], index: 6, kind: input, shape index: {}]
  %s7 = inlined_call_operand.vmem [shape: f32[1,32], index: 7, kind: input, shape index: {}]
  %s8 = inlined_call_operand.vmem [shape: bf16[128,48], index: 8, kind: input, shape index: {}]
  %s9 = inlined_call_operand.vmem [shape: f32[1,32], index: 9, kind: input, shape index: {}]
  %s10 = inlined_call_operand.vmem [shape: f32[1,16], index: 10, kind: input, shape index: {}]
  %s11 = inlined_call_operand.vmem [shape: bf16[32,16], index: 11, kind: input, shape index: {}]
  %s12 = inlined_call_operand.hbm [shape: f32[2,16], index: 12, kind: output, shape index: {}]
  %s13 = sld [smem:[#allocation0]]
  $region58: #{bootstrap_nn_forward.1} parent=0
    _
  %s15 = ssub.s32 1, %s13
  %s16 = scalar_select 0, %s15, %s13
  $region1: #{bootstrap_nn_forward.1} parent=0
    #allocation2 [shape = 'u8[1024]{0}', space=vmem, size = 0x400, scoped, tag = 'output window, operand 0, single buffered']
    #allocation3 [shape = 's32[1]{0}', space=sflag, size = 0x4, scoped, tag = 'scoped memory for bootstrap_nn_forward.1']
    %17 = vsyncpa [#allocation3], 0
    // Predicated region
    $region2: #{bootstrap_nn_forward.1} parent=1 // pred_check
      _
    $region3: #{bootstrap_nn_forward.1} parent=1 // pred_check_branch
      %19 = sbr.rel (0) target = $region5
    $region4: #{bootstrap_nn_forward.1} parent=1 // pred_region
      _
    $region5: #{bootstrap_nn_forward.1} parent=1 // pred_fallthru
      _
    // Predicated region
    $region6: #{bootstrap_nn_forward.1} parent=1 // pred_check
      _
    $region7: #{bootstrap_nn_forward.1} parent=1 // pred_check_branch
      %21 = sbr.rel (0) target = $region9
    $region8: #{bootstrap_nn_forward.1} parent=1 // pred_region
      _
    $region9: #{bootstrap_nn_forward.1} parent=1 // pred_fallthru
      _
    // Predicated region
    $region10: #{bootstrap_nn_forward.1} parent=1 // pred_check
      _
    $region11: #{bootstrap_nn_forward.1} parent=1 // pred_check_branch
      %23 = sbr.rel (0) target = $region13
    $region12: #{bootstrap_nn_forward.1} parent=1 // pred_region
      _
    $region13: #{bootstrap_nn_forward.1} parent=1 // pred_fallthru
      _
    // Predicated region
    $region14: #{bootstrap_nn_forward.1} parent=1 // pred_check
      _
    $region15: #{bootstrap_nn_forward.1} parent=1 // pred_check_branch
      %25 = sbr.rel (0) target = $region17
    $region16: #{bootstrap_nn_forward.1} parent=1 // pred_region
      _
    $region17: #{bootstrap_nn_forward.1} parent=1 // pred_fallthru
      _
    // Predicated region
    $region18: #{bootstrap_nn_forward.1} parent=1 // pred_check
      _
    $region19: #{bootstrap_nn_forward.1} parent=1 // pred_check_branch
      %27 = sbr.rel (0) target = $region21
    $region20: #{bootstrap_nn_forward.1} parent=1 // pred_region
      _
    $region21: #{bootstrap_nn_forward.1} parent=1 // pred_fallthru
      _
    // Predicated region
    $region22: #{bootstrap_nn_forward.1} parent=1 // pred_check
      _
    $region23: #{bootstrap_nn_forward.1} parent=1 // pred_check_branch
      %29 = sbr.rel (0) target = $region25
    $region24: #{bootstrap_nn_forward.1} parent=1 // pred_region
      _
    $region25: #{bootstrap_nn_forward.1} parent=1 // pred_fallthru
      _
    // Predicated region
    $region26: #{bootstrap_nn_forward.1} parent=1 // pred_check
      _
    $region27: #{bootstrap_nn_forward.1} parent=1 // pred_check_branch
      %31 = sbr.rel (0) target = $region29
    $region28: #{bootstrap_nn_forward.1} parent=1 // pred_region
      _
    $region29: #{bootstrap_nn_forward.1} parent=1 // pred_fallthru
      _
    // Predicated region
    $region30: #{bootstrap_nn_forward.1} parent=1 // pred_check
      _
    $region31: #{bootstrap_nn_forward.1} parent=1 // pred_check_branch
      %33 = sbr.rel (0) target = $region33
    $region32: #{bootstrap_nn_forward.1} parent=1 // pred_region
      _
    $region33: #{bootstrap_nn_forward.1} parent=1 // pred_fallthru
      _
    // Predicated region
    $region34: #{bootstrap_nn_forward.1} parent=1 // pred_check
      _
    $region35: #{bootstrap_nn_forward.1} parent=1 // pred_check_branch
      %35 = sbr.rel (0) target = $region37
    $region36: #{bootstrap_nn_forward.1} parent=1 // pred_region
      _
    $region37: #{bootstrap_nn_forward.1} parent=1 // pred_fallthru
      _
    // Predicated region
    $region38: #{bootstrap_nn_forward.1} parent=1 // pred_check
      _
    $region39: #{bootstrap_nn_forward.1} parent=1 // pred_check_branch
      %37 = sbr.rel (0) target = $region41
    $region40: #{bootstrap_nn_forward.1} parent=1 // pred_region
      _
    $region41: #{bootstrap_nn_forward.1} parent=1 // pred_fallthru
      _
    // Predicated region
    $region42: #{bootstrap_nn_forward.1} parent=1 // pred_check
      _
    $region43: #{bootstrap_nn_forward.1} parent=1 // pred_check_branch
      %39 = sbr.rel (0) target = $region45
    $region44: #{bootstrap_nn_forward.1} parent=1 // pred_region
      _
    $region45: #{bootstrap_nn_forward.1} parent=1 // pred_fallthru
      _
    // Predicated region
    $region46: #{bootstrap_nn_forward.1} parent=1 // pred_check
      _
    $region47: #{bootstrap_nn_forward.1} parent=1 // pred_check_branch
      %41 = sbr.rel (0) target = $region49
    $region48: #{bootstrap_nn_forward.1} parent=1 // pred_region
      _
    $region49: #{bootstrap_nn_forward.1} parent=1 // pred_fallthru
      _
    %v43 = vld [vmem:[%s0] sm:$0x3]
    %v44 = vlaneseq
    %v45 = vand.u32 %v44, 127
    %v46 = vld [vmem:[%s1] sm:$0xff]
    %v47 = vld [vmem:[%s1 + $0x8] sm:$0xff]
    %v48 = vld [vmem:[%s2] sm:$0xff]
    %v49 = vld [vmem:[%s2 + $0x8] sm:$0xff]
    %v50 = vld [vmem:[%s3] sm:$0xff]
    %v51 = vld [vmem:[%s3 + $0x8] sm:$0xff]
    %v52 = vld [vmem:[%s4] sm:$0xf]
    %v53 = vld [vmem:[%s4 + $0x4] sm:$0xf]
    %v54 = vld [vmem:[%s4 + $0x8] sm:$0xf]
    %v55 = vld [vmem:[%s4 + $0xc] sm:$0xf]
    %v56 = vld [vmem:[%s5] sm:$0xf]
    %v57 = vld [vmem:[%s5 + $0x4] sm:$0xf]
    %v58 = vld [vmem:[%s5 + $0x8] sm:$0xf]
    %v59 = vld [vmem:[%s5 + $0xc] sm:$0xf]
    %v60 = vld [vmem:[%s6] sm:$0xf]
    %v61 = vld [vmem:[%s6 + $0x4] sm:$0xf]
    %v62 = vld [vmem:[%s6 + $0x8] sm:$0xf]
    %v63 = vld [vmem:[%s6 + $0xc] sm:$0xf]
    %v64 = vld [vmem:[%s7] sm:$0x1]
    %65 = vset.pattern.permute.xlu0 0
    %66 = vperm.xlu0 %65, %v43
    %v67 = vpop.permute.xlu0 %66
    %vm68 = vcmp.eq.s32.totalorder %v67, %v45
    %v69 = vsel %vm68, 1.0, 0.0
    %vm70 = vcmask 130048
    %v72 = vsel %vm70, %v69, 0
    %74 = vmatprep.subr.mxu0 0.0
    %75 = vmatpush1.msra.mxu0 %v46
    %76 = vmatprep.subr.mxu0 0.0
    %77 = vmatpush1.msra.mxu0 %v47
    %78 = vmatprep.subr.mxu0 0.0
    %79 = vmatpush1.msra.mxu0 0.0
    %80 = vmatprep.subr.mxu0 0.0
    %81 = vmatpush1.msra.mxu0 0.0
    %82 = vmatprep.subr.mxu0 0.0
    %83 = vmatpush1.msra.mxu0 0.0
    %84 = vmatprep.subr.mxu0 0.0
    %85 = vmatpush1.msra.mxu0 0.0
    %86 = vmatprep.subr.mxu0 0.0
    %87 = vmatpush1.msra.mxu0 0.0
    %88 = vmatprep.subr.mxu0 0.0
    %89 = vmatpush1.msra.mxu0 0.0
    %90 = vmatprep.subr.mxu0 0.0
    %91 = vmatpush1.msra.mxu0 0.0
    %92 = vmatprep.subr.mxu0 0.0
    %93 = vmatpush1.msra.mxu0 0.0
    %94 = vmatprep.subr.mxu0 0.0
    %95 = vmatpush1.msra.mxu0 0.0
    %96 = vmatprep.subr.mxu0 0.0
    %97 = vmatpush1.msra.mxu0 0.0
    %98 = vmatprep.subr.mxu0 0.0
    %99 = vmatpush1.msra.mxu0 0.0
    %100 = vmatprep.subr.mxu0 0.0
    %101 = vmatpush1.msra.mxu0 0.0
    %102 = vmatprep.subr.mxu0 0.0
    %103 = vmatpush1.msra.mxu0 0.0
    %104 = vmatprep.subr.mxu0 0.0
    %105 = vmatpush1.msra.mxu0 0.0
    %106 = vmatprep.subr.mxu0 0.0
    %107 = vmatpush1.msra.mxu0 0.0
    %108 = vmatprep.subr.mxu0 0.0
    %109 = vmatpush1.msra.mxu0 0.0
    %110 = vmatprep.subr.mxu0 0.0
    %111 = vmatpush1.msra.mxu0 0.0
    %112 = vmatprep.subr.mxu0 0.0
    %113 = vmatpush1.msra.mxu0 0.0
    %114 = vmatprep.subr.mxu0 0.0
    %115 = vmatpush1.msra.mxu0 0.0
    %116 = vmatprep.subr.mxu0 0.0
    %117 = vmatpush1.msra.mxu0 0.0
    %118 = vmatprep.subr.mxu0 0.0
    %119 = vmatpush1.msra.mxu0 0.0
    %120 = vmatprep.subr.mxu0 0.0
    %121 = vmatpush1.msra.mxu0 0.0
    %122 = vmatprep.subr.mxu0 0.0
    %123 = vmatpush1.msra.mxu0 0.0
    %124 = vmatprep.subr.mxu0 0.0
    %125 = vmatpush1.msra.mxu0 0.0
    %126 = vmatprep.subr.mxu0 0.0
    %127 = vmatpush1.msra.mxu0 0.0
    %128 = vmatprep.subr.mxu0 0.0
    %129 = vmatpush1.msra.mxu0 0.0
    %130 = vmatprep.subr.mxu0 0.0
    %131 = vmatpush1.msra.mxu0 0.0
    %132 = vmatprep.subr.mxu0 0.0
    %133 = vmatpush1.msra.mxu0 0.0
    %134 = vmatprep.subr.mxu0 0.0
    %135 = vmatpush1.msra.mxu0 0.0
    %136 = vmatprep.subr.mxu0 0.0
    %137 = vmatpush1.msra.mxu0 0.0
    %138 = vmatprep.mubr.f32.mxu0 0.0
    %139 = vmatmul.mubr.f32.gmra.mrb[0].mxu0 %v72
    %v140 = vpop.f32.mrb[0].mxu0
    %v141 = vadd.f32 0.0, %v140
    %v142 = vpop.f32.mrb[0].mxu0
    %143 = vdwg.mxu0
    %144 = vmatprep.subr.mxu0 0.0
    %145 = vmatpush1.msra.mxu0 %v48
    %146 = vmatprep.subr.mxu0 0.0
    %147 = vmatpush1.msra.mxu0 %v49
    %148 = vmatprep.subr.mxu0 0.0
    %149 = vmatpush1.msra.mxu0 0.0
    %150 = vmatprep.subr.mxu0 0.0
    %151 = vmatpush1.msra.mxu0 0.0
    %152 = vmatprep.subr.mxu0 0.0
    %153 = vmatpush1.msra.mxu0 0.0
    %154 = vmatprep.subr.mxu0 0.0
    %155 = vmatpush1.msra.mxu0 0.0
    %156 = vmatprep.subr.mxu0 0.0
    %157 = vmatpush1.msra.mxu0 0.0
    %158 = vmatprep.subr.mxu0 0.0
    %159 = vmatpush1.msra.mxu0 0.0
    %160 = vmatprep.subr.mxu0 0.0
    %161 = vmatpush1.msra.mxu0 0.0
    %162 = vmatprep.subr.mxu0 0.0
    %163 = vmatpush1.msra.mxu0 0.0
    %164 = vmatprep.subr.mxu0 0.0
    %165 = vmatpush1.msra.mxu0 0.0
    %166 = vmatprep.subr.mxu0 0.0
    %167 = vmatpush1.msra.mxu0 0.0
    %168 = vmatprep.subr.mxu0 0.0
    %169 = vmatpush1.msra.mxu0 0.0
    %170 = vmatprep.subr.mxu0 0.0
    %171 = vmatpush1.msra.mxu0 0.0
    %172 = vmatprep.subr.mxu0 0.0
    %173 = vmatpush1.msra.mxu0 0.0
    %174 = vmatprep.subr.mxu0 0.0
    %175 = vmatpush1.msra.mxu0 0.0
    %176 = vmatprep.subr.mxu0 0.0
    %177 = vmatpush1.msra.mxu0 0.0
    %178 = vmatprep.subr.mxu0 0.0
    %179 = vmatpush1.msra.mxu0 0.0
    %180 = vmatprep.subr.mxu0 0.0
    %181 = vmatpush1.msra.mxu0 0.0
    %182 = vmatprep.subr.mxu0 0.0
    %183 = vmatpush1.msra.mxu0 0.0
    %184 = vmatprep.subr.mxu0 0.0
    %185 = vmatpush1.msra.mxu0 0.0
    %186 = vmatprep.subr.mxu0 0.0
    %187 = vmatpush1.msra.mxu0 0.0
    %188 = vmatprep.subr.mxu0 0.0
    %189 = vmatpush1.msra.mxu0 0.0
    %190 = vmatprep.subr.mxu0 0.0
    %191 = vmatpush1.msra.mxu0 0.0
    %192 = vmatprep.subr.mxu0 0.0
    %193 = vmatpush1.msra.mxu0 0.0
    %194 = vmatprep.subr.mxu0 0.0
    %195 = vmatpush1.msra.mxu0 0.0
    %196 = vmatprep.subr.mxu0 0.0
    %197 = vmatpush1.msra.mxu0 0.0
    %198 = vmatprep.subr.mxu0 0.0
    %199 = vmatpush1.msra.mxu0 0.0
    %200 = vmatprep.subr.mxu0 0.0
    %201 = vmatpush1.msra.mxu0 0.0
    %202 = vmatprep.subr.mxu0 0.0
    %203 = vmatpush1.msra.mxu0 0.0
    %204 = vmatprep.subr.mxu0 0.0
    %205 = vmatpush1.msra.mxu0 0.0
    %206 = vmatprep.subr.mxu0 0.0
    %207 = vmatpush1.msra.mxu0 0.0
    %208 = vmatprep.mubr.f32.mxu0 0.0
    %209 = vmatmul.mubr.f32.gmra.mrb[0].mxu0 %v72
    %v210 = vpop.f32.mrb[0].mxu0
    %v211 = vadd.f32 0.0, %v210
    %v212 = vpop.f32.mrb[0].mxu0
    %213 = vdwg.mxu0
    %v214 = vxor.u32 %v141, 2147483648
    %v215 = vmul.f32 %v214, 1.442695
    %v216 = vpow.pop %v215
    %v217 = vadd.f32 %v216, 1.0
    %v218 = vrcp.pop %v217
    %v219 = vmul.f32 1.0, %v218
    %v220 = vxor.u32 %v211, 2147483648
    %v221 = vmul.f32 %v220, 1.442695
    %v222 = vpow.pop %v221
    %v223 = vadd.f32 %v222, 1.0
    %v224 = vrcp.pop %v223
    %v225 = vmul.f32 1.0, %v224
    %v227 = vlaneseq
    %v228 = vshrl.u32 %v227, 7
    %v229 = vsub.s32 0, %v228
    %v230 = vrot.slane %v64, %v229
    %v232 = vmul.f32 %v219, %v230
    %233 = vmatprep.subr.mxu0 0.0
    %234 = vmatpush1.msra.mxu0 %v50
    %235 = vmatprep.subr.mxu0 0.0
    %236 = vmatpush1.msra.mxu0 %v51
    %237 = vmatprep.subr.mxu0 0.0
    %238 = vmatpush1.msra.mxu0 0.0
    %239 = vmatprep.subr.mxu0 0.0
    %240 = vmatpush1.msra.mxu0 0.0
    %241 = vmatprep.subr.mxu0 0.0
    %242 = vmatpush1.msra.mxu0 0.0
    %243 = vmatprep.subr.mxu0 0.0
    %244 = vmatpush1.msra.mxu0 0.0
    %245 = vmatprep.subr.mxu0 0.0
    %246 = vmatpush1.msra.mxu0 0.0
    %247 = vmatprep.subr.mxu0 0.0
    %248 = vmatpush1.msra.mxu0 0.0
    %249 = vmatprep.subr.mxu0 0.0
    %250 = vmatpush1.msra.mxu0 0.0
    %251 = vmatprep.subr.mxu0 0.0
    %252 = vmatpush1.msra.mxu0 0.0
    %253 = vmatprep.subr.mxu0 0.0
    %254 = vmatpush1.msra.mxu0 0.0
    %255 = vmatprep.subr.mxu0 0.0
    %256 = vmatpush1.msra.mxu0 0.0
    %257 = vmatprep.subr.mxu0 0.0
    %258 = vmatpush1.msra.mxu0 0.0
    %259 = vmatprep.subr.mxu0 0.0
    %260 = vmatpush1.msra.mxu0 0.0
    %261 = vmatprep.subr.mxu0 0.0
    %262 = vmatpush1.msra.mxu0 0.0
    %263 = vmatprep.subr.mxu0 0.0
    %264 = vmatpush1.msra.mxu0 0.0
    %265 = vmatprep.subr.mxu0 0.0
    %266 = vmatpush1.msra.mxu0 0.0
    %267 = vmatprep.subr.mxu0 0.0
    %268 = vmatpush1.msra.mxu0 0.0
    %269 = vmatprep.subr.mxu0 0.0
    %270 = vmatpush1.msra.mxu0 0.0
    %271 = vmatprep.subr.mxu0 0.0
    %272 = vmatpush1.msra.mxu0 0.0
    %273 = vmatprep.subr.mxu0 0.0
    %274 = vmatpush1.msra.mxu0 0.0
    %275 = vmatprep.subr.mxu0 0.0
    %276 = vmatpush1.msra.mxu0 0.0
    %277 = vmatprep.subr.mxu0 0.0
    %278 = vmatpush1.msra.mxu0 0.0
    %279 = vmatprep.subr.mxu0 0.0
    %280 = vmatpush1.msra.mxu0 0.0
    %281 = vmatprep.subr.mxu0 0.0
    %282 = vmatpush1.msra.mxu0 0.0
    %283 = vmatprep.subr.mxu0 0.0
    %284 = vmatpush1.msra.mxu0 0.0
    %285 = vmatprep.subr.mxu0 0.0
    %286 = vmatpush1.msra.mxu0 0.0
    %287 = vmatprep.subr.mxu0 0.0
    %288 = vmatpush1.msra.mxu0 0.0
    %289 = vmatprep.subr.mxu0 0.0
    %290 = vmatpush1.msra.mxu0 0.0
    %291 = vmatprep.subr.mxu0 0.0
    %292 = vmatpush1.msra.mxu0 0.0
    %293 = vmatprep.subr.mxu0 0.0
    %294 = vmatpush1.msra.mxu0 0.0
    %295 = vmatprep.subr.mxu0 0.0
    %296 = vmatpush1.msra.mxu0 0.0
    %297 = vmatprep.mubr.f32.mxu0 0.0
    %298 = vmatmul.mubr.f32.gmra.mrb[0].mxu0 %v72
    %v299 = vpop.f32.mrb[0].mxu0
    %v300 = vadd.f32 %v232, %v299
    %v301 = vpop.f32.mrb[0].mxu0
    %302 = vdwg.mxu0
    %v303 = vtanh.pop %v300
    %v304 = vsub.f32 1.0, %v225
    %v305 = vmul.f32 %v304, %v303
    %306 = vset.pattern.permute.xlu0 1
    %307 = vperm.xlu0 %306, %v43
    %v308 = vpop.permute.xlu0 %307
    %vm309 = vcmp.eq.s32.totalorder %v308, %v45
    %v310 = vsel %vm309, 1.0, 0.0
    %v311 = vpack.c.bf16 %v305, %v305
    %v316 = vunpack.c.l.b16 %v52
    %v317 = vunpack.c.l.b16 %v53
    %v318 = vunpack.c.l.b16 %v54
    %v319 = vunpack.c.l.b16 %v55
    %v320 = vpack.c.b16 %v317, %v316
    %v321 = vpack.c.b16 %v319, %v318
    %vm324 = vcmask 261120
    %v326 = vsel %vm324, %v311, 0
    %328 = vmatprep.subr.bf16.mxu0 0
    %329 = vmatpush1.bf16.msra.mxu0 %v320
    %330 = vmatprep.subr.bf16.mxu0 0
    %331 = vmatpush1.bf16.msra.mxu0 %v321
    %332 = vmatprep.subr.bf16.mxu0 0
    %333 = vmatpush1.bf16.msra.mxu0 0
    %334 = vmatprep.subr.bf16.mxu0 0
    %335 = vmatpush1.bf16.msra.mxu0 0
    %336 = vmatprep.subr.bf16.mxu0 0
    %337 = vmatpush1.bf16.msra.mxu0 0
    %338 = vmatprep.subr.bf16.mxu0 0
    %339 = vmatpush1.bf16.msra.mxu0 0
    %340 = vmatprep.subr.bf16.mxu0 0
    %341 = vmatpush1.bf16.msra.mxu0 0
    %342 = vmatprep.subr.bf16.mxu0 0
    %343 = vmatpush1.bf16.msra.mxu0 0
    %344 = vmatprep.subr.bf16.mxu0 0
    %345 = vmatpush1.bf16.msra.mxu0 0
    %346 = vmatprep.subr.bf16.mxu0 0
    %347 = vmatpush1.bf16.msra.mxu0 0
    %348 = vmatprep.subr.bf16.mxu0 0
    %349 = vmatpush1.bf16.msra.mxu0 0
    %350 = vmatprep.subr.bf16.mxu0 0
    %351 = vmatpush1.bf16.msra.mxu0 0
    %352 = vmatprep.subr.bf16.mxu0 0
    %353 = vmatpush1.bf16.msra.mxu0 0
    %354 = vmatprep.subr.bf16.mxu0 0
    %355 = vmatpush1.bf16.msra.mxu0 0
    %356 = vmatprep.subr.bf16.mxu0 0
    %357 = vmatpush1.bf16.msra.mxu0 0
    %358 = vmatprep.subr.bf16.mxu0 0
    %359 = vmatpush1.bf16.msra.mxu0 0
    %360 = vmatprep.mubr.bf16.mxu0 0
    %361 = vmatmul.mubr.bf16.gmra.mrb[0].mxu0 %v326
    %v362 = vpop.f32.mrb[0].mxu0
    %v363 = vadd.f32 0.0, %v362
    %v364 = vpop.f32.mrb[0].mxu0
    %v365 = vpop.f32.mrb[0].mxu0
    %v366 = vpop.f32.mrb[0].mxu0
    %367 = vdwg.mxu0
    %v372 = vunpack.c.l.b16 %v56
    %v373 = vunpack.c.l.b16 %v57
    %v374 = vunpack.c.l.b16 %v58
    %v375 = vunpack.c.l.b16 %v59
    %v376 = vpack.c.b16 %v373, %v372
    %v377 = vpack.c.b16 %v375, %v374
    %380 = vmatprep.subr.bf16.mxu0 0
    %381 = vmatpush1.bf16.msra.mxu0 %v376
    %382 = vmatprep.subr.bf16.mxu0 0
    %383 = vmatpush1.bf16.msra.mxu0 %v377
    %384 = vmatprep.subr.bf16.mxu0 0
    %385 = vmatpush1.bf16.msra.mxu0 0
    %386 = vmatprep.subr.bf16.mxu0 0
    %387 = vmatpush1.bf16.msra.mxu0 0
    %388 = vmatprep.subr.bf16.mxu0 0
    %389 = vmatpush1.bf16.msra.mxu0 0
    %390 = vmatprep.subr.bf16.mxu0 0
    %391 = vmatpush1.bf16.msra.mxu0 0
    %392 = vmatprep.subr.bf16.mxu0 0
    %393 = vmatpush1.bf16.msra.mxu0 0
    %394 = vmatprep.subr.bf16.mxu0 0
    %395 = vmatpush1.bf16.msra.mxu0 0
    %396 = vmatprep.subr.bf16.mxu0 0
    %397 = vmatpush1.bf16.msra.mxu0 0
    %398 = vmatprep.subr.bf16.mxu0 0
    %399 = vmatpush1.bf16.msra.mxu0 0
    %400 = vmatprep.subr.bf16.mxu0 0
    %401 = vmatpush1.bf16.msra.mxu0 0
    %402 = vmatprep.subr.bf16.mxu0 0
    %403 = vmatpush1.bf16.msra.mxu0 0
    %404 = vmatprep.subr.bf16.mxu0 0
    %405 = vmatpush1.bf16.msra.mxu0 0
    %406 = vmatprep.subr.bf16.mxu0 0
    %407 = vmatpush1.bf16.msra.mxu0 0
    %408 = vmatprep.subr.bf16.mxu0 0
    %409 = vmatpush1.bf16.msra.mxu0 0
    %410 = vmatprep.subr.bf16.mxu0 0
    %411 = vmatpush1.bf16.msra.mxu0 0
    %412 = vmatprep.mubr.bf16.mxu0 0
    %413 = vmatmul.mubr.bf16.gmra.mrb[0].mxu0 %v326
    %v414 = vpop.f32.mrb[0].mxu0
    %v415 = vadd.f32 0.0, %v414
    %v416 = vpop.f32.mrb[0].mxu0
    %v417 = vpop.f32.mrb[0].mxu0
    %v418 = vpop.f32.mrb[0].mxu0
    %419 = vdwg.mxu0
    %v421 = vsel %vm70, %v310, 0
    %423 = vmatprep.subr.mxu0 0.0
    %424 = vmatpush1.msra.mxu0 %v46
    %425 = vmatprep.subr.mxu0 0.0
    %426 = vmatpush1.msra.mxu0 %v47
    %427 = vmatprep.subr.mxu0 0.0
    %428 = vmatpush1.msra.mxu0 0.0
    %429 = vmatprep.subr.mxu0 0.0
    %430 = vmatpush1.msra.mxu0 0.0
    %431 = vmatprep.subr.mxu0 0.0
    %432 = vmatpush1.msra.mxu0 0.0
    %433 = vmatprep.subr.mxu0 0.0
    %434 = vmatpush1.msra.mxu0 0.0
    %435 = vmatprep.subr.mxu0 0.0
    %436 = vmatpush1.msra.mxu0 0.0
    %437 = vmatprep.subr.mxu0 0.0
    %438 = vmatpush1.msra.mxu0 0.0
    %439 = vmatprep.subr.mxu0 0.0
    %440 = vmatpush1.msra.mxu0 0.0
    %441 = vmatprep.subr.mxu0 0.0
    %442 = vmatpush1.msra.mxu0 0.0
    %443 = vmatprep.subr.mxu0 0.0
    %444 = vmatpush1.msra.mxu0 0.0
    %445 = vmatprep.subr.mxu0 0.0
    %446 = vmatpush1.msra.mxu0 0.0
    %447 = vmatprep.subr.mxu0 0.0
    %448 = vmatpush1.msra.mxu0 0.0
    %449 = vmatprep.subr.mxu0 0.0
    %450 = vmatpush1.msra.mxu0 0.0
    %451 = vmatprep.subr.mxu0 0.0
    %452 = vmatpush1.msra.mxu0 0.0
    %453 = vmatprep.subr.mxu0 0.0
    %454 = vmatpush1.msra.mxu0 0.0
    %455 = vmatprep.subr.mxu0 0.0
    %456 = vmatpush1.msra.mxu0 0.0
    %457 = vmatprep.subr.mxu0 0.0
    %458 = vmatpush1.msra.mxu0 0.0
    %459 = vmatprep.subr.mxu0 0.0
    %460 = vmatpush1.msra.mxu0 0.0
    %461 = vmatprep.subr.mxu0 0.0
    %462 = vmatpush1.msra.mxu0 0.0
    %463 = vmatprep.subr.mxu0 0.0
    %464 = vmatpush1.msra.mxu0 0.0
    %465 = vmatprep.subr.mxu0 0.0
    %466 = vmatpush1.msra.mxu0 0.0
    %467 = vmatprep.subr.mxu0 0.0
    %468 = vmatpush1.msra.mxu0 0.0
    %469 = vmatprep.subr.mxu0 0.0
    %470 = vmatpush1.msra.mxu0 0.0
    %471 = vmatprep.subr.mxu0 0.0
    %472 = vmatpush1.msra.mxu0 0.0
    %473 = vmatprep.subr.mxu0 0.0
    %474 = vmatpush1.msra.mxu0 0.0
    %475 = vmatprep.subr.mxu0 0.0
    %476 = vmatpush1.msra.mxu0 0.0
    %477 = vmatprep.subr.mxu0 0.0
    %478 = vmatpush1.msra.mxu0 0.0
    %479 = vmatprep.subr.mxu0 0.0
    %480 = vmatpush1.msra.mxu0 0.0
    %481 = vmatprep.subr.mxu0 0.0
    %482 = vmatpush1.msra.mxu0 0.0
    %483 = vmatprep.subr.mxu0 0.0
    %484 = vmatpush1.msra.mxu0 0.0
    %485 = vmatprep.subr.mxu0 0.0
    %486 = vmatpush1.msra.mxu0 0.0
    %487 = vmatprep.mubr.f32.mxu0 0.0
    %488 = vmatmul.mubr.f32.gmra.mrb[0].mxu0 %v421
    %v489 = vpop.f32.mrb[0].mxu0
    %v490 = vadd.f32 %v363, %v489
    %v491 = vpop.f32.mrb[0].mxu0
    %492 = vdwg.mxu0
    %v493 = vxor.u32 %v490, 2147483648
    %v494 = vmul.f32 %v493, 1.442695
    %v495 = vpow.pop %v494
    %v496 = vadd.f32 %v495, 1.0
    %v497 = vrcp.pop %v496
    %v498 = vmul.f32 1.0, %v497
    %499 = vmatprep.subr.mxu0 0.0
    %500 = vmatpush1.msra.mxu0 %v48
    %501 = vmatprep.subr.mxu0 0.0
    %502 = vmatpush1.msra.mxu0 %v49
    %503 = vmatprep.subr.mxu0 0.0
    %504 = vmatpush1.msra.mxu0 0.0
    %505 = vmatprep.subr.mxu0 0.0
    %506 = vmatpush1.msra.mxu0 0.0
    %507 = vmatprep.subr.mxu0 0.0
    %508 = vmatpush1.msra.mxu0 0.0
    %509 = vmatprep.subr.mxu0 0.0
    %510 = vmatpush1.msra.mxu0 0.0
    %511 = vmatprep.subr.mxu0 0.0
    %512 = vmatpush1.msra.mxu0 0.0
    %513 = vmatprep.subr.mxu0 0.0
    %514 = vmatpush1.msra.mxu0 0.0
    %515 = vmatprep.subr.mxu0 0.0
    %516 = vmatpush1.msra.mxu0 0.0
    %517 = vmatprep.subr.mxu0 0.0
    %518 = vmatpush1.msra.mxu0 0.0
    %519 = vmatprep.subr.mxu0 0.0
    %520 = vmatpush1.msra.mxu0 0.0
    %521 = vmatprep.subr.mxu0 0.0
    %522 = vmatpush1.msra.mxu0 0.0
    %523 = vmatprep.subr.mxu0 0.0
    %524 = vmatpush1.msra.mxu0 0.0
    %525 = vmatprep.subr.mxu0 0.0
    %526 = vmatpush1.msra.mxu0 0.0
    %527 = vmatprep.subr.mxu0 0.0
    %528 = vmatpush1.msra.mxu0 0.0
    %529 = vmatprep.subr.mxu0 0.0
    %530 = vmatpush1.msra.mxu0 0.0
    %531 = vmatprep.subr.mxu0 0.0
    %532 = vmatpush1.msra.mxu0 0.0
    %533 = vmatprep.subr.mxu0 0.0
    %534 = vmatpush1.msra.mxu0 0.0
    %535 = vmatprep.subr.mxu0 0.0
    %536 = vmatpush1.msra.mxu0 0.0
    %537 = vmatprep.subr.mxu0 0.0
    %538 = vmatpush1.msra.mxu0 0.0
    %539 = vmatprep.subr.mxu0 0.0
    %540 = vmatpush1.msra.mxu0 0.0
    %541 = vmatprep.subr.mxu0 0.0
    %542 = vmatpush1.msra.mxu0 0.0
    %543 = vmatprep.subr.mxu0 0.0
    %544 = vmatpush1.msra.mxu0 0.0
    %545 = vmatprep.subr.mxu0 0.0
    %546 = vmatpush1.msra.mxu0 0.0
    %547 = vmatprep.subr.mxu0 0.0
    %548 = vmatpush1.msra.mxu0 0.0
    %549 = vmatprep.subr.mxu0 0.0
    %550 = vmatpush1.msra.mxu0 0.0
    %551 = vmatprep.subr.mxu0 0.0
    %552 = vmatpush1.msra.mxu0 0.0
    %553 = vmatprep.subr.mxu0 0.0
    %554 = vmatpush1.msra.mxu0 0.0
    %555 = vmatprep.subr.mxu0 0.0
    %556 = vmatpush1.msra.mxu0 0.0
    %557 = vmatprep.subr.mxu0 0.0
    %558 = vmatpush1.msra.mxu0 0.0
    %559 = vmatprep.subr.mxu0 0.0
    %560 = vmatpush1.msra.mxu0 0.0
    %561 = vmatprep.subr.mxu0 0.0
    %562 = vmatpush1.msra.mxu0 0.0
    %563 = vmatprep.mubr.f32.mxu0 0.0
    %564 = vmatmul.mubr.f32.gmra.mrb[0].mxu0 %v421
    %v565 = vpop.f32.mrb[0].mxu0
    %v566 = vadd.f32 %v415, %v565
    %v567 = vpop.f32.mrb[0].mxu0
    %568 = vdwg.mxu0
    %v569 = vxor.u32 %v566, 2147483648
    %v570 = vmul.f32 %v569, 1.442695
    %v571 = vpow.pop %v570
    %v572 = vadd.f32 %v571, 1.0
    %v573 = vrcp.pop %v572
    %v574 = vmul.f32 1.0, %v573
    %v579 = vunpack.c.l.b16 %v60
    %v580 = vunpack.c.l.b16 %v61
    %v581 = vunpack.c.l.b16 %v62
    %v582 = vunpack.c.l.b16 %v63
    %v583 = vpack.c.b16 %v580, %v579
    %v584 = vpack.c.b16 %v582, %v581
    %587 = vmatprep.subr.bf16.mxu0 0
    %588 = vmatpush1.bf16.msra.mxu0 %v583
    %589 = vmatprep.subr.bf16.mxu0 0
    %590 = vmatpush1.bf16.msra.mxu0 %v584
    %591 = vmatprep.subr.bf16.mxu0 0
    %592 = vmatpush1.bf16.msra.mxu0 0
    %593 = vmatprep.subr.bf16.mxu0 0
    %594 = vmatpush1.bf16.msra.mxu0 0
    %595 = vmatprep.subr.bf16.mxu0 0
    %596 = vmatpush1.bf16.msra.mxu0 0
    %597 = vmatprep.subr.bf16.mxu0 0
    %598 = vmatpush1.bf16.msra.mxu0 0
    %599 = vmatprep.subr.bf16.mxu0 0
    %600 = vmatpush1.bf16.msra.mxu0 0
    %601 = vmatprep.subr.bf16.mxu0 0
    %602 = vmatpush1.bf16.msra.mxu0 0
    %603 = vmatprep.subr.bf16.mxu0 0
    %604 = vmatpush1.bf16.msra.mxu0 0
    %605 = vmatprep.subr.bf16.mxu0 0
    %606 = vmatpush1.bf16.msra.mxu0 0
    %607 = vmatprep.subr.bf16.mxu0 0
    %608 = vmatpush1.bf16.msra.mxu0 0
    %609 = vmatprep.subr.bf16.mxu0 0
    %610 = vmatpush1.bf16.msra.mxu0 0
    %611 = vmatprep.subr.bf16.mxu0 0
    %612 = vmatpush1.bf16.msra.mxu0 0
    %613 = vmatprep.subr.bf16.mxu0 0
    %614 = vmatpush1.bf16.msra.mxu0 0
    %615 = vmatprep.subr.bf16.mxu0 0
    %616 = vmatpush1.bf16.msra.mxu0 0
    %617 = vmatprep.subr.bf16.mxu0 0
    %618 = vmatpush1.bf16.msra.mxu0 0
    %619 = vmatprep.mubr.bf16.mxu0 0
    %620 = vmatmul.mubr.bf16.gmra.mrb[0].mxu0 %v326
    %v621 = vpop.f32.mrb[0].mxu0
    %v622 = vadd.f32 %v230, %v621
    %v623 = vpop.f32.mrb[0].mxu0
    %v624 = vpop.f32.mrb[0].mxu0
    %v625 = vpop.f32.mrb[0].mxu0
    %626 = vdwg.mxu0
    %v627 = vmul.f32 %v498, %v622
    %628 = vmatprep.subr.mxu0 0.0
    %629 = vmatpush1.msra.mxu0 %v50
    %630 = vmatprep.subr.mxu0 0.0
    %631 = vmatpush1.msra.mxu0 %v51
    %632 = vmatprep.subr.mxu0 0.0
    %633 = vmatpush1.msra.mxu0 0.0
    %634 = vmatprep.subr.mxu0 0.0
    %635 = vmatpush1.msra.mxu0 0.0
    %636 = vmatprep.subr.mxu0 0.0
    %637 = vmatpush1.msra.mxu0 0.0
    %638 = vmatprep.subr.mxu0 0.0
    %639 = vmatpush1.msra.mxu0 0.0
    %640 = vmatprep.subr.mxu0 0.0
    %641 = vmatpush1.msra.mxu0 0.0
    %642 = vmatprep.subr.mxu0 0.0
    %643 = vmatpush1.msra.mxu0 0.0
    %644 = vmatprep.subr.mxu0 0.0
    %645 = vmatpush1.msra.mxu0 0.0
    %646 = vmatprep.subr.mxu0 0.0
    %647 = vmatpush1.msra.mxu0 0.0
    %648 = vmatprep.subr.mxu0 0.0
    %649 = vmatpush1.msra.mxu0 0.0
    %650 = vmatprep.subr.mxu0 0.0
    %651 = vmatpush1.msra.mxu0 0.0
    %652 = vmatprep.subr.mxu0 0.0
    %653 = vmatpush1.msra.mxu0 0.0
    %654 = vmatprep.subr.mxu0 0.0
    %655 = vmatpush1.msra.mxu0 0.0
    %656 = vmatprep.subr.mxu0 0.0
    %657 = vmatpush1.msra.mxu0 0.0
    %658 = vmatprep.subr.mxu0 0.0
    %659 = vmatpush1.msra.mxu0 0.0
    %660 = vmatprep.subr.mxu0 0.0
    %661 = vmatpush1.msra.mxu0 0.0
    %662 = vmatprep.subr.mxu0 0.0
    %663 = vmatpush1.msra.mxu0 0.0
    %664 = vmatprep.subr.mxu0 0.0
    %665 = vmatpush1.msra.mxu0 0.0
    %666 = vmatprep.subr.mxu0 0.0
    %667 = vmatpush1.msra.mxu0 0.0
    %668 = vmatprep.subr.mxu0 0.0
    %669 = vmatpush1.msra.mxu0 0.0
    %670 = vmatprep.subr.mxu0 0.0
    %671 = vmatpush1.msra.mxu0 0.0
    %672 = vmatprep.subr.mxu0 0.0
    %673 = vmatpush1.msra.mxu0 0.0
    %674 = vmatprep.subr.mxu0 0.0
    %675 = vmatpush1.msra.mxu0 0.0
    %676 = vmatprep.subr.mxu0 0.0
    %677 = vmatpush1.msra.mxu0 0.0
    %678 = vmatprep.subr.mxu0 0.0
    %679 = vmatpush1.msra.mxu0 0.0
    %680 = vmatprep.subr.mxu0 0.0
    %681 = vmatpush1.msra.mxu0 0.0
    %682 = vmatprep.subr.mxu0 0.0
    %683 = vmatpush1.msra.mxu0 0.0
    %684 = vmatprep.subr.mxu0 0.0
    %685 = vmatpush1.msra.mxu0 0.0
    %686 = vmatprep.subr.mxu0 0.0
    %687 = vmatpush1.msra.mxu0 0.0
    %688 = vmatprep.subr.mxu0 0.0
    %689 = vmatpush1.msra.mxu0 0.0
    %690 = vmatprep.subr.mxu0 0.0
    %691 = vmatpush1.msra.mxu0 0.0
    %692 = vmatprep.mubr.f32.mxu0 0.0
    %693 = vmatmul.mubr.f32.gmra.mrb[0].mxu0 %v421
    %v694 = vpop.f32.mrb[0].mxu0
    %v695 = vadd.f32 %v627, %v694
    %v696 = vpop.f32.mrb[0].mxu0
    %697 = vdwg.mxu0
    %v698 = vtanh.pop %v695
    %v699 = vsub.f32 1.0, %v574
    %v700 = vmul.f32 %v699, %v698
    %v701 = vmul.f32 %v574, %v305
    %v702 = vadd.f32 %v700, %v701
    %703 = vset.pattern.permute.xlu0 2
    %704 = vperm.xlu0 %703, %v43
    %v705 = vpop.permute.xlu0 %704
    %vm706 = vcmp.eq.s32.totalorder %v705, %v45
    %v707 = vsel %vm706, 1.0, 0.0
    %v708 = vpack.c.bf16 %v702, %v702
    %v710 = vsel %vm324, %v708, 0
    %712 = vmatprep.subr.bf16.mxu0 0
    %713 = vmatpush1.bf16.msra.mxu0 %v320
    %714 = vmatprep.subr.bf16.mxu0 0
    %715 = vmatpush1.bf16.msra.mxu0 %v321
    %716 = vmatprep.subr.bf16.mxu0 0
    %717 = vmatpush1.bf16.msra.mxu0 0
    %718 = vmatprep.subr.bf16.mxu0 0
    %719 = vmatpush1.bf16.msra.mxu0 0
    %720 = vmatprep.subr.bf16.mxu0 0
    %721 = vmatpush1.bf16.msra.mxu0 0
    %722 = vmatprep.subr.bf16.mxu0 0
    %723 = vmatpush1.bf16.msra.mxu0 0
    %724 = vmatprep.subr.bf16.mxu0 0
    %725 = vmatpush1.bf16.msra.mxu0 0
    %726 = vmatprep.subr.bf16.mxu0 0
    %727 = vmatpush1.bf16.msra.mxu0 0
    %728 = vmatprep.subr.bf16.mxu0 0
    %729 = vmatpush1.bf16.msra.mxu0 0
    %730 = vmatprep.subr.bf16.mxu0 0
    %731 = vmatpush1.bf16.msra.mxu0 0
    %732 = vmatprep.subr.bf16.mxu0 0
    %733 = vmatpush1.bf16.msra.mxu0 0
    %734 = vmatprep.subr.bf16.mxu0 0
    %735 = vmatpush1.bf16.msra.mxu0 0
    %736 = vmatprep.subr.bf16.mxu0 0
    %737 = vmatpush1.bf16.msra.mxu0 0
    %738 = vmatprep.subr.bf16.mxu0 0
    %739 = vmatpush1.bf16.msra.mxu0 0
    %740 = vmatprep.subr.bf16.mxu0 0
    %741 = vmatpush1.bf16.msra.mxu0 0
    %742 = vmatprep.subr.bf16.mxu0 0
    %743 = vmatpush1.bf16.msra.mxu0 0
    %744 = vmatprep.mubr.bf16.mxu0 0
    %745 = vmatmul.mubr.bf16.gmra.mrb[0].mxu0 %v710
    %v746 = vpop.f32.mrb[0].mxu0
    %v747 = vadd.f32 0.0, %v746
    %v748 = vpop.f32.mrb[0].mxu0
    %v749 = vpop.f32.mrb[0].mxu0
    %v750 = vpop.f32.mrb[0].mxu0
    %751 = vdwg.mxu0
    %752 = vmatprep.subr.bf16.mxu0 0
    %753 = vmatpush1.bf16.msra.mxu0 %v376
    %754 = vmatprep.subr.bf16.mxu0 0
    %755 = vmatpush1.bf16.msra.mxu0 %v377
    %756 = vmatprep.subr.bf16.mxu0 0
    %757 = vmatpush1.bf16.msra.mxu0 0
    %758 = vmatprep.subr.bf16.mxu0 0
    %759 = vmatpush1.bf16.msra.mxu0 0
    %760 = vmatprep.subr.bf16.mxu0 0
    %761 = vmatpush1.bf16.msra.mxu0 0
    %762 = vmatprep.subr.bf16.mxu0 0
    %763 = vmatpush1.bf16.msra.mxu0 0
    %764 = vmatprep.subr.bf16.mxu0 0
    %765 = vmatpush1.bf16.msra.mxu0 0
    %766 = vmatprep.subr.bf16.mxu0 0
    %767 = vmatpush1.bf16.msra.mxu0 0
    %768 = vmatprep.subr.bf16.mxu0 0
    %769 = vmatpush1.bf16.msra.mxu0 0
    %770 = vmatprep.subr.bf16.mxu0 0
    %771 = vmatpush1.bf16.msra.mxu0 0
    %772 = vmatprep.subr.bf16.mxu0 0
    %773 = vmatpush1.bf16.msra.mxu0 0
    %774 = vmatprep.subr.bf16.mxu0 0
    %775 = vmatpush1.bf16.msra.mxu0 0
    %776 = vmatprep.subr.bf16.mxu0 0
    %777 = vmatpush1.bf16.msra.mxu0 0
    %778 = vmatprep.subr.bf16.mxu0 0
    %779 = vmatpush1.bf16.msra.mxu0 0
    %780 = vmatprep.subr.bf16.mxu0 0
    %781 = vmatpush1.bf16.msra.mxu0 0
    %782 = vmatprep.subr.bf16.mxu0 0
    %783 = vmatpush1.bf16.msra.mxu0 0
    %784 = vmatprep.mubr.bf16.mxu0 0
    %785 = vmatmul.mubr.bf16.gmra.mrb[0].mxu0 %v710
    %v786 = vpop.f32.mrb[0].mxu0
    %v787 = vadd.f32 0.0, %v786
    %v788 = vpop.f32.mrb[0].mxu0
    %v789 = vpop.f32.mrb[0].mxu0
    %v790 = vpop.f32.mrb[0].mxu0
    %791 = vdwg.mxu0
    %v793 = vsel %vm70, %v707, 0
    %795 = vmatprep.subr.mxu0 0.0
    %796 = vmatpush1.msra.mxu0 %v46
    %797 = vmatprep.subr.mxu0 0.0
    %798 = vmatpush1.msra.mxu0 %v47
    %799 = vmatprep.subr.mxu0 0.0
    %800 = vmatpush1.msra.mxu0 0.0
    %801 = vmatprep.subr.mxu0 0.0
    %802 = vmatpush1.msra.mxu0 0.0
    %803 = vmatprep.subr.mxu0 0.0
    %804 = vmatpush1.msra.mxu0 0.0
    %805 = vmatprep.subr.mxu0 0.0
    %806 = vmatpush1.msra.mxu0 0.0
    %807 = vmatprep.subr.mxu0 0.0
    %808 = vmatpush1.msra.mxu0 0.0
    %809 = vmatprep.subr.mxu0 0.0
    %810 = vmatpush1.msra.mxu0 0.0
    %811 = vmatprep.subr.mxu0 0.0
    %812 = vmatpush1.msra.mxu0 0.0
    %813 = vmatprep.subr.mxu0 0.0
    %814 = vmatpush1.msra.mxu0 0.0
    %815 = vmatprep.subr.mxu0 0.0
    %816 = vmatpush1.msra.mxu0 0.0
    %817 = vmatprep.subr.mxu0 0.0
    %818 = vmatpush1.msra.mxu0 0.0
    %819 = vmatprep.subr.mxu0 0.0
    %820 = vmatpush1.msra.mxu0 0.0
    %821 = vmatprep.subr.mxu0 0.0
    %822 = vmatpush1.msra.mxu0 0.0
    %823 = vmatprep.subr.mxu0 0.0
    %824 = vmatpush1.msra.mxu0 0.0
    %825 = vmatprep.subr.mxu0 0.0
    %826 = vmatpush1.msra.mxu0 0.0
    %827 = vmatprep.subr.mxu0 0.0
    %828 = vmatpush1.msra.mxu0 0.0
    %829 = vmatprep.subr.mxu0 0.0
    %830 = vmatpush1.msra.mxu0 0.0
    %831 = vmatprep.subr.mxu0 0.0
    %832 = vmatpush1.msra.mxu0 0.0
    %833 = vmatprep.subr.mxu0 0.0
    %834 = vmatpush1.msra.mxu0 0.0
    %835 = vmatprep.subr.mxu0 0.0
    %836 = vmatpush1.msra.mxu0 0.0
    %837 = vmatprep.subr.mxu0 0.0
    %838 = vmatpush1.msra.mxu0 0.0
    %839 = vmatprep.subr.mxu0 0.0
    %840 = vmatpush1.msra.mxu0 0.0
    %841 = vmatprep.subr.mxu0 0.0
    %842 = vmatpush1.msra.mxu0 0.0
    %843 = vmatprep.subr.mxu0 0.0
    %844 = vmatpush1.msra.mxu0 0.0
    %845 = vmatprep.subr.mxu0 0.0
    %846 = vmatpush1.msra.mxu0 0.0
    %847 = vmatprep.subr.mxu0 0.0
    %848 = vmatpush1.msra.mxu0 0.0
    %849 = vmatprep.subr.mxu0 0.0
    %850 = vmatpush1.msra.mxu0 0.0
    %851 = vmatprep.subr.mxu0 0.0
    %852 = vmatpush1.msra.mxu0 0.0
    %853 = vmatprep.subr.mxu0 0.0
    %854 = vmatpush1.msra.mxu0 0.0
    %855 = vmatprep.subr.mxu0 0.0
    %856 = vmatpush1.msra.mxu0 0.0
    %857 = vmatprep.subr.mxu0 0.0
    %858 = vmatpush1.msra.mxu0 0.0
    %859 = vmatprep.mubr.f32.mxu0 0.0
    %860 = vmatmul.mubr.f32.gmra.mrb[0].mxu0 %v793
    %v861 = vpop.f32.mrb[0].mxu0
    %v862 = vadd.f32 %v747, %v861
    %v863 = vpop.f32.mrb[0].mxu0
    %864 = vdwg.mxu0
    %v865 = vxor.u32 %v862, 2147483648
    %v866 = vmul.f32 %v865, 1.442695
    %v867 = vpow.pop %v866
    %v868 = vadd.f32 %v867, 1.0
    %v869 = vrcp.pop %v868
    %v870 = vmul.f32 1.0, %v869
    %871 = vmatprep.subr.mxu0 0.0
    %872 = vmatpush1.msra.mxu0 %v48
    %873 = vmatprep.subr.mxu0 0.0
    %874 = vmatpush1.msra.mxu0 %v49
    %875 = vmatprep.subr.mxu0 0.0
    %876 = vmatpush1.msra.mxu0 0.0
    %877 = vmatprep.subr.mxu0 0.0
    %878 = vmatpush1.msra.mxu0 0.0
    %879 = vmatprep.subr.mxu0 0.0
    %880 = vmatpush1.msra.mxu0 0.0
    %881 = vmatprep.subr.mxu0 0.0
    %882 = vmatpush1.msra.mxu0 0.0
    %883 = vmatprep.subr.mxu0 0.0
    %884 = vmatpush1.msra.mxu0 0.0
    %885 = vmatprep.subr.mxu0 0.0
    %886 = vmatpush1.msra.mxu0 0.0
    %887 = vmatprep.subr.mxu0 0.0
    %888 = vmatpush1.msra.mxu0 0.0
    %889 = vmatprep.subr.mxu0 0.0
    %890 = vmatpush1.msra.mxu0 0.0
    %891 = vmatprep.subr.mxu0 0.0
    %892 = vmatpush1.msra.mxu0 0.0
    %893 = vmatprep.subr.mxu0 0.0
    %894 = vmatpush1.msra.mxu0 0.0
    %895 = vmatprep.subr.mxu0 0.0
    %896 = vmatpush1.msra.mxu0 0.0
    %897 = vmatprep.subr.mxu0 0.0
    %898 = vmatpush1.msra.mxu0 0.0
    %899 = vmatprep.subr.mxu0 0.0
    %900 = vmatpush1.msra.mxu0 0.0
    %901 = vmatprep.subr.mxu0 0.0
    %902 = vmatpush1.msra.mxu0 0.0
    %903 = vmatprep.subr.mxu0 0.0
    %904 = vmatpush1.msra.mxu0 0.0
    %905 = vmatprep.subr.mxu0 0.0
    %906 = vmatpush1.msra.mxu0 0.0
    %907 = vmatprep.subr.mxu0 0.0
    %908 = vmatpush1.msra.mxu0 0.0
    %909 = vmatprep.subr.mxu0 0.0
    %910 = vmatpush1.msra.mxu0 0.0
    %911 = vmatprep.subr.mxu0 0.0
    %912 = vmatpush1.msra.mxu0 0.0
    %913 = vmatprep.subr.mxu0 0.0
    %914 = vmatpush1.msra.mxu0 0.0
    %915 = vmatprep.subr.mxu0 0.0
    %916 = vmatpush1.msra.mxu0 0.0
    %917 = vmatprep.subr.mxu0 0.0
    %918 = vmatpush1.msra.mxu0 0.0
    %919 = vmatprep.subr.mxu0 0.0
    %920 = vmatpush1.msra.mxu0 0.0
    %921 = vmatprep.subr.mxu0 0.0
    %922 = vmatpush1.msra.mxu0 0.0
    %923 = vmatprep.subr.mxu0 0.0
    %924 = vmatpush1.msra.mxu0 0.0
    %925 = vmatprep.subr.mxu0 0.0
    %926 = vmatpush1.msra.mxu0 0.0
    %927 = vmatprep.subr.mxu0 0.0
    %928 = vmatpush1.msra.mxu0 0.0
    %929 = vmatprep.subr.mxu0 0.0
    %930 = vmatpush1.msra.mxu0 0.0
    %931 = vmatprep.subr.mxu0 0.0
    %932 = vmatpush1.msra.mxu0 0.0
    %933 = vmatprep.subr.mxu0 0.0
    %934 = vmatpush1.msra.mxu0 0.0
    %935 = vmatprep.mubr.f32.mxu0 0.0
    %936 = vmatmul.mubr.f32.gmra.mrb[0].mxu0 %v793
    %v937 = vpop.f32.mrb[0].mxu0
    %v938 = vadd.f32 %v787, %v937
    %v939 = vpop.f32.mrb[0].mxu0
    %940 = vdwg.mxu0
    %v941 = vxor.u32 %v938, 2147483648
    %v942 = vmul.f32 %v941, 1.442695
    %v943 = vpow.pop %v942
    %v944 = vadd.f32 %v943, 1.0
    %v945 = vrcp.pop %v944
    %v946 = vmul.f32 1.0, %v945
    %947 = vmatprep.subr.bf16.mxu0 0
    %948 = vmatpush1.bf16.msra.mxu0 %v583
    %949 = vmatprep.subr.bf16.mxu0 0
    %950 = vmatpush1.bf16.msra.mxu0 %v584
    %951 = vmatprep.subr.bf16.mxu0 0
    %952 = vmatpush1.bf16.msra.mxu0 0
    %953 = vmatprep.subr.bf16.mxu0 0
    %954 = vmatpush1.bf16.msra.mxu0 0
    %955 = vmatprep.subr.bf16.mxu0 0
    %956 = vmatpush1.bf16.msra.mxu0 0
    %957 = vmatprep.subr.bf16.mxu0 0
    %958 = vmatpush1.bf16.msra.mxu0 0
    %959 = vmatprep.subr.bf16.mxu0 0
    %960 = vmatpush1.bf16.msra.mxu0 0
    %961 = vmatprep.subr.bf16.mxu0 0
    %962 = vmatpush1.bf16.msra.mxu0 0
    %963 = vmatprep.subr.bf16.mxu0 0
    %964 = vmatpush1.bf16.msra.mxu0 0
    %965 = vmatprep.subr.bf16.mxu0 0
    %966 = vmatpush1.bf16.msra.mxu0 0
    %967 = vmatprep.subr.bf16.mxu0 0
    %968 = vmatpush1.bf16.msra.mxu0 0
    %969 = vmatprep.subr.bf16.mxu0 0
    %970 = vmatpush1.bf16.msra.mxu0 0
    %971 = vmatprep.subr.bf16.mxu0 0
    %972 = vmatpush1.bf16.msra.mxu0 0
    %973 = vmatprep.subr.bf16.mxu0 0
    %974 = vmatpush1.bf16.msra.mxu0 0
    %975 = vmatprep.subr.bf16.mxu0 0
    %976 = vmatpush1.bf16.msra.mxu0 0
    %977 = vmatprep.subr.bf16.mxu0 0
    %978 = vmatpush1.bf16.msra.mxu0 0
    %979 = vmatprep.mubr.bf16.mxu0 0
    %980 = vmatmul.mubr.bf16.gmra.mrb[0].mxu0 %v710
    %v981 = vpop.f32.mrb[0].mxu0
    %v982 = vadd.f32 %v230, %v981
    %v983 = vpop.f32.mrb[0].mxu0
    %v984 = vpop.f32.mrb[0].mxu0
    %v985 = vpop.f32.mrb[0].mxu0
    %986 = vdwg.mxu0
    %v987 = vmul.f32 %v870, %v982
    %988 = vmatprep.subr.mxu0 0.0
    %989 = vmatpush1.msra.mxu0 %v50
    %990 = vmatprep.subr.mxu0 0.0
    %991 = vmatpush1.msra.mxu0 %v51
    %992 = vmatprep.subr.mxu0 0.0
    %993 = vmatpush1.msra.mxu0 0.0
    %994 = vmatprep.subr.mxu0 0.0
    %995 = vmatpush1.msra.mxu0 0.0
    %996 = vmatprep.subr.mxu0 0.0
    %997 = vmatpush1.msra.mxu0 0.0
    %998 = vmatprep.subr.mxu0 0.0
    %999 = vmatpush1.msra.mxu0 0.0
    %1000 = vmatprep.subr.mxu0 0.0
    %1001 = vmatpush1.msra.mxu0 0.0
    %1002 = vmatprep.subr.mxu0 0.0
    %1003 = vmatpush1.msra.mxu0 0.0
    %1004 = vmatprep.subr.mxu0 0.0
    %1005 = vmatpush1.msra.mxu0 0.0
    %1006 = vmatprep.subr.mxu0 0.0
    %1007 = vmatpush1.msra.mxu0 0.0
    %1008 = vmatprep.subr.mxu0 0.0
    %1009 = vmatpush1.msra.mxu0 0.0
    %1010 = vmatprep.subr.mxu0 0.0
    %1011 = vmatpush1.msra.mxu0 0.0
    %1012 = vmatprep.subr.mxu0 0.0
    %1013 = vmatpush1.msra.mxu0 0.0
    %1014 = vmatprep.subr.mxu0 0.0
    %1015 = vmatpush1.msra.mxu0 0.0
    %1016 = vmatprep.subr.mxu0 0.0
    %1017 = vmatpush1.msra.mxu0 0.0
    %1018 = vmatprep.subr.mxu0 0.0
    %1019 = vmatpush1.msra.mxu0 0.0
    %1020 = vmatprep.subr.mxu0 0.0
    %1021 = vmatpush1.msra.mxu0 0.0
    %1022 = vmatprep.subr.mxu0 0.0
    %1023 = vmatpush1.msra.mxu0 0.0
    %1024 = vmatprep.subr.mxu0 0.0
    %1025 = vmatpush1.msra.mxu0 0.0
    %1026 = vmatprep.subr.mxu0 0.0
    %1027 = vmatpush1.msra.mxu0 0.0
    %1028 = vmatprep.subr.mxu0 0.0
    %1029 = vmatpush1.msra.mxu0 0.0
    %1030 = vmatprep.subr.mxu0 0.0
    %1031 = vmatpush1.msra.mxu0 0.0
    %1032 = vmatprep.subr.mxu0 0.0
    %1033 = vmatpush1.msra.mxu0 0.0
    %1034 = vmatprep.subr.mxu0 0.0
    %1035 = vmatpush1.msra.mxu0 0.0
    %1036 = vmatprep.subr.mxu0 0.0
    %1037 = vmatpush1.msra.mxu0 0.0
    %1038 = vmatprep.subr.mxu0 0.0
    %1039 = vmatpush1.msra.mxu0 0.0
    %1040 = vmatprep.subr.mxu0 0.0
    %1041 = vmatpush1.msra.mxu0 0.0
    %1042 = vmatprep.subr.mxu0 0.0
    %1043 = vmatpush1.msra.mxu0 0.0
    %1044 = vmatprep.subr.mxu0 0.0
    %1045 = vmatpush1.msra.mxu0 0.0
    %1046 = vmatprep.subr.mxu0 0.0
    %1047 = vmatpush1.msra.mxu0 0.0
    %1048 = vmatprep.subr.mxu0 0.0
    %1049 = vmatpush1.msra.mxu0 0.0
    %1050 = vmatprep.subr.mxu0 0.0
    %1051 = vmatpush1.msra.mxu0 0.0
    %1052 = vmatprep.mubr.f32.mxu0 0.0
    %1053 = vmatmul.mubr.f32.gmra.mrb[0].mxu0 %v793
    %v1054 = vpop.f32.mrb[0].mxu0
    %v1055 = vadd.f32 %v987, %v1054
    %v1056 = vpop.f32.mrb[0].mxu0
    %1057 = vdwg.mxu0
    %v1058 = vtanh.pop %v1055
    %v1059 = vsub.f32 1.0, %v946
    %v1060 = vmul.f32 %v1059, %v1058
    %v1061 = vmul.f32 %v946, %v702
    %v1062 = vadd.f32 %v1060, %v1061
    %1063 = vset.pattern.permute.xlu0 3
    %1064 = vperm.xlu0 %1063, %v43
    %v1065 = vpop.permute.xlu0 %1064
    %vm1066 = vcmp.eq.s32.totalorder %v1065, %v45
    %v1067 = vsel %vm1066, 1.0, 0.0
    %v1068 = vpack.c.bf16 %v1062, %v1062
    %v1070 = vsel %vm324, %v1068, 0
    %1072 = vmatprep.subr.bf16.mxu0 0
    %1073 = vmatpush1.bf16.msra.mxu0 %v320
    %1074 = vmatprep.subr.bf16.mxu0 0
    %1075 = vmatpush1.bf16.msra.mxu0 %v321
    %1076 = vmatprep.subr.bf16.mxu0 0
    %1077 = vmatpush1.bf16.msra.mxu0 0
    %1078 = vmatprep.subr.bf16.mxu0 0
    %1079 = vmatpush1.bf16.msra.mxu0 0
    %1080 = vmatprep.subr.bf16.mxu0 0
    %1081 = vmatpush1.bf16.msra.mxu0 0
    %1082 = vmatprep.subr.bf16.mxu0 0
    %1083 = vmatpush1.bf16.msra.mxu0 0
    %1084 = vmatprep.subr.bf16.mxu0 0
    %1085 = vmatpush1.bf16.msra.mxu0 0
    %1086 = vmatprep.subr.bf16.mxu0 0
    %1087 = vmatpush1.bf16.msra.mxu0 0
    %1088 = vmatprep.subr.bf16.mxu0 0
    %1089 = vmatpush1.bf16.msra.mxu0 0
    %1090 = vmatprep.subr.bf16.mxu0 0
    %1091 = vmatpush1.bf16.msra.mxu0 0
    %1092 = vmatprep.subr.bf16.mxu0 0
    %1093 = vmatpush1.bf16.msra.mxu0 0
    %1094 = vmatprep.subr.bf16.mxu0 0
    %1095 = vmatpush1.bf16.msra.mxu0 0
    %1096 = vmatprep.subr.bf16.mxu0 0
    %1097 = vmatpush1.bf16.msra.mxu0 0
    %1098 = vmatprep.subr.bf16.mxu0 0
    %1099 = vmatpush1.bf16.msra.mxu0 0
    %1100 = vmatprep.subr.bf16.mxu0 0
    %1101 = vmatpush1.bf16.msra.mxu0 0
    %1102 = vmatprep.subr.bf16.mxu0 0
    %1103 = vmatpush1.bf16.msra.mxu0 0
    %1104 = vmatprep.mubr.bf16.mxu0 0
    %1105 = vmatmul.mubr.bf16.gmra.mrb[0].mxu0 %v1070
    %v1106 = vpop.f32.mrb[0].mxu0
    %v1107 = vadd.f32 0.0, %v1106
    %v1108 = vpop.f32.mrb[0].mxu0
    %v1109 = vpop.f32.mrb[0].mxu0
    %v1110 = vpop.f32.mrb[0].mxu0
    %1111 = vdwg.mxu0
    %1112 = vmatprep.subr.bf16.mxu0 0
    %1113 = vmatpush1.bf16.msra.mxu0 %v376
    %1114 = vmatprep.subr.bf16.mxu0 0
    %1115 = vmatpush1.bf16.msra.mxu0 %v377
    %1116 = vmatprep.subr.bf16.mxu0 0
    %1117 = vmatpush1.bf16.msra.mxu0 0
    %1118 = vmatprep.subr.bf16.mxu0 0
    %1119 = vmatpush1.bf16.msra.mxu0 0
    %1120 = vmatprep.subr.bf16.mxu0 0
    %1121 = vmatpush1.bf16.msra.mxu0 0
    %1122 = vmatprep.subr.bf16.mxu0 0
    %1123 = vmatpush1.bf16.msra.mxu0 0
    %1124 = vmatprep.subr.bf16.mxu0 0
    %1125 = vmatpush1.bf16.msra.mxu0 0
    %1126 = vmatprep.subr.bf16.mxu0 0
    %1127 = vmatpush1.bf16.msra.mxu0 0
    %1128 = vmatprep.subr.bf16.mxu0 0
    %1129 = vmatpush1.bf16.msra.mxu0 0
    %1130 = vmatprep.subr.bf16.mxu0 0
    %1131 = vmatpush1.bf16.msra.mxu0 0
    %1132 = vmatprep.subr.bf16.mxu0 0
    %1133 = vmatpush1.bf16.msra.mxu0 0
    %1134 = vmatprep.subr.bf16.mxu0 0
    %1135 = vmatpush1.bf16.msra.mxu0 0
    %1136 = vmatprep.subr.bf16.mxu0 0
    %1137 = vmatpush1.bf16.msra.mxu0 0
    %1138 = vmatprep.subr.bf16.mxu0 0
    %1139 = vmatpush1.bf16.msra.mxu0 0
    %1140 = vmatprep.subr.bf16.mxu0 0
    %1141 = vmatpush1.bf16.msra.mxu0 0
    %1142 = vmatprep.subr.bf16.mxu0 0
    %1143 = vmatpush1.bf16.msra.mxu0 0
    %1144 = vmatprep.mubr.bf16.mxu0 0
    %1145 = vmatmul.mubr.bf16.gmra.mrb[0].mxu0 %v1070
    %v1146 = vpop.f32.mrb[0].mxu0
    %v1147 = vadd.f32 0.0, %v1146
    %v1148 = vpop.f32.mrb[0].mxu0
    %v1149 = vpop.f32.mrb[0].mxu0
    %v1150 = vpop.f32.mrb[0].mxu0
    %1151 = vdwg.mxu0
    %v1153 = vsel %vm70, %v1067, 0
    %1155 = vmatprep.subr.mxu0 0.0
    %1156 = vmatpush1.msra.mxu0 %v46
    %1157 = vmatprep.subr.mxu0 0.0
    %1158 = vmatpush1.msra.mxu0 %v47
    %1159 = vmatprep.subr.mxu0 0.0
    %1160 = vmatpush1.msra.mxu0 0.0
    %1161 = vmatprep.subr.mxu0 0.0
    %1162 = vmatpush1.msra.mxu0 0.0
    %1163 = vmatprep.subr.mxu0 0.0
    %1164 = vmatpush1.msra.mxu0 0.0
    %1165 = vmatprep.subr.mxu0 0.0
    %1166 = vmatpush1.msra.mxu0 0.0
    %1167 = vmatprep.subr.mxu0 0.0
    %1168 = vmatpush1.msra.mxu0 0.0
    %1169 = vmatprep.subr.mxu0 0.0
    %1170 = vmatpush1.msra.mxu0 0.0
    %1171 = vmatprep.subr.mxu0 0.0
    %1172 = vmatpush1.msra.mxu0 0.0
    %1173 = vmatprep.subr.mxu0 0.0
    %1174 = vmatpush1.msra.mxu0 0.0
    %1175 = vmatprep.subr.mxu0 0.0
    %1176 = vmatpush1.msra.mxu0 0.0
    %1177 = vmatprep.subr.mxu0 0.0
    %1178 = vmatpush1.msra.mxu0 0.0
    %1179 = vmatprep.subr.mxu0 0.0
    %1180 = vmatpush1.msra.mxu0 0.0
    %1181 = vmatprep.subr.mxu0 0.0
    %1182 = vmatpush1.msra.mxu0 0.0
    %1183 = vmatprep.subr.mxu0 0.0
    %1184 = vmatpush1.msra.mxu0 0.0
    %1185 = vmatprep.subr.mxu0 0.0
    %1186 = vmatpush1.msra.mxu0 0.0
    %1187 = vmatprep.subr.mxu0 0.0
    %1188 = vmatpush1.msra.mxu0 0.0
    %1189 = vmatprep.subr.mxu0 0.0
    %1190 = vmatpush1.msra.mxu0 0.0
    %1191 = vmatprep.subr.mxu0 0.0
    %1192 = vmatpush1.msra.mxu0 0.0
    %1193 = vmatprep.subr.mxu0 0.0
    %1194 = vmatpush1.msra.mxu0 0.0
    %1195 = vmatprep.subr.mxu0 0.0
    %1196 = vmatpush1.msra.mxu0 0.0
    %1197 = vmatprep.subr.mxu0 0.0
    %1198 = vmatpush1.msra.mxu0 0.0
    %1199 = vmatprep.subr.mxu0 0.0
    %1200 = vmatpush1.msra.mxu0 0.0
    %1201 = vmatprep.subr.mxu0 0.0
    %1202 = vmatpush1.msra.mxu0 0.0
    %1203 = vmatprep.subr.mxu0 0.0
    %1204 = vmatpush1.msra.mxu0 0.0
    %1205 = vmatprep.subr.mxu0 0.0
    %1206 = vmatpush1.msra.mxu0 0.0
    %1207 = vmatprep.subr.mxu0 0.0
    %1208 = vmatpush1.msra.mxu0 0.0
    %1209 = vmatprep.subr.mxu0 0.0
    %1210 = vmatpush1.msra.mxu0 0.0
    %1211 = vmatprep.subr.mxu0 0.0
    %1212 = vmatpush1.msra.mxu0 0.0
    %1213 = vmatprep.subr.mxu0 0.0
    %1214 = vmatpush1.msra.mxu0 0.0
    %1215 = vmatprep.subr.mxu0 0.0
    %1216 = vmatpush1.msra.mxu0 0.0
    %1217 = vmatprep.subr.mxu0 0.0
    %1218 = vmatpush1.msra.mxu0 0.0
    %1219 = vmatprep.mubr.f32.mxu0 0.0
    %1220 = vmatmul.mubr.f32.gmra.mrb[0].mxu0 %v1153
    %v1221 = vpop.f32.mrb[0].mxu0
    %v1222 = vadd.f32 %v1107, %v1221
    %v1223 = vpop.f32.mrb[0].mxu0
    %1224 = vdwg.mxu0
    %v1225 = vxor.u32 %v1222, 2147483648
    %v1226 = vmul.f32 %v1225, 1.442695
    %v1227 = vpow.pop %v1226
    %v1228 = vadd.f32 %v1227, 1.0
    %v1229 = vrcp.pop %v1228
    %v1230 = vmul.f32 1.0, %v1229
    %1231 = vmatprep.subr.mxu0 0.0
    %1232 = vmatpush1.msra.mxu0 %v48
    %1233 = vmatprep.subr.mxu0 0.0
    %1234 = vmatpush1.msra.mxu0 %v49
    %1235 = vmatprep.subr.mxu0 0.0
    %1236 = vmatpush1.msra.mxu0 0.0
    %1237 = vmatprep.subr.mxu0 0.0
    %1238 = vmatpush1.msra.mxu0 0.0
    %1239 = vmatprep.subr.mxu0 0.0
    %1240 = vmatpush1.msra.mxu0 0.0
    %1241 = vmatprep.subr.mxu0 0.0
    %1242 = vmatpush1.msra.mxu0 0.0
    %1243 = vmatprep.subr.mxu0 0.0
    %1244 = vmatpush1.msra.mxu0 0.0
    %1245 = vmatprep.subr.mxu0 0.0
    %1246 = vmatpush1.msra.mxu0 0.0
    %1247 = vmatprep.subr.mxu0 0.0
    %1248 = vmatpush1.msra.mxu0 0.0
    %1249 = vmatprep.subr.mxu0 0.0
    %1250 = vmatpush1.msra.mxu0 0.0
    %1251 = vmatprep.subr.mxu0 0.0
    %1252 = vmatpush1.msra.mxu0 0.0
    %1253 = vmatprep.subr.mxu0 0.0
    %1254 = vmatpush1.msra.mxu0 0.0
    %1255 = vmatprep.subr.mxu0 0.0
    %1256 = vmatpush1.msra.mxu0 0.0
    %1257 = vmatprep.subr.mxu0 0.0
    %1258 = vmatpush1.msra.mxu0 0.0
    %1259 = vmatprep.subr.mxu0 0.0
    %1260 = vmatpush1.msra.mxu0 0.0
    %1261 = vmatprep.subr.mxu0 0.0
    %1262 = vmatpush1.msra.mxu0 0.0
    %1263 = vmatprep.subr.mxu0 0.0
    %1264 = vmatpush1.msra.mxu0 0.0
    %1265 = vmatprep.subr.mxu0 0.0
    %1266 = vmatpush1.msra.mxu0 0.0
    %1267 = vmatprep.subr.mxu0 0.0
    %1268 = vmatpush1.msra.mxu0 0.0
    %1269 = vmatprep.subr.mxu0 0.0
    %1270 = vmatpush1.msra.mxu0 0.0
    %1271 = vmatprep.subr.mxu0 0.0
    %1272 = vmatpush1.msra.mxu0 0.0
    %1273 = vmatprep.subr.mxu0 0.0
    %1274 = vmatpush1.msra.mxu0 0.0
    %1275 = vmatprep.subr.mxu0 0.0
    %1276 = vmatpush1.msra.mxu0 0.0
    %1277 = vmatprep.subr.mxu0 0.0
    %1278 = vmatpush1.msra.mxu0 0.0
    %1279 = vmatprep.subr.mxu0 0.0
    %1280 = vmatpush1.msra.mxu0 0.0
    %1281 = vmatprep.subr.mxu0 0.0
    %1282 = vmatpush1.msra.mxu0 0.0
    %1283 = vmatprep.subr.mxu0 0.0
    %1284 = vmatpush1.msra.mxu0 0.0
    %1285 = vmatprep.subr.mxu0 0.0
    %1286 = vmatpush1.msra.mxu0 0.0
    %1287 = vmatprep.subr.mxu0 0.0
    %1288 = vmatpush1.msra.mxu0 0.0
    %1289 = vmatprep.subr.mxu0 0.0
    %1290 = vmatpush1.msra.mxu0 0.0
    %1291 = vmatprep.subr.mxu0 0.0
    %1292 = vmatpush1.msra.mxu0 0.0
    %1293 = vmatprep.subr.mxu0 0.0
    %1294 = vmatpush1.msra.mxu0 0.0
    %1295 = vmatprep.mubr.f32.mxu0 0.0
    %1296 = vmatmul.mubr.f32.gmra.mrb[0].mxu0 %v1153
    %v1297 = vpop.f32.mrb[0].mxu0
    %v1298 = vadd.f32 %v1147, %v1297
    %v1299 = vpop.f32.mrb[0].mxu0
    %1300 = vdwg.mxu0
    %v1301 = vxor.u32 %v1298, 2147483648
    %v1302 = vmul.f32 %v1301, 1.442695
    %v1303 = vpow.pop %v1302
    %v1304 = vadd.f32 %v1303, 1.0
    %v1305 = vrcp.pop %v1304
    %v1306 = vmul.f32 1.0, %v1305
    %1307 = vmatprep.subr.bf16.mxu0 0
    %1308 = vmatpush1.bf16.msra.mxu0 %v583
    %1309 = vmatprep.subr.bf16.mxu0 0
    %1310 = vmatpush1.bf16.msra.mxu0 %v584
    %1311 = vmatprep.subr.bf16.mxu0 0
    %1312 = vmatpush1.bf16.msra.mxu0 0
    %1313 = vmatprep.subr.bf16.mxu0 0
    %1314 = vmatpush1.bf16.msra.mxu0 0
    %1315 = vmatprep.subr.bf16.mxu0 0
    %1316 = vmatpush1.bf16.msra.mxu0 0
    %1317 = vmatprep.subr.bf16.mxu0 0
    %1318 = vmatpush1.bf16.msra.mxu0 0
    %1319 = vmatprep.subr.bf16.mxu0 0
    %1320 = vmatpush1.bf16.msra.mxu0 0
    %1321 = vmatprep.subr.bf16.mxu0 0
    %1322 = vmatpush1.bf16.msra.mxu0 0
    %1323 = vmatprep.subr.bf16.mxu0 0
    %1324 = vmatpush1.bf16.msra.mxu0 0
    %1325 = vmatprep.subr.bf16.mxu0 0
    %1326 = vmatpush1.bf16.msra.mxu0 0
    %1327 = vmatprep.subr.bf16.mxu0 0
    %1328 = vmatpush1.bf16.msra.mxu0 0
    %1329 = vmatprep.subr.bf16.mxu0 0
    %1330 = vmatpush1.bf16.msra.mxu0 0
    %1331 = vmatprep.subr.bf16.mxu0 0
    %1332 = vmatpush1.bf16.msra.mxu0 0
    %1333 = vmatprep.subr.bf16.mxu0 0
    %1334 = vmatpush1.bf16.msra.mxu0 0
    %1335 = vmatprep.subr.bf16.mxu0 0
    %1336 = vmatpush1.bf16.msra.mxu0 0
    %1337 = vmatprep.subr.bf16.mxu0 0
    %1338 = vmatpush1.bf16.msra.mxu0 0
    %1339 = vmatprep.mubr.bf16.mxu0 0
    %1340 = vmatmul.mubr.bf16.gmra.mrb[0].mxu0 %v1070
    %v1341 = vpop.f32.mrb[0].mxu0
    %v1342 = vadd.f32 %v230, %v1341
    %v1343 = vpop.f32.mrb[0].mxu0
    %v1344 = vpop.f32.mrb[0].mxu0
    %v1345 = vpop.f32.mrb[0].mxu0
    %1346 = vdwg.mxu0
    %v1347 = vmul.f32 %v1230, %v1342
    %1348 = vmatprep.subr.mxu0 0.0
    %1349 = vmatpush1.msra.mxu0 %v50
    %1350 = vmatprep.subr.mxu0 0.0
    %1351 = vmatpush1.msra.mxu0 %v51
    %1352 = vmatprep.subr.mxu0 0.0
    %1353 = vmatpush1.msra.mxu0 0.0
    %1354 = vmatprep.subr.mxu0 0.0
    %1355 = vmatpush1.msra.mxu0 0.0
    %1356 = vmatprep.subr.mxu0 0.0
    %1357 = vmatpush1.msra.mxu0 0.0
    %1358 = vmatprep.subr.mxu0 0.0
    %1359 = vmatpush1.msra.mxu0 0.0
    %1360 = vmatprep.subr.mxu0 0.0
    %1361 = vmatpush1.msra.mxu0 0.0
    %1362 = vmatprep.subr.mxu0 0.0
    %1363 = vmatpush1.msra.mxu0 0.0
    %1364 = vmatprep.subr.mxu0 0.0
    %1365 = vmatpush1.msra.mxu0 0.0
    %1366 = vmatprep.subr.mxu0 0.0
    %1367 = vmatpush1.msra.mxu0 0.0
    %1368 = vmatprep.subr.mxu0 0.0
    %1369 = vmatpush1.msra.mxu0 0.0
    %1370 = vmatprep.subr.mxu0 0.0
    %1371 = vmatpush1.msra.mxu0 0.0
    %1372 = vmatprep.subr.mxu0 0.0
    %1373 = vmatpush1.msra.mxu0 0.0
    %1374 = vmatprep.subr.mxu0 0.0
    %1375 = vmatpush1.msra.mxu0 0.0
    %1376 = vmatprep.subr.mxu0 0.0
    %1377 = vmatpush1.msra.mxu0 0.0
    %1378 = vmatprep.subr.mxu0 0.0
    %1379 = vmatpush1.msra.mxu0 0.0
    %1380 = vmatprep.subr.mxu0 0.0
    %1381 = vmatpush1.msra.mxu0 0.0
    %1382 = vmatprep.subr.mxu0 0.0
    %1383 = vmatpush1.msra.mxu0 0.0
    %1384 = vmatprep.subr.mxu0 0.0
    %1385 = vmatpush1.msra.mxu0 0.0
    %1386 = vmatprep.subr.mxu0 0.0
    %1387 = vmatpush1.msra.mxu0 0.0
    %1388 = vmatprep.subr.mxu0 0.0
    %1389 = vmatpush1.msra.mxu0 0.0
    %1390 = vmatprep.subr.mxu0 0.0
    %1391 = vmatpush1.msra.mxu0 0.0
    %1392 = vmatprep.subr.mxu0 0.0
    %1393 = vmatpush1.msra.mxu0 0.0
    %1394 = vmatprep.subr.mxu0 0.0
    %1395 = vmatpush1.msra.mxu0 0.0
    %1396 = vmatprep.subr.mxu0 0.0
    %1397 = vmatpush1.msra.mxu0 0.0
    %1398 = vmatprep.subr.mxu0 0.0
    %1399 = vmatpush1.msra.mxu0 0.0
    %1400 = vmatprep.subr.mxu0 0.0
    %1401 = vmatpush1.msra.mxu0 0.0
    %1402 = vmatprep.subr.mxu0 0.0
    %1403 = vmatpush1.msra.mxu0 0.0
    %1404 = vmatprep.subr.mxu0 0.0
    %1405 = vmatpush1.msra.mxu0 0.0
    %1406 = vmatprep.subr.mxu0 0.0
    %1407 = vmatpush1.msra.mxu0 0.0
    %1408 = vmatprep.subr.mxu0 0.0
    %1409 = vmatpush1.msra.mxu0 0.0
    %1410 = vmatprep.subr.mxu0 0.0
    %1411 = vmatpush1.msra.mxu0 0.0
    %1412 = vmatprep.mubr.f32.mxu0 0.0
    %1413 = vmatmul.mubr.f32.gmra.mrb[0].mxu0 %v1153
    %v1414 = vpop.f32.mrb[0].mxu0
    %v1415 = vadd.f32 %v1347, %v1414
    %v1416 = vpop.f32.mrb[0].mxu0
    %1417 = vdwg.mxu0
    %v1418 = vtanh.pop %v1415
    %v1419 = vsub.f32 1.0, %v1306
    %v1420 = vmul.f32 %v1419, %v1418
    %v1421 = vmul.f32 %v1306, %v1062
    %v1422 = vadd.f32 %v1420, %v1421
    %1423 = vset.pattern.permute.xlu0 4
    %1424 = vperm.xlu0 %1423, %v43
    %v1425 = vpop.permute.xlu0 %1424
    %vm1426 = vcmp.eq.s32.totalorder %v1425, %v45
    %v1427 = vsel %vm1426, 1.0, 0.0
    %v1428 = vpack.c.bf16 %v1422, %v1422
    %v1430 = vsel %vm324, %v1428, 0
    %1432 = vmatprep.subr.bf16.mxu0 0
    %1433 = vmatpush1.bf16.msra.mxu0 %v320
    %1434 = vmatprep.subr.bf16.mxu0 0
    %1435 = vmatpush1.bf16.msra.mxu0 %v321
    %1436 = vmatprep.subr.bf16.mxu0 0
    %1437 = vmatpush1.bf16.msra.mxu0 0
    %1438 = vmatprep.subr.bf16.mxu0 0
    %1439 = vmatpush1.bf16.msra.mxu0 0
    %1440 = vmatprep.subr.bf16.mxu0 0
    %1441 = vmatpush1.bf16.msra.mxu0 0
    %1442 = vmatprep.subr.bf16.mxu0 0
    %1443 = vmatpush1.bf16.msra.mxu0 0
    %1444 = vmatprep.subr.bf16.mxu0 0
    %1445 = vmatpush1.bf16.msra.mxu0 0
    %1446 = vmatprep.subr.bf16.mxu0 0
    %1447 = vmatpush1.bf16.msra.mxu0 0
    %1448 = vmatprep.subr.bf16.mxu0 0
    %1449 = vmatpush1.bf16.msra.mxu0 0
    %1450 = vmatprep.subr.bf16.mxu0 0
    %1451 = vmatpush1.bf16.msra.mxu0 0
    %1452 = vmatprep.subr.bf16.mxu0 0
    %1453 = vmatpush1.bf16.msra.mxu0 0
    %1454 = vmatprep.subr.bf16.mxu0 0
    %1455 = vmatpush1.bf16.msra.mxu0 0
    %1456 = vmatprep.subr.bf16.mxu0 0
    %1457 = vmatpush1.bf16.msra.mxu0 0
    %1458 = vmatprep.subr.bf16.mxu0 0
    %1459 = vmatpush1.bf16.msra.mxu0 0
    %1460 = vmatprep.subr.bf16.mxu0 0
    %1461 = vmatpush1.bf16.msra.mxu0 0
    %1462 = vmatprep.subr.bf16.mxu0 0
    %1463 = vmatpush1.bf16.msra.mxu0 0
    %1464 = vmatprep.mubr.bf16.mxu0 0
    %1465 = vmatmul.mubr.bf16.gmra.mrb[0].mxu0 %v1430
    %v1466 = vpop.f32.mrb[0].mxu0
    %v1467 = vadd.f32 0.0, %v1466
    %v1468 = vpop.f32.mrb[0].mxu0
    %v1469 = vpop.f32.mrb[0].mxu0
    %v1470 = vpop.f32.mrb[0].mxu0
    %1471 = vdwg.mxu0
    %1472 = vmatprep.subr.bf16.mxu0 0
    %1473 = vmatpush1.bf16.msra.mxu0 %v376
    %1474 = vmatprep.subr.bf16.mxu0 0
    %1475 = vmatpush1.bf16.msra.mxu0 %v377
    %1476 = vmatprep.subr.bf16.mxu0 0
    %1477 = vmatpush1.bf16.msra.mxu0 0
    %1478 = vmatprep.subr.bf16.mxu0 0
    %1479 = vmatpush1.bf16.msra.mxu0 0
    %1480 = vmatprep.subr.bf16.mxu0 0
    %1481 = vmatpush1.bf16.msra.mxu0 0
    %1482 = vmatprep.subr.bf16.mxu0 0
    %1483 = vmatpush1.bf16.msra.mxu0 0
    %1484 = vmatprep.subr.bf16.mxu0 0
    %1485 = vmatpush1.bf16.msra.mxu0 0
    %1486 = vmatprep.subr.bf16.mxu0 0
    %1487 = vmatpush1.bf16.msra.mxu0 0
    %1488 = vmatprep.subr.bf16.mxu0 0
    %1489 = vmatpush1.bf16.msra.mxu0 0
    %1490 = vmatprep.subr.bf16.mxu0 0
    %1491 = vmatpush1.bf16.msra.mxu0 0
    %1492 = vmatprep.subr.bf16.mxu0 0
    %1493 = vmatpush1.bf16.msra.mxu0 0
    %1494 = vmatprep.subr.bf16.mxu0 0
    %1495 = vmatpush1.bf16.msra.mxu0 0
    %1496 = vmatprep.subr.bf16.mxu0 0
    %1497 = vmatpush1.bf16.msra.mxu0 0
    %1498 = vmatprep.subr.bf16.mxu0 0
    %1499 = vmatpush1.bf16.msra.mxu0 0
    %1500 = vmatprep.subr.bf16.mxu0 0
    %1501 = vmatpush1.bf16.msra.mxu0 0
    %1502 = vmatprep.subr.bf16.mxu0 0
    %1503 = vmatpush1.bf16.msra.mxu0 0
    %1504 = vmatprep.mubr.bf16.mxu0 0
    %1505 = vmatmul.mubr.bf16.gmra.mrb[0].mxu0 %v1430
    %v1506 = vpop.f32.mrb[0].mxu0
    %v1507 = vadd.f32 0.0, %v1506
    %v1508 = vpop.f32.mrb[0].mxu0
    %v1509 = vpop.f32.mrb[0].mxu0
    %v1510 = vpop.f32.mrb[0].mxu0
    %1511 = vdwg.mxu0
    %v1513 = vsel %vm70, %v1427, 0
    %1515 = vmatprep.subr.mxu0 0.0
    %1516 = vmatpush1.msra.mxu0 %v46
    %1517 = vmatprep.subr.mxu0 0.0
    %1518 = vmatpush1.msra.mxu0 %v47
    %1519 = vmatprep.subr.mxu0 0.0
    %1520 = vmatpush1.msra.mxu0 0.0
    %1521 = vmatprep.subr.mxu0 0.0
    %1522 = vmatpush1.msra.mxu0 0.0
    %1523 = vmatprep.subr.mxu0 0.0
    %1524 = vmatpush1.msra.mxu0 0.0
    %1525 = vmatprep.subr.mxu0 0.0
    %1526 = vmatpush1.msra.mxu0 0.0
    %1527 = vmatprep.subr.mxu0 0.0
    %1528 = vmatpush1.msra.mxu0 0.0
    %1529 = vmatprep.subr.mxu0 0.0
    %1530 = vmatpush1.msra.mxu0 0.0
    %1531 = vmatprep.subr.mxu0 0.0
    %1532 = vmatpush1.msra.mxu0 0.0
    %1533 = vmatprep.subr.mxu0 0.0
    %1534 = vmatpush1.msra.mxu0 0.0
    %1535 = vmatprep.subr.mxu0 0.0
    %1536 = vmatpush1.msra.mxu0 0.0
    %1537 = vmatprep.subr.mxu0 0.0
    %1538 = vmatpush1.msra.mxu0 0.0
    %1539 = vmatprep.subr.mxu0 0.0
    %1540 = vmatpush1.msra.mxu0 0.0
    %1541 = vmatprep.subr.mxu0 0.0
    %1542 = vmatpush1.msra.mxu0 0.0
    %1543 = vmatprep.subr.mxu0 0.0
    %1544 = vmatpush1.msra.mxu0 0.0
    %1545 = vmatprep.subr.mxu0 0.0
    %1546 = vmatpush1.msra.mxu0 0.0
    %1547 = vmatprep.subr.mxu0 0.0
    %1548 = vmatpush1.msra.mxu0 0.0
    %1549 = vmatprep.subr.mxu0 0.0
    %1550 = vmatpush1.msra.mxu0 0.0
    %1551 = vmatprep.subr.mxu0 0.0
    %1552 = vmatpush1.msra.mxu0 0.0
    %1553 = vmatprep.subr.mxu0 0.0
    %1554 = vmatpush1.msra.mxu0 0.0
    %1555 = vmatprep.subr.mxu0 0.0
    %1556 = vmatpush1.msra.mxu0 0.0
    %1557 = vmatprep.subr.mxu0 0.0
    %1558 = vmatpush1.msra.mxu0 0.0
    %1559 = vmatprep.subr.mxu0 0.0
    %1560 = vmatpush1.msra.mxu0 0.0
    %1561 = vmatprep.subr.mxu0 0.0
    %1562 = vmatpush1.msra.mxu0 0.0
    %1563 = vmatprep.subr.mxu0 0.0
    %1564 = vmatpush1.msra.mxu0 0.0
    %1565 = vmatprep.subr.mxu0 0.0
    %1566 = vmatpush1.msra.mxu0 0.0
    %1567 = vmatprep.subr.mxu0 0.0
    %1568 = vmatpush1.msra.mxu0 0.0
    %1569 = vmatprep.subr.mxu0 0.0
    %1570 = vmatpush1.msra.mxu0 0.0
    %1571 = vmatprep.subr.mxu0 0.0
    %1572 = vmatpush1.msra.mxu0 0.0
    %1573 = vmatprep.subr.mxu0 0.0
    %1574 = vmatpush1.msra.mxu0 0.0
    %1575 = vmatprep.subr.mxu0 0.0
    %1576 = vmatpush1.msra.mxu0 0.0
    %1577 = vmatprep.subr.mxu0 0.0
    %1578 = vmatpush1.msra.mxu0 0.0
    %1579 = vmatprep.mubr.f32.mxu0 0.0
    %1580 = vmatmul.mubr.f32.gmra.mrb[0].mxu0 %v1513
    %v1581 = vpop.f32.mrb[0].mxu0
    %v1582 = vadd.f32 %v1467, %v1581
    %v1583 = vpop.f32.mrb[0].mxu0
    %1584 = vdwg.mxu0
    %v1585 = vxor.u32 %v1582, 2147483648
    %v1586 = vmul.f32 %v1585, 1.442695
    %v1587 = vpow.pop %v1586
    %v1588 = vadd.f32 %v1587, 1.0
    %v1589 = vrcp.pop %v1588
    %v1590 = vmul.f32 1.0, %v1589
    %1591 = vmatprep.subr.mxu0 0.0
    %1592 = vmatpush1.msra.mxu0 %v48
    %1593 = vmatprep.subr.mxu0 0.0
    %1594 = vmatpush1.msra.mxu0 %v49
    %1595 = vmatprep.subr.mxu0 0.0
    %1596 = vmatpush1.msra.mxu0 0.0
    %1597 = vmatprep.subr.mxu0 0.0
    %1598 = vmatpush1.msra.mxu0 0.0
    %1599 = vmatprep.subr.mxu0 0.0
    %1600 = vmatpush1.msra.mxu0 0.0
    %1601 = vmatprep.subr.mxu0 0.0
    %1602 = vmatpush1.msra.mxu0 0.0
    %1603 = vmatprep.subr.mxu0 0.0
    %1604 = vmatpush1.msra.mxu0 0.0
    %1605 = vmatprep.subr.mxu0 0.0
    %1606 = vmatpush1.msra.mxu0 0.0
    %1607 = vmatprep.subr.mxu0 0.0
    %1608 = vmatpush1.msra.mxu0 0.0
    %1609 = vmatprep.subr.mxu0 0.0
    %1610 = vmatpush1.msra.mxu0 0.0
    %1611 = vmatprep.subr.mxu0 0.0
    %1612 = vmatpush1.msra.mxu0 0.0
    %1613 = vmatprep.subr.mxu0 0.0
    %1614 = vmatpush1.msra.mxu0 0.0
    %1615 = vmatprep.subr.mxu0 0.0
    %1616 = vmatpush1.msra.mxu0 0.0
    %1617 = vmatprep.subr.mxu0 0.0
    %1618 = vmatpush1.msra.mxu0 0.0
    %1619 = vmatprep.subr.mxu0 0.0
    %1620 = vmatpush1.msra.mxu0 0.0
    %1621 = vmatprep.subr.mxu0 0.0
    %1622 = vmatpush1.msra.mxu0 0.0
    %1623 = vmatprep.subr.mxu0 0.0
    %1624 = vmatpush1.msra.mxu0 0.0
    %1625 = vmatprep.subr.mxu0 0.0
    %1626 = vmatpush1.msra.mxu0 0.0
    %1627 = vmatprep.subr.mxu0 0.0
    %1628 = vmatpush1.msra.mxu0 0.0
    %1629 = vmatprep.subr.mxu0 0.0
    %1630 = vmatpush1.msra.mxu0 0.0
    %1631 = vmatprep.subr.mxu0 0.0
    %1632 = vmatpush1.msra.mxu0 0.0
    %1633 = vmatprep.subr.mxu0 0.0
    %1634 = vmatpush1.msra.mxu0 0.0
    %1635 = vmatprep.subr.mxu0 0.0
    %1636 = vmatpush1.msra.mxu0 0.0
    %1637 = vmatprep.subr.mxu0 0.0
    %1638 = vmatpush1.msra.mxu0 0.0
    %1639 = vmatprep.subr.mxu0 0.0
    %1640 = vmatpush1.msra.mxu0 0.0
    %1641 = vmatprep.subr.mxu0 0.0
    %1642 = vmatpush1.msra.mxu0 0.0
    %1643 = vmatprep.subr.mxu0 0.0
    %1644 = vmatpush1.msra.mxu0 0.0
    %1645 = vmatprep.subr.mxu0 0.0
    %1646 = vmatpush1.msra.mxu0 0.0
    %1647 = vmatprep.subr.mxu0 0.0
    %1648 = vmatpush1.msra.mxu0 0.0
    %1649 = vmatprep.subr.mxu0 0.0
    %1650 = vmatpush1.msra.mxu0 0.0
    %1651 = vmatprep.subr.mxu0 0.0
    %1652 = vmatpush1.msra.mxu0 0.0
    %1653 = vmatprep.subr.mxu0 0.0
    %1654 = vmatpush1.msra.mxu0 0.0
    %1655 = vmatprep.mubr.f32.mxu0 0.0
    %1656 = vmatmul.mubr.f32.gmra.mrb[0].mxu0 %v1513
    %v1657 = vpop.f32.mrb[0].mxu0
    %v1658 = vadd.f32 %v1507, %v1657
    %v1659 = vpop.f32.mrb[0].mxu0
    %1660 = vdwg.mxu0
    %v1661 = vxor.u32 %v1658, 2147483648
    %v1662 = vmul.f32 %v1661, 1.442695
    %v1663 = vpow.pop %v1662
    %v1664 = vadd.f32 %v1663, 1.0
    %v1665 = vrcp.pop %v1664
    %v1666 = vmul.f32 1.0, %v1665
    %1667 = vmatprep.subr.bf16.mxu0 0
    %1668 = vmatpush1.bf16.msra.mxu0 %v583
    %1669 = vmatprep.subr.bf16.mxu0 0
    %1670 = vmatpush1.bf16.msra.mxu0 %v584
    %1671 = vmatprep.subr.bf16.mxu0 0
    %1672 = vmatpush1.bf16.msra.mxu0 0
    %1673 = vmatprep.subr.bf16.mxu0 0
    %1674 = vmatpush1.bf16.msra.mxu0 0
    %1675 = vmatprep.subr.bf16.mxu0 0
    %1676 = vmatpush1.bf16.msra.mxu0 0
    %1677 = vmatprep.subr.bf16.mxu0 0
    %1678 = vmatpush1.bf16.msra.mxu0 0
    %1679 = vmatprep.subr.bf16.mxu0 0
    %1680 = vmatpush1.bf16.msra.mxu0 0
    %1681 = vmatprep.subr.bf16.mxu0 0
    %1682 = vmatpush1.bf16.msra.mxu0 0
    %1683 = vmatprep.subr.bf16.mxu0 0
    %1684 = vmatpush1.bf16.msra.mxu0 0
    %1685 = vmatprep.subr.bf16.mxu0 0
    %1686 = vmatpush1.bf16.msra.mxu0 0
    %1687 = vmatprep.subr.bf16.mxu0 0
    %1688 = vmatpush1.bf16.msra.mxu0 0
    %1689 = vmatprep.subr.bf16.mxu0 0
    %1690 = vmatpush1.bf16.msra.mxu0 0
    %1691 = vmatprep.subr.bf16.mxu0 0
    %1692 = vmatpush1.bf16.msra.mxu0 0
    %1693 = vmatprep.subr.bf16.mxu0 0
    %1694 = vmatpush1.bf16.msra.mxu0 0
    %1695 = vmatprep.subr.bf16.mxu0 0
    %1696 = vmatpush1.bf16.msra.mxu0 0
    %1697 = vmatprep.subr.bf16.mxu0 0
    %1698 = vmatpush1.bf16.msra.mxu0 0
    %1699 = vmatprep.mubr.bf16.mxu0 0
    %1700 = vmatmul.mubr.bf16.gmra.mrb[0].mxu0 %v1430
    %v1701 = vpop.f32.mrb[0].mxu0
    %v1702 = vadd.f32 %v230, %v1701
    %v1703 = vpop.f32.mrb[0].mxu0
    %v1704 = vpop.f32.mrb[0].mxu0
    %v1705 = vpop.f32.mrb[0].mxu0
    %1706 = vdwg.mxu0
    %v1707 = vmul.f32 %v1590, %v1702
    %1708 = vmatprep.subr.mxu0 0.0
    %1709 = vmatpush1.msra.mxu0 %v50
    %1710 = vmatprep.subr.mxu0 0.0
    %1711 = vmatpush1.msra.mxu0 %v51
    %1712 = vmatprep.subr.mxu0 0.0
    %1713 = vmatpush1.msra.mxu0 0.0
    %1714 = vmatprep.subr.mxu0 0.0
    %1715 = vmatpush1.msra.mxu0 0.0
    %1716 = vmatprep.subr.mxu0 0.0
    %1717 = vmatpush1.msra.mxu0 0.0
    %1718 = vmatprep.subr.mxu0 0.0
    %1719 = vmatpush1.msra.mxu0 0.0
    %1720 = vmatprep.subr.mxu0 0.0
    %1721 = vmatpush1.msra.mxu0 0.0
    %1722 = vmatprep.subr.mxu0 0.0
    %1723 = vmatpush1.msra.mxu0 0.0
    %1724 = vmatprep.subr.mxu0 0.0
    %1725 = vmatpush1.msra.mxu0 0.0
    %1726 = vmatprep.subr.mxu0 0.0
    %1727 = vmatpush1.msra.mxu0 0.0
    %1728 = vmatprep.subr.mxu0 0.0
    %1729 = vmatpush1.msra.mxu0 0.0
    %1730 = vmatprep.subr.mxu0 0.0
    %1731 = vmatpush1.msra.mxu0 0.0
    %1732 = vmatprep.subr.mxu0 0.0
    %1733 = vmatpush1.msra.mxu0 0.0
    %1734 = vmatprep.subr.mxu0 0.0
    %1735 = vmatpush1.msra.mxu0 0.0
    %1736 = vmatprep.subr.mxu0 0.0
    %1737 = vmatpush1.msra.mxu0 0.0
    %1738 = vmatprep.subr.mxu0 0.0
    %1739 = vmatpush1.msra.mxu0 0.0
    %1740 = vmatprep.subr.mxu0 0.0
    %1741 = vmatpush1.msra.mxu0 0.0
    %1742 = vmatprep.subr.mxu0 0.0
    %1743 = vmatpush1.msra.mxu0 0.0
    %1744 = vmatprep.subr.mxu0 0.0
    %1745 = vmatpush1.msra.mxu0 0.0
    %1746 = vmatprep.subr.mxu0 0.0
    %1747 = vmatpush1.msra.mxu0 0.0
    %1748 = vmatprep.subr.mxu0 0.0
    %1749 = vmatpush1.msra.mxu0 0.0
    %1750 = vmatprep.subr.mxu0 0.0
    %1751 = vmatpush1.msra.mxu0 0.0
    %1752 = vmatprep.subr.mxu0 0.0
    %1753 = vmatpush1.msra.mxu0 0.0
    %1754 = vmatprep.subr.mxu0 0.0
    %1755 = vmatpush1.msra.mxu0 0.0
    %1756 = vmatprep.subr.mxu0 0.0
    %1757 = vmatpush1.msra.mxu0 0.0
    %1758 = vmatprep.subr.mxu0 0.0
    %1759 = vmatpush1.msra.mxu0 0.0
    %1760 = vmatprep.subr.mxu0 0.0
    %1761 = vmatpush1.msra.mxu0 0.0
    %1762 = vmatprep.subr.mxu0 0.0
    %1763 = vmatpush1.msra.mxu0 0.0
    %1764 = vmatprep.subr.mxu0 0.0
    %1765 = vmatpush1.msra.mxu0 0.0
    %1766 = vmatprep.subr.mxu0 0.0
    %1767 = vmatpush1.msra.mxu0 0.0
    %1768 = vmatprep.subr.mxu0 0.0
    %1769 = vmatpush1.msra.mxu0 0.0
    %1770 = vmatprep.subr.mxu0 0.0
    %1771 = vmatpush1.msra.mxu0 0.0
    %1772 = vmatprep.mubr.f32.mxu0 0.0
    %1773 = vmatmul.mubr.f32.gmra.mrb[0].mxu0 %v1513
    %v1774 = vpop.f32.mrb[0].mxu0
    %v1775 = vadd.f32 %v1707, %v1774
    %v1776 = vpop.f32.mrb[0].mxu0
    %1777 = vdwg.mxu0
    %v1778 = vtanh.pop %v1775
    %v1779 = vsub.f32 1.0, %v1666
    %v1780 = vmul.f32 %v1779, %v1778
    %v1781 = vmul.f32 %v1666, %v1422
    %v1782 = vadd.f32 %v1780, %v1781
    %1783 = vset.pattern.permute.xlu0 5
    %1784 = vperm.xlu0 %1783, %v43
    %v1785 = vpop.permute.xlu0 %1784
    %vm1786 = vcmp.eq.s32.totalorder %v1785, %v45
    %v1787 = vsel %vm1786, 1.0, 0.0
    %v1788 = vpack.c.bf16 %v1782, %v1782
    %v1790 = vsel %vm324, %v1788, 0
    %1792 = vmatprep.subr.bf16.mxu0 0
    %1793 = vmatpush1.bf16.msra.mxu0 %v320
    %1794 = vmatprep.subr.bf16.mxu0 0
    %1795 = vmatpush1.bf16.msra.mxu0 %v321
    %1796 = vmatprep.subr.bf16.mxu0 0
    %1797 = vmatpush1.bf16.msra.mxu0 0
    %1798 = vmatprep.subr.bf16.mxu0 0
    %1799 = vmatpush1.bf16.msra.mxu0 0
    %1800 = vmatprep.subr.bf16.mxu0 0
    %1801 = vmatpush1.bf16.msra.mxu0 0
    %1802 = vmatprep.subr.bf16.mxu0 0
    %1803 = vmatpush1.bf16.msra.mxu0 0
    %1804 = vmatprep.subr.bf16.mxu0 0
    %1805 = vmatpush1.bf16.msra.mxu0 0
    %1806 = vmatprep.subr.bf16.mxu0 0
    %1807 = vmatpush1.bf16.msra.mxu0 0
    %1808 = vmatprep.subr.bf16.mxu0 0
    %1809 = vmatpush1.bf16.msra.mxu0 0
    %1810 = vmatprep.subr.bf16.mxu0 0
    %1811 = vmatpush1.bf16.msra.mxu0 0
    %1812 = vmatprep.subr.bf16.mxu0 0
    %1813 = vmatpush1.bf16.msra.mxu0 0
    %1814 = vmatprep.subr.bf16.mxu0 0
    %1815 = vmatpush1.bf16.msra.mxu0 0
    %1816 = vmatprep.subr.bf16.mxu0 0
    %1817 = vmatpush1.bf16.msra.mxu0 0
    %1818 = vmatprep.subr.bf16.mxu0 0
    %1819 = vmatpush1.bf16.msra.mxu0 0
    %1820 = vmatprep.subr.bf16.mxu0 0
    %1821 = vmatpush1.bf16.msra.mxu0 0
    %1822 = vmatprep.subr.bf16.mxu0 0
    %1823 = vmatpush1.bf16.msra.mxu0 0
    %1824 = vmatprep.mubr.bf16.mxu0 0
    %1825 = vmatmul.mubr.bf16.gmra.mrb[0].mxu0 %v1790
    %v1826 = vpop.f32.mrb[0].mxu0
    %v1827 = vadd.f32 0.0, %v1826
    %v1828 = vpop.f32.mrb[0].mxu0
    %v1829 = vpop.f32.mrb[0].mxu0
    %v1830 = vpop.f32.mrb[0].mxu0
    %1831 = vdwg.mxu0
    %1832 = vmatprep.subr.bf16.mxu0 0
    %1833 = vmatpush1.bf16.msra.mxu0 %v376
    %1834 = vmatprep.subr.bf16.mxu0 0
    %1835 = vmatpush1.bf16.msra.mxu0 %v377
    %1836 = vmatprep.subr.bf16.mxu0 0
    %1837 = vmatpush1.bf16.msra.mxu0 0
    %1838 = vmatprep.subr.bf16.mxu0 0
    %1839 = vmatpush1.bf16.msra.mxu0 0
    %1840 = vmatprep.subr.bf16.mxu0 0
    %1841 = vmatpush1.bf16.msra.mxu0 0
    %1842 = vmatprep.subr.bf16.mxu0 0
    %1843 = vmatpush1.bf16.msra.mxu0 0
    %1844 = vmatprep.subr.bf16.mxu0 0
    %1845 = vmatpush1.bf16.msra.mxu0 0
    %1846 = vmatprep.subr.bf16.mxu0 0
    %1847 = vmatpush1.bf16.msra.mxu0 0
    %1848 = vmatprep.subr.bf16.mxu0 0
    %1849 = vmatpush1.bf16.msra.mxu0 0
    %1850 = vmatprep.subr.bf16.mxu0 0
    %1851 = vmatpush1.bf16.msra.mxu0 0
    %1852 = vmatprep.subr.bf16.mxu0 0
    %1853 = vmatpush1.bf16.msra.mxu0 0
    %1854 = vmatprep.subr.bf16.mxu0 0
    %1855 = vmatpush1.bf16.msra.mxu0 0
    %1856 = vmatprep.subr.bf16.mxu0 0
    %1857 = vmatpush1.bf16.msra.mxu0 0
    %1858 = vmatprep.subr.bf16.mxu0 0
    %1859 = vmatpush1.bf16.msra.mxu0 0
    %1860 = vmatprep.subr.bf16.mxu0 0
    %1861 = vmatpush1.bf16.msra.mxu0 0
    %1862 = vmatprep.subr.bf16.mxu0 0
    %1863 = vmatpush1.bf16.msra.mxu0 0
    %1864 = vmatprep.mubr.bf16.mxu0 0
    %1865 = vmatmul.mubr.bf16.gmra.mrb[0].mxu0 %v1790
    %v1866 = vpop.f32.mrb[0].mxu0
    %v1867 = vadd.f32 0.0, %v1866
    %v1868 = vpop.f32.mrb[0].mxu0
    %v1869 = vpop.f32.mrb[0].mxu0
    %v1870 = vpop.f32.mrb[0].mxu0
    %1871 = vdwg.mxu0
    %v1873 = vsel %vm70, %v1787, 0
    %1875 = vmatprep.subr.mxu0 0.0
    %1876 = vmatpush1.msra.mxu0 %v46
    %1877 = vmatprep.subr.mxu0 0.0
    %1878 = vmatpush1.msra.mxu0 %v47
    %1879 = vmatprep.subr.mxu0 0.0
    %1880 = vmatpush1.msra.mxu0 0.0
    %1881 = vmatprep.subr.mxu0 0.0
    %1882 = vmatpush1.msra.mxu0 0.0
    %1883 = vmatprep.subr.mxu0 0.0
    %1884 = vmatpush1.msra.mxu0 0.0
    %1885 = vmatprep.subr.mxu0 0.0
    %1886 = vmatpush1.msra.mxu0 0.0
    %1887 = vmatprep.subr.mxu0 0.0
    %1888 = vmatpush1.msra.mxu0 0.0
    %1889 = vmatprep.subr.mxu0 0.0
    %1890 = vmatpush1.msra.mxu0 0.0
    %1891 = vmatprep.subr.mxu0 0.0
    %1892 = vmatpush1.msra.mxu0 0.0
    %1893 = vmatprep.subr.mxu0 0.0
    %1894 = vmatpush1.msra.mxu0 0.0
    %1895 = vmatprep.subr.mxu0 0.0
    %1896 = vmatpush1.msra.mxu0 0.0
    %1897 = vmatprep.subr.mxu0 0.0
    %1898 = vmatpush1.msra.mxu0 0.0
    %1899 = vmatprep.subr.mxu0 0.0
    %1900 = vmatpush1.msra.mxu0 0.0
    %1901 = vmatprep.subr.mxu0 0.0
    %1902 = vmatpush1.msra.mxu0 0.0
    %1903 = vmatprep.subr.mxu0 0.0
    %1904 = vmatpush1.msra.mxu0 0.0
    %1905 = vmatprep.subr.mxu0 0.0
    %1906 = vmatpush1.msra.mxu0 0.0
    %1907 = vmatprep.subr.mxu0 0.0
    %1908 = vmatpush1.msra.mxu0 0.0
    %1909 = vmatprep.subr.mxu0 0.0
    %1910 = vmatpush1.msra.mxu0 0.0
    %1911 = vmatprep.subr.mxu0 0.0
    %1912 = vmatpush1.msra.mxu0 0.0
    %1913 = vmatprep.subr.mxu0 0.0
    %1914 = vmatpush1.msra.mxu0 0.0
    %1915 = vmatprep.subr.mxu0 0.0
    %1916 = vmatpush1.msra.mxu0 0.0
    %1917 = vmatprep.subr.mxu0 0.0
    %1918 = vmatpush1.msra.mxu0 0.0
    %1919 = vmatprep.subr.mxu0 0.0
    %1920 = vmatpush1.msra.mxu0 0.0
    %1921 = vmatprep.subr.mxu0 0.0
    %1922 = vmatpush1.msra.mxu0 0.0
    %1923 = vmatprep.subr.mxu0 0.0
    %1924 = vmatpush1.msra.mxu0 0.0
    %1925 = vmatprep.subr.mxu0 0.0
    %1926 = vmatpush1.msra.mxu0 0.0
    %1927 = vmatprep.subr.mxu0 0.0
    %1928 = vmatpush1.msra.mxu0 0.0
    %1929 = vmatprep.subr.mxu0 0.0
    %1930 = vmatpush1.msra.mxu0 0.0
    %1931 = vmatprep.subr.mxu0 0.0
    %1932 = vmatpush1.msra.mxu0 0.0
    %1933 = vmatprep.subr.mxu0 0.0
    %1934 = vmatpush1.msra.mxu0 0.0
    %1935 = vmatprep.subr.mxu0 0.0
    %1936 = vmatpush1.msra.mxu0 0.0
    %1937 = vmatprep.subr.mxu0 0.0
    %1938 = vmatpush1.msra.mxu0 0.0
    %1939 = vmatprep.mubr.f32.mxu0 0.0
    %1940 = vmatmul.mubr.f32.gmra.mrb[0].mxu0 %v1873
    %v1941 = vpop.f32.mrb[0].mxu0
    %v1942 = vadd.f32 %v1827, %v1941
    %v1943 = vpop.f32.mrb[0].mxu0
    %1944 = vdwg.mxu0
    %v1945 = vxor.u32 %v1942, 2147483648
    %v1946 = vmul.f32 %v1945, 1.442695
    %v1947 = vpow.pop %v1946
    %v1948 = vadd.f32 %v1947, 1.0
    %v1949 = vrcp.pop %v1948
    %v1950 = vmul.f32 1.0, %v1949
    %1951 = vmatprep.subr.mxu0 0.0
    %1952 = vmatpush1.msra.mxu0 %v48
    %1953 = vmatprep.subr.mxu0 0.0
    %1954 = vmatpush1.msra.mxu0 %v49
    %1955 = vmatprep.subr.mxu0 0.0
    %1956 = vmatpush1.msra.mxu0 0.0
    %1957 = vmatprep.subr.mxu0 0.0
    %1958 = vmatpush1.msra.mxu0 0.0
    %1959 = vmatprep.subr.mxu0 0.0
    %1960 = vmatpush1.msra.mxu0 0.0
    %1961 = vmatprep.subr.mxu0 0.0
    %1962 = vmatpush1.msra.mxu0 0.0
    %1963 = vmatprep.subr.mxu0 0.0
    %1964 = vmatpush1.msra.mxu0 0.0
    %1965 = vmatprep.subr.mxu0 0.0
    %1966 = vmatpush1.msra.mxu0 0.0
    %1967 = vmatprep.subr.mxu0 0.0
    %1968 = vmatpush1.msra.mxu0 0.0
    %1969 = vmatprep.subr.mxu0 0.0
    %1970 = vmatpush1.msra.mxu0 0.0
    %1971 = vmatprep.subr.mxu0 0.0
    %1972 = vmatpush1.msra.mxu0 0.0
    %1973 = vmatprep.subr.mxu0 0.0
    %1974 = vmatpush1.msra.mxu0 0.0
    %1975 = vmatprep.subr.mxu0 0.0
    %1976 = vmatpush1.msra.mxu0 0.0
    %1977 = vmatprep.subr.mxu0 0.0
    %1978 = vmatpush1.msra.mxu0 0.0
    %1979 = vmatprep.subr.mxu0 0.0
    %1980 = vmatpush1.msra.mxu0 0.0
    %1981 = vmatprep.subr.mxu0 0.0
    %1982 = vmatpush1.msra.mxu0 0.0
    %1983 = vmatprep.subr.mxu0 0.0
    %1984 = vmatpush1.msra.mxu0 0.0
    %1985 = vmatprep.subr.mxu0 0.0
    %1986 = vmatpush1.msra.mxu0 0.0
    %1987 = vmatprep.subr.mxu0 0.0
    %1988 = vmatpush1.msra.mxu0 0.0
    %1989 = vmatprep.subr.mxu0 0.0
    %1990 = vmatpush1.msra.mxu0 0.0
    %1991 = vmatprep.subr.mxu0 0.0
    %1992 = vmatpush1.msra.mxu0 0.0
    %1993 = vmatprep.subr.mxu0 0.0
    %1994 = vmatpush1.msra.mxu0 0.0
    %1995 = vmatprep.subr.mxu0 0.0
    %1996 = vmatpush1.msra.mxu0 0.0
    %1997 = vmatprep.subr.mxu0 0.0
    %1998 = vmatpush1.msra.mxu0 0.0
    %1999 = vmatprep.subr.mxu0 0.0
    %2000 = vmatpush1.msra.mxu0 0.0
    %2001 = vmatprep.subr.mxu0 0.0
    %2002 = vmatpush1.msra.mxu0 0.0
    %2003 = vmatprep.subr.mxu0 0.0
    %2004 = vmatpush1.msra.mxu0 0.0
    %2005 = vmatprep.subr.mxu0 0.0
    %2006 = vmatpush1.msra.mxu0 0.0
    %2007 = vmatprep.subr.mxu0 0.0
    %2008 = vmatpush1.msra.mxu0 0.0
    %2009 = vmatprep.subr.mxu0 0.0
    %2010 = vmatpush1.msra.mxu0 0.0
    %2011 = vmatprep.subr.mxu0 0.0
    %2012 = vmatpush1.msra.mxu0 0.0
    %2013 = vmatprep.subr.mxu0 0.0
    %2014 = vmatpush1.msra.mxu0 0.0
    %2015 = vmatprep.mubr.f32.mxu0 0.0
    %2016 = vmatmul.mubr.f32.gmra.mrb[0].mxu0 %v1873
    %v2017 = vpop.f32.mrb[0].mxu0
    %v2018 = vadd.f32 %v1867, %v2017
    %v2019 = vpop.f32.mrb[0].mxu0
    %2020 = vdwg.mxu0
    %v2021 = vxor.u32 %v2018, 2147483648
    %v2022 = vmul.f32 %v2021, 1.442695
    %v2023 = vpow.pop %v2022
    %v2024 = vadd.f32 %v2023, 1.0
    %v2025 = vrcp.pop %v2024
    %v2026 = vmul.f32 1.0, %v2025
    %2027 = vmatprep.subr.bf16.mxu0 0
    %2028 = vmatpush1.bf16.msra.mxu0 %v583
    %2029 = vmatprep.subr.bf16.mxu0 0
    %2030 = vmatpush1.bf16.msra.mxu0 %v584
    %2031 = vmatprep.subr.bf16.mxu0 0
    %2032 = vmatpush1.bf16.msra.mxu0 0
    %2033 = vmatprep.subr.bf16.mxu0 0
    %2034 = vmatpush1.bf16.msra.mxu0 0
    %2035 = vmatprep.subr.bf16.mxu0 0
    %2036 = vmatpush1.bf16.msra.mxu0 0
    %2037 = vmatprep.subr.bf16.mxu0 0
    %2038 = vmatpush1.bf16.msra.mxu0 0
    %2039 = vmatprep.subr.bf16.mxu0 0
    %2040 = vmatpush1.bf16.msra.mxu0 0
    %2041 = vmatprep.subr.bf16.mxu0 0
    %2042 = vmatpush1.bf16.msra.mxu0 0
    %2043 = vmatprep.subr.bf16.mxu0 0
    %2044 = vmatpush1.bf16.msra.mxu0 0
    %2045 = vmatprep.subr.bf16.mxu0 0
    %2046 = vmatpush1.bf16.msra.mxu0 0
    %2047 = vmatprep.subr.bf16.mxu0 0
    %2048 = vmatpush1.bf16.msra.mxu0 0
    %2049 = vmatprep.subr.bf16.mxu0 0
    %2050 = vmatpush1.bf16.msra.mxu0 0
    %2051 = vmatprep.subr.bf16.mxu0 0
    %2052 = vmatpush1.bf16.msra.mxu0 0
    %2053 = vmatprep.subr.bf16.mxu0 0
    %2054 = vmatpush1.bf16.msra.mxu0 0
    %2055 = vmatprep.subr.bf16.mxu0 0
    %2056 = vmatpush1.bf16.msra.mxu0 0
    %2057 = vmatprep.subr.bf16.mxu0 0
    %2058 = vmatpush1.bf16.msra.mxu0 0
    %2059 = vmatprep.mubr.bf16.mxu0 0
    %2060 = vmatmul.mubr.bf16.gmra.mrb[0].mxu0 %v1790
    %v2061 = vpop.f32.mrb[0].mxu0
    %v2062 = vadd.f32 %v230, %v2061
    %v2063 = vpop.f32.mrb[0].mxu0
    %v2064 = vpop.f32.mrb[0].mxu0
    %v2065 = vpop.f32.mrb[0].mxu0
    %2066 = vdwg.mxu0
    %v2067 = vmul.f32 %v1950, %v2062
    %2068 = vmatprep.subr.mxu0 0.0
    %2069 = vmatpush1.msra.mxu0 %v50
    %2070 = vmatprep.subr.mxu0 0.0
    %2071 = vmatpush1.msra.mxu0 %v51
    %2072 = vmatprep.subr.mxu0 0.0
    %2073 = vmatpush1.msra.mxu0 0.0
    %2074 = vmatprep.subr.mxu0 0.0
    %2075 = vmatpush1.msra.mxu0 0.0
    %2076 = vmatprep.subr.mxu0 0.0
    %2077 = vmatpush1.msra.mxu0 0.0
    %2078 = vmatprep.subr.mxu0 0.0
    %2079 = vmatpush1.msra.mxu0 0.0
    %2080 = vmatprep.subr.mxu0 0.0
    %2081 = vmatpush1.msra.mxu0 0.0
    %2082 = vmatprep.subr.mxu0 0.0
    %2083 = vmatpush1.msra.mxu0 0.0
    %2084 = vmatprep.subr.mxu0 0.0
    %2085 = vmatpush1.msra.mxu0 0.0
    %2086 = vmatprep.subr.mxu0 0.0
    %2087 = vmatpush1.msra.mxu0 0.0
    %2088 = vmatprep.subr.mxu0 0.0
    %2089 = vmatpush1.msra.mxu0 0.0
    %2090 = vmatprep.subr.mxu0 0.0
    %2091 = vmatpush1.msra.mxu0 0.0
    %2092 = vmatprep.subr.mxu0 0.0
    %2093 = vmatpush1.msra.mxu0 0.0
    %2094 = vmatprep.subr.mxu0 0.0
    %2095 = vmatpush1.msra.mxu0 0.0
    %2096 = vmatprep.subr.mxu0 0.0
    %2097 = vmatpush1.msra.mxu0 0.0
    %2098 = vmatprep.subr.mxu0 0.0
    %2099 = vmatpush1.msra.mxu0 0.0
    %2100 = vmatprep.subr.mxu0 0.0
    %2101 = vmatpush1.msra.mxu0 0.0
    %2102 = vmatprep.subr.mxu0 0.0
    %2103 = vmatpush1.msra.mxu0 0.0
    %2104 = vmatprep.subr.mxu0 0.0
    %2105 = vmatpush1.msra.mxu0 0.0
    %2106 = vmatprep.subr.mxu0 0.0
    %2107 = vmatpush1.msra.mxu0 0.0
    %2108 = vmatprep.subr.mxu0 0.0
    %2109 = vmatpush1.msra.mxu0 0.0
    %2110 = vmatprep.subr.mxu0 0.0
    %2111 = vmatpush1.msra.mxu0 0.0
    %2112 = vmatprep.subr.mxu0 0.0
    %2113 = vmatpush1.msra.mxu0 0.0
    %2114 = vmatprep.subr.mxu0 0.0
    %2115 = vmatpush1.msra.mxu0 0.0
    %2116 = vmatprep.subr.mxu0 0.0
    %2117 = vmatpush1.msra.mxu0 0.0
    %2118 = vmatprep.subr.mxu0 0.0
    %2119 = vmatpush1.msra.mxu0 0.0
    %2120 = vmatprep.subr.mxu0 0.0
    %2121 = vmatpush1.msra.mxu0 0.0
    %2122 = vmatprep.subr.mxu0 0.0
    %2123 = vmatpush1.msra.mxu0 0.0
    %2124 = vmatprep.subr.mxu0 0.0
    %2125 = vmatpush1.msra.mxu0 0.0
    %2126 = vmatprep.subr.mxu0 0.0
    %2127 = vmatpush1.msra.mxu0 0.0
    %2128 = vmatprep.subr.mxu0 0.0
    %2129 = vmatpush1.msra.mxu0 0.0
    %2130 = vmatprep.subr.mxu0 0.0
    %2131 = vmatpush1.msra.mxu0 0.0
    %2132 = vmatprep.mubr.f32.mxu0 0.0
    %2133 = vmatmul.mubr.f32.gmra.mrb[0].mxu0 %v1873
    %v2134 = vpop.f32.mrb[0].mxu0
    %v2135 = vadd.f32 %v2067, %v2134
    %v2136 = vpop.f32.mrb[0].mxu0
    %2137 = vdwg.mxu0
    %v2138 = vtanh.pop %v2135
    %v2139 = vsub.f32 1.0, %v2026
    %v2140 = vmul.f32 %v2139, %v2138
    %v2141 = vmul.f32 %v2026, %v1782
    %v2142 = vadd.f32 %v2140, %v2141
    %2143 = vset.pattern.permute.xlu0 6
    %2144 = vperm.xlu0 %2143, %v43
    %v2145 = vpop.permute.xlu0 %2144
    %vm2146 = vcmp.eq.s32.totalorder %v2145, %v45
    %v2147 = vsel %vm2146, 1.0, 0.0
    %v2148 = vpack.c.bf16 %v2142, %v2142
    %v2150 = vsel %vm324, %v2148, 0
    %2152 = vmatprep.subr.bf16.mxu0 0
    %2153 = vmatpush1.bf16.msra.mxu0 %v320
    %2154 = vmatprep.subr.bf16.mxu0 0
    %2155 = vmatpush1.bf16.msra.mxu0 %v321
    %2156 = vmatprep.subr.bf16.mxu0 0
    %2157 = vmatpush1.bf16.msra.mxu0 0
    %2158 = vmatprep.subr.bf16.mxu0 0
    %2159 = vmatpush1.bf16.msra.mxu0 0
    %2160 = vmatprep.subr.bf16.mxu0 0
    %2161 = vmatpush1.bf16.msra.mxu0 0
    %2162 = vmatprep.subr.bf16.mxu0 0
    %2163 = vmatpush1.bf16.msra.mxu0 0
    %2164 = vmatprep.subr.bf16.mxu0 0
    %2165 = vmatpush1.bf16.msra.mxu0 0
    %2166 = vmatprep.subr.bf16.mxu0 0
    %2167 = vmatpush1.bf16.msra.mxu0 0
    %2168 = vmatprep.subr.bf16.mxu0 0
    %2169 = vmatpush1.bf16.msra.mxu0 0
    %2170 = vmatprep.subr.bf16.mxu0 0
    %2171 = vmatpush1.bf16.msra.mxu0 0
    %2172 = vmatprep.subr.bf16.mxu0 0
    %2173 = vmatpush1.bf16.msra.mxu0 0
    %2174 = vmatprep.subr.bf16.mxu0 0
    %2175 = vmatpush1.bf16.msra.mxu0 0
    %2176 = vmatprep.subr.bf16.mxu0 0
    %2177 = vmatpush1.bf16.msra.mxu0 0
    %2178 = vmatprep.subr.bf16.mxu0 0
    %2179 = vmatpush1.bf16.msra.mxu0 0
    %2180 = vmatprep.subr.bf16.mxu0 0
    %2181 = vmatpush1.bf16.msra.mxu0 0
    %2182 = vmatprep.subr.bf16.mxu0 0
    %2183 = vmatpush1.bf16.msra.mxu0 0
    %2184 = vmatprep.mubr.bf16.mxu0 0
    %2185 = vmatmul.mubr.bf16.gmra.mrb[0].mxu0 %v2150
    %v2186 = vpop.f32.mrb[0].mxu0
    %v2187 = vadd.f32 0.0, %v2186
    %v2188 = vpop.f32.mrb[0].mxu0
    %v2189 = vpop.f32.mrb[0].mxu0
    %v2190 = vpop.f32.mrb[0].mxu0
    %2191 = vdwg.mxu0
    %2192 = vmatprep.subr.bf16.mxu0 0
    %2193 = vmatpush1.bf16.msra.mxu0 %v376
    %2194 = vmatprep.subr.bf16.mxu0 0
    %2195 = vmatpush1.bf16.msra.mxu0 %v377
    %2196 = vmatprep.subr.bf16.mxu0 0
    %2197 = vmatpush1.bf16.msra.mxu0 0
    %2198 = vmatprep.subr.bf16.mxu0 0
    %2199 = vmatpush1.bf16.msra.mxu0 0
    %2200 = vmatprep.subr.bf16.mxu0 0
    %2201 = vmatpush1.bf16.msra.mxu0 0
    %2202 = vmatprep.subr.bf16.mxu0 0
    %2203 = vmatpush1.bf16.msra.mxu0 0
    %2204 = vmatprep.subr.bf16.mxu0 0
    %2205 = vmatpush1.bf16.msra.mxu0 0
    %2206 = vmatprep.subr.bf16.mxu0 0
    %2207 = vmatpush1.bf16.msra.mxu0 0
    %2208 = vmatprep.subr.bf16.mxu0 0
    %2209 = vmatpush1.bf16.msra.mxu0 0
    %2210 = vmatprep.subr.bf16.mxu0 0
    %2211 = vmatpush1.bf16.msra.mxu0 0
    %2212 = vmatprep.subr.bf16.mxu0 0
    %2213 = vmatpush1.bf16.msra.mxu0 0
    %2214 = vmatprep.subr.bf16.mxu0 0
    %2215 = vmatpush1.bf16.msra.mxu0 0
    %2216 = vmatprep.subr.bf16.mxu0 0
    %2217 = vmatpush1.bf16.msra.mxu0 0
    %2218 = vmatprep.subr.bf16.mxu0 0
    %2219 = vmatpush1.bf16.msra.mxu0 0
    %2220 = vmatprep.subr.bf16.mxu0 0
    %2221 = vmatpush1.bf16.msra.mxu0 0
    %2222 = vmatprep.subr.bf16.mxu0 0
    %2223 = vmatpush1.bf16.msra.mxu0 0
    %2224 = vmatprep.mubr.bf16.mxu0 0
    %2225 = vmatmul.mubr.bf16.gmra.mrb[0].mxu0 %v2150
    %v2226 = vpop.f32.mrb[0].mxu0
    %v2227 = vadd.f32 0.0, %v2226
    %v2228 = vpop.f32.mrb[0].mxu0
    %v2229 = vpop.f32.mrb[0].mxu0
    %v2230 = vpop.f32.mrb[0].mxu0
    %2231 = vdwg.mxu0
    %v2233 = vsel %vm70, %v2147, 0
    %2235 = vmatprep.subr.mxu0 0.0
    %2236 = vmatpush1.msra.mxu0 %v46
    %2237 = vmatprep.subr.mxu0 0.0
    %2238 = vmatpush1.msra.mxu0 %v47
    %2239 = vmatprep.subr.mxu0 0.0
    %2240 = vmatpush1.msra.mxu0 0.0
    %2241 = vmatprep.subr.mxu0 0.0
    %2242 = vmatpush1.msra.mxu0 0.0
    %2243 = vmatprep.subr.mxu0 0.0
    %2244 = vmatpush1.msra.mxu0 0.0
    %2245 = vmatprep.subr.mxu0 0.0
    %2246 = vmatpush1.msra.mxu0 0.0
    %2247 = vmatprep.subr.mxu0 0.0
    %2248 = vmatpush1.msra.mxu0 0.0
    %2249 = vmatprep.subr.mxu0 0.0
    %2250 = vmatpush1.msra.mxu0 0.0
    %2251 = vmatprep.subr.mxu0 0.0
    %2252 = vmatpush1.msra.mxu0 0.0
    %2253 = vmatprep.subr.mxu0 0.0
    %2254 = vmatpush1.msra.mxu0 0.0
    %2255 = vmatprep.subr.mxu0 0.0
    %2256 = vmatpush1.msra.mxu0 0.0
    %2257 = vmatprep.subr.mxu0 0.0
    %2258 = vmatpush1.msra.mxu0 0.0
    %2259 = vmatprep.subr.mxu0 0.0
    %2260 = vmatpush1.msra.mxu0 0.0
    %2261 = vmatprep.subr.mxu0 0.0
    %2262 = vmatpush1.msra.mxu0 0.0
    %2263 = vmatprep.subr.mxu0 0.0
    %2264 = vmatpush1.msra.mxu0 0.0
    %2265 = vmatprep.subr.mxu0 0.0
    %2266 = vmatpush1.msra.mxu0 0.0
    %2267 = vmatprep.subr.mxu0 0.0
    %2268 = vmatpush1.msra.mxu0 0.0
    %2269 = vmatprep.subr.mxu0 0.0
    %2270 = vmatpush1.msra.mxu0 0.0
    %2271 = vmatprep.subr.mxu0 0.0
    %2272 = vmatpush1.msra.mxu0 0.0
    %2273 = vmatprep.subr.mxu0 0.0
    %2274 = vmatpush1.msra.mxu0 0.0
    %2275 = vmatprep.subr.mxu0 0.0
    %2276 = vmatpush1.msra.mxu0 0.0
    %2277 = vmatprep.subr.mxu0 0.0
    %2278 = vmatpush1.msra.mxu0 0.0
    %2279 = vmatprep.subr.mxu0 0.0
    %2280 = vmatpush1.msra.mxu0 0.0
    %2281 = vmatprep.subr.mxu0 0.0
    %2282 = vmatpush1.msra.mxu0 0.0
    %2283 = vmatprep.subr.mxu0 0.0
    %2284 = vmatpush1.msra.mxu0 0.0
    %2285 = vmatprep.subr.mxu0 0.0
    %2286 = vmatpush1.msra.mxu0 0.0
    %2287 = vmatprep.subr.mxu0 0.0
    %2288 = vmatpush1.msra.mxu0 0.0
    %2289 = vmatprep.subr.mxu0 0.0
    %2290 = vmatpush1.msra.mxu0 0.0
    %2291 = vmatprep.subr.mxu0 0.0
    %2292 = vmatpush1.msra.mxu0 0.0
    %2293 = vmatprep.subr.mxu0 0.0
    %2294 = vmatpush1.msra.mxu0 0.0
    %2295 = vmatprep.subr.mxu0 0.0
    %2296 = vmatpush1.msra.mxu0 0.0
    %2297 = vmatprep.subr.mxu0 0.0
    %2298 = vmatpush1.msra.mxu0 0.0
    %2299 = vmatprep.mubr.f32.mxu0 0.0
    %2300 = vmatmul.mubr.f32.gmra.mrb[0].mxu0 %v2233
    %v2301 = vpop.f32.mrb[0].mxu0
    %v2302 = vadd.f32 %v2187, %v2301
    %v2303 = vpop.f32.mrb[0].mxu0
    %2304 = vdwg.mxu0
    %v2305 = vxor.u32 %v2302, 2147483648
    %v2306 = vmul.f32 %v2305, 1.442695
    %v2307 = vpow.pop %v2306
    %v2308 = vadd.f32 %v2307, 1.0
    %v2309 = vrcp.pop %v2308
    %v2310 = vmul.f32 1.0, %v2309
    %2311 = vmatprep.subr.mxu0 0.0
    %2312 = vmatpush1.msra.mxu0 %v48
    %2313 = vmatprep.subr.mxu0 0.0
    %2314 = vmatpush1.msra.mxu0 %v49
    %2315 = vmatprep.subr.mxu0 0.0
    %2316 = vmatpush1.msra.mxu0 0.0
    %2317 = vmatprep.subr.mxu0 0.0
    %2318 = vmatpush1.msra.mxu0 0.0
    %2319 = vmatprep.subr.mxu0 0.0
    %2320 = vmatpush1.msra.mxu0 0.0
    %2321 = vmatprep.subr.mxu0 0.0
    %2322 = vmatpush1.msra.mxu0 0.0
    %2323 = vmatprep.subr.mxu0 0.0
    %2324 = vmatpush1.msra.mxu0 0.0
    %2325 = vmatprep.subr.mxu0 0.0
    %2326 = vmatpush1.msra.mxu0 0.0
    %2327 = vmatprep.subr.mxu0 0.0
    %2328 = vmatpush1.msra.mxu0 0.0
    %2329 = vmatprep.subr.mxu0 0.0
    %2330 = vmatpush1.msra.mxu0 0.0
    %2331 = vmatprep.subr.mxu0 0.0
    %2332 = vmatpush1.msra.mxu0 0.0
    %2333 = vmatprep.subr.mxu0 0.0
    %2334 = vmatpush1.msra.mxu0 0.0
    %2335 = vmatprep.subr.mxu0 0.0
    %2336 = vmatpush1.msra.mxu0 0.0
    %2337 = vmatprep.subr.mxu0 0.0
    %2338 = vmatpush1.msra.mxu0 0.0
    %2339 = vmatprep.subr.mxu0 0.0
    %2340 = vmatpush1.msra.mxu0 0.0
    %2341 = vmatprep.subr.mxu0 0.0
    %2342 = vmatpush1.msra.mxu0 0.0
    %2343 = vmatprep.subr.mxu0 0.0
    %2344 = vmatpush1.msra.mxu0 0.0
    %2345 = vmatprep.subr.mxu0 0.0
    %2346 = vmatpush1.msra.mxu0 0.0
    %2347 = vmatprep.subr.mxu0 0.0
    %2348 = vmatpush1.msra.mxu0 0.0
    %2349 = vmatprep.subr.mxu0 0.0
    %2350 = vmatpush1.msra.mxu0 0.0
    %2351 = vmatprep.subr.mxu0 0.0
    %2352 = vmatpush1.msra.mxu0 0.0
    %2353 = vmatprep.subr.mxu0 0.0
    %2354 = vmatpush1.msra.mxu0 0.0
    %2355 = vmatprep.subr.mxu0 0.0
    %2356 = vmatpush1.msra.mxu0 0.0
    %2357 = vmatprep.subr.mxu0 0.0
    %2358 = vmatpush1.msra.mxu0 0.0
    %2359 = vmatprep.subr.mxu0 0.0
    %2360 = vmatpush1.msra.mxu0 0.0
    %2361 = vmatprep.subr.mxu0 0.0
    %2362 = vmatpush1.msra.mxu0 0.0
    %2363 = vmatprep.subr.mxu0 0.0
    %2364 = vmatpush1.msra.mxu0 0.0
    %2365 = vmatprep.subr.mxu0 0.0
    %2366 = vmatpush1.msra.mxu0 0.0
    %2367 = vmatprep.subr.mxu0 0.0
    %2368 = vmatpush1.msra.mxu0 0.0
    %2369 = vmatprep.subr.mxu0 0.0
    %2370 = vmatpush1.msra.mxu0 0.0
    %2371 = vmatprep.subr.mxu0 0.0
    %2372 = vmatpush1.msra.mxu0 0.0
    %2373 = vmatprep.subr.mxu0 0.0
    %2374 = vmatpush1.msra.mxu0 0.0
    %2375 = vmatprep.mubr.f32.mxu0 0.0
    %2376 = vmatmul.mubr.f32.gmra.mrb[0].mxu0 %v2233
    %v2377 = vpop.f32.mrb[0].mxu0
    %v2378 = vadd.f32 %v2227, %v2377
    %v2379 = vpop.f32.mrb[0].mxu0
    %2380 = vdwg.mxu0
    %v2381 = vxor.u32 %v2378, 2147483648
    %v2382 = vmul.f32 %v2381, 1.442695
    %v2383 = vpow.pop %v2382
    %v2384 = vadd.f32 %v2383, 1.0
    %v2385 = vrcp.pop %v2384
    %v2386 = vmul.f32 1.0, %v2385
    %2387 = vmatprep.subr.bf16.mxu0 0
    %2388 = vmatpush1.bf16.msra.mxu0 %v583
    %2389 = vmatprep.subr.bf16.mxu0 0
    %2390 = vmatpush1.bf16.msra.mxu0 %v584
    %2391 = vmatprep.subr.bf16.mxu0 0
    %2392 = vmatpush1.bf16.msra.mxu0 0
    %2393 = vmatprep.subr.bf16.mxu0 0
    %2394 = vmatpush1.bf16.msra.mxu0 0
    %2395 = vmatprep.subr.bf16.mxu0 0
    %2396 = vmatpush1.bf16.msra.mxu0 0
    %2397 = vmatprep.subr.bf16.mxu0 0
    %2398 = vmatpush1.bf16.msra.mxu0 0
    %2399 = vmatprep.subr.bf16.mxu0 0
    %2400 = vmatpush1.bf16.msra.mxu0 0
    %2401 = vmatprep.subr.bf16.mxu0 0
    %2402 = vmatpush1.bf16.msra.mxu0 0
    %2403 = vmatprep.subr.bf16.mxu0 0
    %2404 = vmatpush1.bf16.msra.mxu0 0
    %2405 = vmatprep.subr.bf16.mxu0 0
    %2406 = vmatpush1.bf16.msra.mxu0 0
    %2407 = vmatprep.subr.bf16.mxu0 0
    %2408 = vmatpush1.bf16.msra.mxu0 0
    %2409 = vmatprep.subr.bf16.mxu0 0
    %2410 = vmatpush1.bf16.msra.mxu0 0
    %2411 = vmatprep.subr.bf16.mxu0 0
    %2412 = vmatpush1.bf16.msra.mxu0 0
    %2413 = vmatprep.subr.bf16.mxu0 0
    %2414 = vmatpush1.bf16.msra.mxu0 0
    %2415 = vmatprep.subr.bf16.mxu0 0
    %2416 = vmatpush1.bf16.msra.mxu0 0
    %2417 = vmatprep.subr.bf16.mxu0 0
    %2418 = vmatpush1.bf16.msra.mxu0 0
    %2419 = vmatprep.mubr.bf16.mxu0 0
    %2420 = vmatmul.mubr.bf16.gmra.mrb[0].mxu0 %v2150
    %v2421 = vpop.f32.mrb[0].mxu0
    %v2422 = vadd.f32 %v230, %v2421
    %v2423 = vpop.f32.mrb[0].mxu0
    %v2424 = vpop.f32.mrb[0].mxu0
    %v2425 = vpop.f32.mrb[0].mxu0
    %2426 = vdwg.mxu0
    %v2427 = vmul.f32 %v2310, %v2422
    %2428 = vmatprep.subr.mxu0 0.0
    %2429 = vmatpush1.msra.mxu0 %v50
    %2430 = vmatprep.subr.mxu0 0.0
    %2431 = vmatpush1.msra.mxu0 %v51
    %2432 = vmatprep.subr.mxu0 0.0
    %2433 = vmatpush1.msra.mxu0 0.0
    %2434 = vmatprep.subr.mxu0 0.0
    %2435 = vmatpush1.msra.mxu0 0.0
    %2436 = vmatprep.subr.mxu0 0.0
    %2437 = vmatpush1.msra.mxu0 0.0
    %2438 = vmatprep.subr.mxu0 0.0
    %2439 = vmatpush1.msra.mxu0 0.0
    %2440 = vmatprep.subr.mxu0 0.0
    %2441 = vmatpush1.msra.mxu0 0.0
    %2442 = vmatprep.subr.mxu0 0.0
    %2443 = vmatpush1.msra.mxu0 0.0
    %2444 = vmatprep.subr.mxu0 0.0
    %2445 = vmatpush1.msra.mxu0 0.0
    %2446 = vmatprep.subr.mxu0 0.0
    %2447 = vmatpush1.msra.mxu0 0.0
    %2448 = vmatprep.subr.mxu0 0.0
    %2449 = vmatpush1.msra.mxu0 0.0
    %2450 = vmatprep.subr.mxu0 0.0
    %2451 = vmatpush1.msra.mxu0 0.0
    %2452 = vmatprep.subr.mxu0 0.0
    %2453 = vmatpush1.msra.mxu0 0.0
    %2454 = vmatprep.subr.mxu0 0.0
    %2455 = vmatpush1.msra.mxu0 0.0
    %2456 = vmatprep.subr.mxu0 0.0
    %2457 = vmatpush1.msra.mxu0 0.0
    %2458 = vmatprep.subr.mxu0 0.0
    %2459 = vmatpush1.msra.mxu0 0.0
    %2460 = vmatprep.subr.mxu0 0.0
    %2461 = vmatpush1.msra.mxu0 0.0
    %2462 = vmatprep.subr.mxu0 0.0
    %2463 = vmatpush1.msra.mxu0 0.0
    %2464 = vmatprep.subr.mxu0 0.0
    %2465 = vmatpush1.msra.mxu0 0.0
    %2466 = vmatprep.subr.mxu0 0.0
    %2467 = vmatpush1.msra.mxu0 0.0
    %2468 = vmatprep.subr.mxu0 0.0
    %2469 = vmatpush1.msra.mxu0 0.0
    %2470 = vmatprep.subr.mxu0 0.0
    %2471 = vmatpush1.msra.mxu0 0.0
    %2472 = vmatprep.subr.mxu0 0.0
    %2473 = vmatpush1.msra.mxu0 0.0
    %2474 = vmatprep.subr.mxu0 0.0
    %2475 = vmatpush1.msra.mxu0 0.0
    %2476 = vmatprep.subr.mxu0 0.0
    %2477 = vmatpush1.msra.mxu0 0.0
    %2478 = vmatprep.subr.mxu0 0.0
    %2479 = vmatpush1.msra.mxu0 0.0
    %2480 = vmatprep.subr.mxu0 0.0
    %2481 = vmatpush1.msra.mxu0 0.0
    %2482 = vmatprep.subr.mxu0 0.0
    %2483 = vmatpush1.msra.mxu0 0.0
    %2484 = vmatprep.subr.mxu0 0.0
    %2485 = vmatpush1.msra.mxu0 0.0
    %2486 = vmatprep.subr.mxu0 0.0
    %2487 = vmatpush1.msra.mxu0 0.0
    %2488 = vmatprep.subr.mxu0 0.0
    %2489 = vmatpush1.msra.mxu0 0.0
    %2490 = vmatprep.subr.mxu0 0.0
    %2491 = vmatpush1.msra.mxu0 0.0
    %2492 = vmatprep.mubr.f32.mxu0 0.0
    %2493 = vmatmul.mubr.f32.gmra.mrb[0].mxu0 %v2233
    %v2494 = vpop.f32.mrb[0].mxu0
    %v2495 = vadd.f32 %v2427, %v2494
    %v2496 = vpop.f32.mrb[0].mxu0
    %2497 = vdwg.mxu0
    %v2498 = vtanh.pop %v2495
    %v2499 = vsub.f32 1.0, %v2386
    %v2500 = vmul.f32 %v2499, %v2498
    %v2501 = vmul.f32 %v2386, %v2142
    %v2502 = vadd.f32 %v2500, %v2501
    %2503 = vset.pattern.permute.xlu0 7
    %2504 = vperm.xlu0 %2503, %v43
    %v2505 = vpop.permute.xlu0 %2504
    %vm2506 = vcmp.eq.s32.totalorder %v2505, %v45
    %v2507 = vsel %vm2506, 1.0, 0.0
    %v2508 = vpack.c.bf16 %v2502, %v2502
    %v2510 = vsel %vm324, %v2508, 0
    %2512 = vmatprep.subr.bf16.mxu0 0
    %2513 = vmatpush1.bf16.msra.mxu0 %v320
    %2514 = vmatprep.subr.bf16.mxu0 0
    %2515 = vmatpush1.bf16.msra.mxu0 %v321
    %2516 = vmatprep.subr.bf16.mxu0 0
    %2517 = vmatpush1.bf16.msra.mxu0 0
    %2518 = vmatprep.subr.bf16.mxu0 0
    %2519 = vmatpush1.bf16.msra.mxu0 0
    %2520 = vmatprep.subr.bf16.mxu0 0
    %2521 = vmatpush1.bf16.msra.mxu0 0
    %2522 = vmatprep.subr.bf16.mxu0 0
    %2523 = vmatpush1.bf16.msra.mxu0 0
    %2524 = vmatprep.subr.bf16.mxu0 0
    %2525 = vmatpush1.bf16.msra.mxu0 0
    %2526 = vmatprep.subr.bf16.mxu0 0
    %2527 = vmatpush1.bf16.msra.mxu0 0
    %2528 = vmatprep.subr.bf16.mxu0 0
    %2529 = vmatpush1.bf16.msra.mxu0 0
    %2530 = vmatprep.subr.bf16.mxu0 0
    %2531 = vmatpush1.bf16.msra.mxu0 0
    %2532 = vmatprep.subr.bf16.mxu0 0
    %2533 = vmatpush1.bf16.msra.mxu0 0
    %2534 = vmatprep.subr.bf16.mxu0 0
    %2535 = vmatpush1.bf16.msra.mxu0 0
    %2536 = vmatprep.subr.bf16.mxu0 0
    %2537 = vmatpush1.bf16.msra.mxu0 0
    %2538 = vmatprep.subr.bf16.mxu0 0
    %2539 = vmatpush1.bf16.msra.mxu0 0
    %2540 = vmatprep.subr.bf16.mxu0 0
    %2541 = vmatpush1.bf16.msra.mxu0 0
    %2542 = vmatprep.subr.bf16.mxu0 0
    %2543 = vmatpush1.bf16.msra.mxu0 0
    %2544 = vmatprep.mubr.bf16.mxu0 0
    %2545 = vmatmul.mubr.bf16.gmra.mrb[0].mxu0 %v2510
    %v2546 = vpop.f32.mrb[0].mxu0
    %v2547 = vadd.f32 0.0, %v2546
    %v2548 = vpop.f32.mrb[0].mxu0
    %v2549 = vpop.f32.mrb[0].mxu0
    %v2550 = vpop.f32.mrb[0].mxu0
    %2551 = vdwg.mxu0
    %2552 = vmatprep.subr.bf16.mxu0 0
    %2553 = vmatpush1.bf16.msra.mxu0 %v376
    %2554 = vmatprep.subr.bf16.mxu0 0
    %2555 = vmatpush1.bf16.msra.mxu0 %v377
    %2556 = vmatprep.subr.bf16.mxu0 0
    %2557 = vmatpush1.bf16.msra.mxu0 0
    %2558 = vmatprep.subr.bf16.mxu0 0
    %2559 = vmatpush1.bf16.msra.mxu0 0
    %2560 = vmatprep.subr.bf16.mxu0 0
    %2561 = vmatpush1.bf16.msra.mxu0 0
    %2562 = vmatprep.subr.bf16.mxu0 0
    %2563 = vmatpush1.bf16.msra.mxu0 0
    %2564 = vmatprep.subr.bf16.mxu0 0
    %2565 = vmatpush1.bf16.msra.mxu0 0
    %2566 = vmatprep.subr.bf16.mxu0 0
    %2567 = vmatpush1.bf16.msra.mxu0 0
    %2568 = vmatprep.subr.bf16.mxu0 0
    %2569 = vmatpush1.bf16.msra.mxu0 0
    %2570 = vmatprep.subr.bf16.mxu0 0
    %2571 = vmatpush1.bf16.msra.mxu0 0
    %2572 = vmatprep.subr.bf16.mxu0 0
    %2573 = vmatpush1.bf16.msra.mxu0 0
    %2574 = vmatprep.subr.bf16.mxu0 0
    %2575 = vmatpush1.bf16.msra.mxu0 0
    %2576 = vmatprep.subr.bf16.mxu0 0
    %2577 = vmatpush1.bf16.msra.mxu0 0
    %2578 = vmatprep.subr.bf16.mxu0 0
    %2579 = vmatpush1.bf16.msra.mxu0 0
    %2580 = vmatprep.subr.bf16.mxu0 0
    %2581 = vmatpush1.bf16.msra.mxu0 0
    %2582 = vmatprep.subr.bf16.mxu0 0
    %2583 = vmatpush1.bf16.msra.mxu0 0
    %2584 = vmatprep.mubr.bf16.mxu0 0
    %2585 = vmatmul.mubr.bf16.gmra.mrb[0].mxu0 %v2510
    %v2586 = vpop.f32.mrb[0].mxu0
    %v2587 = vadd.f32 0.0, %v2586
    %v2588 = vpop.f32.mrb[0].mxu0
    %v2589 = vpop.f32.mrb[0].mxu0
    %v2590 = vpop.f32.mrb[0].mxu0
    %2591 = vdwg.mxu0
    %v2593 = vsel %vm70, %v2507, 0
    %2595 = vmatprep.subr.mxu0 0.0
    %2596 = vmatpush1.msra.mxu0 %v46
    %2597 = vmatprep.subr.mxu0 0.0
    %2598 = vmatpush1.msra.mxu0 %v47
    %2599 = vmatprep.subr.mxu0 0.0
    %2600 = vmatpush1.msra.mxu0 0.0
    %2601 = vmatprep.subr.mxu0 0.0
    %2602 = vmatpush1.msra.mxu0 0.0
    %2603 = vmatprep.subr.mxu0 0.0
    %2604 = vmatpush1.msra.mxu0 0.0
    %2605 = vmatprep.subr.mxu0 0.0
    %2606 = vmatpush1.msra.mxu0 0.0
    %2607 = vmatprep.subr.mxu0 0.0
    %2608 = vmatpush1.msra.mxu0 0.0
    %2609 = vmatprep.subr.mxu0 0.0
    %2610 = vmatpush1.msra.mxu0 0.0
    %2611 = vmatprep.subr.mxu0 0.0
    %2612 = vmatpush1.msra.mxu0 0.0
    %2613 = vmatprep.subr.mxu0 0.0
    %2614 = vmatpush1.msra.mxu0 0.0
    %2615 = vmatprep.subr.mxu0 0.0
    %2616 = vmatpush1.msra.mxu0 0.0
    %2617 = vmatprep.subr.mxu0 0.0
    %2618 = vmatpush1.msra.mxu0 0.0
    %2619 = vmatprep.subr.mxu0 0.0
    %2620 = vmatpush1.msra.mxu0 0.0
    %2621 = vmatprep.subr.mxu0 0.0
    %2622 = vmatpush1.msra.mxu0 0.0
    %2623 = vmatprep.subr.mxu0 0.0
    %2624 = vmatpush1.msra.mxu0 0.0
    %2625 = vmatprep.subr.mxu0 0.0
    %2626 = vmatpush1.msra.mxu0 0.0
    %2627 = vmatprep.subr.mxu0 0.0
    %2628 = vmatpush1.msra.mxu0 0.0
    %2629 = vmatprep.subr.mxu0 0.0
    %2630 = vmatpush1.msra.mxu0 0.0
    %2631 = vmatprep.subr.mxu0 0.0
    %2632 = vmatpush1.msra.mxu0 0.0
    %2633 = vmatprep.subr.mxu0 0.0
    %2634 = vmatpush1.msra.mxu0 0.0
    %2635 = vmatprep.subr.mxu0 0.0
    %2636 = vmatpush1.msra.mxu0 0.0
    %2637 = vmatprep.subr.mxu0 0.0
    %2638 = vmatpush1.msra.mxu0 0.0
    %2639 = vmatprep.subr.mxu0 0.0
    %2640 = vmatpush1.msra.mxu0 0.0
    %2641 = vmatprep.subr.mxu0 0.0
    %2642 = vmatpush1.msra.mxu0 0.0
    %2643 = vmatprep.subr.mxu0 0.0
    %2644 = vmatpush1.msra.mxu0 0.0
    %2645 = vmatprep.subr.mxu0 0.0
    %2646 = vmatpush1.msra.mxu0 0.0
    %2647 = vmatprep.subr.mxu0 0.0
    %2648 = vmatpush1.msra.mxu0 0.0
    %2649 = vmatprep.subr.mxu0 0.0
    %2650 = vmatpush1.msra.mxu0 0.0
    %2651 = vmatprep.subr.mxu0 0.0
    %2652 = vmatpush1.msra.mxu0 0.0
    %2653 = vmatprep.subr.mxu0 0.0
    %2654 = vmatpush1.msra.mxu0 0.0
    %2655 = vmatprep.subr.mxu0 0.0
    %2656 = vmatpush1.msra.mxu0 0.0
    %2657 = vmatprep.subr.mxu0 0.0
    %2658 = vmatpush1.msra.mxu0 0.0
    %2659 = vmatprep.mubr.f32.mxu0 0.0
    %2660 = vmatmul.mubr.f32.gmra.mrb[0].mxu0 %v2593
    %v2661 = vpop.f32.mrb[0].mxu0
    %v2662 = vadd.f32 %v2547, %v2661
    %v2663 = vpop.f32.mrb[0].mxu0
    %2664 = vdwg.mxu0
    %v2665 = vxor.u32 %v2662, 2147483648
    %v2666 = vmul.f32 %v2665, 1.442695
    %v2667 = vpow.pop %v2666
    %v2668 = vadd.f32 %v2667, 1.0
    %v2669 = vrcp.pop %v2668
    %v2670 = vmul.f32 1.0, %v2669
    %2671 = vmatprep.subr.mxu0 0.0
    %2672 = vmatpush1.msra.mxu0 %v48
    %2673 = vmatprep.subr.mxu0 0.0
    %2674 = vmatpush1.msra.mxu0 %v49
    %2675 = vmatprep.subr.mxu0 0.0
    %2676 = vmatpush1.msra.mxu0 0.0
    %2677 = vmatprep.subr.mxu0 0.0
    %2678 = vmatpush1.msra.mxu0 0.0
    %2679 = vmatprep.subr.mxu0 0.0
    %2680 = vmatpush1.msra.mxu0 0.0
    %2681 = vmatprep.subr.mxu0 0.0
    %2682 = vmatpush1.msra.mxu0 0.0
    %2683 = vmatprep.subr.mxu0 0.0
    %2684 = vmatpush1.msra.mxu0 0.0
    %2685 = vmatprep.subr.mxu0 0.0
    %2686 = vmatpush1.msra.mxu0 0.0
    %2687 = vmatprep.subr.mxu0 0.0
    %2688 = vmatpush1.msra.mxu0 0.0
    %2689 = vmatprep.subr.mxu0 0.0
    %2690 = vmatpush1.msra.mxu0 0.0
    %2691 = vmatprep.subr.mxu0 0.0
    %2692 = vmatpush1.msra.mxu0 0.0
    %2693 = vmatprep.subr.mxu0 0.0
    %2694 = vmatpush1.msra.mxu0 0.0
    %2695 = vmatprep.subr.mxu0 0.0
    %2696 = vmatpush1.msra.mxu0 0.0
    %2697 = vmatprep.subr.mxu0 0.0
    %2698 = vmatpush1.msra.mxu0 0.0
    %2699 = vmatprep.subr.mxu0 0.0
    %2700 = vmatpush1.msra.mxu0 0.0
    %2701 = vmatprep.subr.mxu0 0.0
    %2702 = vmatpush1.msra.mxu0 0.0
    %2703 = vmatprep.subr.mxu0 0.0
    %2704 = vmatpush1.msra.mxu0 0.0
    %2705 = vmatprep.subr.mxu0 0.0
    %2706 = vmatpush1.msra.mxu0 0.0
    %2707 = vmatprep.subr.mxu0 0.0
    %2708 = vmatpush1.msra.mxu0 0.0
    %2709 = vmatprep.subr.mxu0 0.0
    %2710 = vmatpush1.msra.mxu0 0.0
    %2711 = vmatprep.subr.mxu0 0.0
    %2712 = vmatpush1.msra.mxu0 0.0
    %2713 = vmatprep.subr.mxu0 0.0
    %2714 = vmatpush1.msra.mxu0 0.0
    %2715 = vmatprep.subr.mxu0 0.0
    %2716 = vmatpush1.msra.mxu0 0.0
    %2717 = vmatprep.subr.mxu0 0.0
    %2718 = vmatpush1.msra.mxu0 0.0
    %2719 = vmatprep.subr.mxu0 0.0
    %2720 = vmatpush1.msra.mxu0 0.0
    %2721 = vmatprep.subr.mxu0 0.0
    %2722 = vmatpush1.msra.mxu0 0.0
    %2723 = vmatprep.subr.mxu0 0.0
    %2724 = vmatpush1.msra.mxu0 0.0
    %2725 = vmatprep.subr.mxu0 0.0
    %2726 = vmatpush1.msra.mxu0 0.0
    %2727 = vmatprep.subr.mxu0 0.0
    %2728 = vmatpush1.msra.mxu0 0.0
    %2729 = vmatprep.subr.mxu0 0.0
    %2730 = vmatpush1.msra.mxu0 0.0
    %2731 = vmatprep.subr.mxu0 0.0
    %2732 = vmatpush1.msra.mxu0 0.0
    %2733 = vmatprep.subr.mxu0 0.0
    %2734 = vmatpush1.msra.mxu0 0.0
    %2735 = vmatprep.mubr.f32.mxu0 0.0
    %2736 = vmatmul.mubr.f32.gmra.mrb[0].mxu0 %v2593
    %v2737 = vpop.f32.mrb[0].mxu0
    %v2738 = vadd.f32 %v2587, %v2737
    %v2739 = vpop.f32.mrb[0].mxu0
    %2740 = vdwg.mxu0
    %v2741 = vxor.u32 %v2738, 2147483648
    %v2742 = vmul.f32 %v2741, 1.442695
    %v2743 = vpow.pop %v2742
    %v2744 = vadd.f32 %v2743, 1.0
    %v2745 = vrcp.pop %v2744
    %v2746 = vmul.f32 1.0, %v2745
    %2747 = vmatprep.subr.bf16.mxu0 0
    %2748 = vmatpush1.bf16.msra.mxu0 %v583
    %2749 = vmatprep.subr.bf16.mxu0 0
    %2750 = vmatpush1.bf16.msra.mxu0 %v584
    %2751 = vmatprep.subr.bf16.mxu0 0
    %2752 = vmatpush1.bf16.msra.mxu0 0
    %2753 = vmatprep.subr.bf16.mxu0 0
    %2754 = vmatpush1.bf16.msra.mxu0 0
    %2755 = vmatprep.subr.bf16.mxu0 0
    %2756 = vmatpush1.bf16.msra.mxu0 0
    %2757 = vmatprep.subr.bf16.mxu0 0
    %2758 = vmatpush1.bf16.msra.mxu0 0
    %2759 = vmatprep.subr.bf16.mxu0 0
    %2760 = vmatpush1.bf16.msra.mxu0 0
    %2761 = vmatprep.subr.bf16.mxu0 0
    %2762 = vmatpush1.bf16.msra.mxu0 0
    %2763 = vmatprep.subr.bf16.mxu0 0
    %2764 = vmatpush1.bf16.msra.mxu0 0
    %2765 = vmatprep.subr.bf16.mxu0 0
    %2766 = vmatpush1.bf16.msra.mxu0 0
    %2767 = vmatprep.subr.bf16.mxu0 0
    %2768 = vmatpush1.bf16.msra.mxu0 0
    %2769 = vmatprep.subr.bf16.mxu0 0
    %2770 = vmatpush1.bf16.msra.mxu0 0
    %2771 = vmatprep.subr.bf16.mxu0 0
    %2772 = vmatpush1.bf16.msra.mxu0 0
    %2773 = vmatprep.subr.bf16.mxu0 0
    %2774 = vmatpush1.bf16.msra.mxu0 0
    %2775 = vmatprep.subr.bf16.mxu0 0
    %2776 = vmatpush1.bf16.msra.mxu0 0
    %2777 = vmatprep.subr.bf16.mxu0 0
    %2778 = vmatpush1.bf16.msra.mxu0 0
    %2779 = vmatprep.mubr.bf16.mxu0 0
    %2780 = vmatmul.mubr.bf16.gmra.mrb[0].mxu0 %v2510
    %v2781 = vpop.f32.mrb[0].mxu0
    %v2782 = vadd.f32 %v230, %v2781
    %v2783 = vpop.f32.mrb[0].mxu0
    %v2784 = vpop.f32.mrb[0].mxu0
    %v2785 = vpop.f32.mrb[0].mxu0
    %2786 = vdwg.mxu0
    %v2787 = vmul.f32 %v2670, %v2782
    %2788 = vmatprep.subr.mxu0 0.0
    %2789 = vmatpush1.msra.mxu0 %v50
    %2790 = vmatprep.subr.mxu0 0.0
    %2791 = vmatpush1.msra.mxu0 %v51
    %2792 = vmatprep.subr.mxu0 0.0
    %2793 = vmatpush1.msra.mxu0 0.0
    %2794 = vmatprep.subr.mxu0 0.0
    %2795 = vmatpush1.msra.mxu0 0.0
    %2796 = vmatprep.subr.mxu0 0.0
    %2797 = vmatpush1.msra.mxu0 0.0
    %2798 = vmatprep.subr.mxu0 0.0
    %2799 = vmatpush1.msra.mxu0 0.0
    %2800 = vmatprep.subr.mxu0 0.0
    %2801 = vmatpush1.msra.mxu0 0.0
    %2802 = vmatprep.subr.mxu0 0.0
    %2803 = vmatpush1.msra.mxu0 0.0
    %2804 = vmatprep.subr.mxu0 0.0
    %2805 = vmatpush1.msra.mxu0 0.0
    %2806 = vmatprep.subr.mxu0 0.0
    %2807 = vmatpush1.msra.mxu0 0.0
    %2808 = vmatprep.subr.mxu0 0.0
    %2809 = vmatpush1.msra.mxu0 0.0
    %2810 = vmatprep.subr.mxu0 0.0
    %2811 = vmatpush1.msra.mxu0 0.0
    %2812 = vmatprep.subr.mxu0 0.0
    %2813 = vmatpush1.msra.mxu0 0.0
    %2814 = vmatprep.subr.mxu0 0.0
    %2815 = vmatpush1.msra.mxu0 0.0
    %2816 = vmatprep.subr.mxu0 0.0
    %2817 = vmatpush1.msra.mxu0 0.0
    %2818 = vmatprep.subr.mxu0 0.0
    %2819 = vmatpush1.msra.mxu0 0.0
    %2820 = vmatprep.subr.mxu0 0.0
    %2821 = vmatpush1.msra.mxu0 0.0
    %2822 = vmatprep.subr.mxu0 0.0
    %2823 = vmatpush1.msra.mxu0 0.0
    %2824 = vmatprep.subr.mxu0 0.0
    %2825 = vmatpush1.msra.mxu0 0.0
    %2826 = vmatprep.subr.mxu0 0.0
    %2827 = vmatpush1.msra.mxu0 0.0
    %2828 = vmatprep.subr.mxu0 0.0
    %2829 = vmatpush1.msra.mxu0 0.0
    %2830 = vmatprep.subr.mxu0 0.0
    %2831 = vmatpush1.msra.mxu0 0.0
    %2832 = vmatprep.subr.mxu0 0.0
    %2833 = vmatpush1.msra.mxu0 0.0
    %2834 = vmatprep.subr.mxu0 0.0
    %2835 = vmatpush1.msra.mxu0 0.0
    %2836 = vmatprep.subr.mxu0 0.0
    %2837 = vmatpush1.msra.mxu0 0.0
    %2838 = vmatprep.subr.mxu0 0.0
    %2839 = vmatpush1.msra.mxu0 0.0
    %2840 = vmatprep.subr.mxu0 0.0
    %2841 = vmatpush1.msra.mxu0 0.0
    %2842 = vmatprep.subr.mxu0 0.0
    %2843 = vmatpush1.msra.mxu0 0.0
    %2844 = vmatprep.subr.mxu0 0.0
    %2845 = vmatpush1.msra.mxu0 0.0
    %2846 = vmatprep.subr.mxu0 0.0
    %2847 = vmatpush1.msra.mxu0 0.0
    %2848 = vmatprep.subr.mxu0 0.0
    %2849 = vmatpush1.msra.mxu0 0.0
    %2850 = vmatprep.subr.mxu0 0.0
    %2851 = vmatpush1.msra.mxu0 0.0
    %2852 = vmatprep.mubr.f32.mxu0 0.0
    %2853 = vmatmul.mubr.f32.gmra.mrb[0].mxu0 %v2593
    %v2854 = vpop.f32.mrb[0].mxu0
    %v2855 = vadd.f32 %v2787, %v2854
    %v2856 = vpop.f32.mrb[0].mxu0
    %2857 = vdwg.mxu0
    %v2858 = vtanh.pop %v2855
    %v2859 = vsub.f32 1.0, %v2746
    %v2860 = vmul.f32 %v2859, %v2858
    %v2861 = vmul.f32 %v2746, %v2502
    %v2862 = vadd.f32 %v2860, %v2861
    %2864 = vrot.lane.b32.xlu0 %v2142, 32
    %v2865 = vpop.permute.xlu0 %2864
    %2868 = vrot.lane.b32.xlu0 %v1422, 64
    %v2869 = vpop.permute.xlu0 %2868
    %2872 = vrot.lane.b32.xlu0 %v702, 96
    %v2873 = vpop.permute.xlu0 %2872
    %v2875 = vsel %vm324, %v2862, %v2865
    %vm2876 = vcmask 523264
    %v2877 = vsel %vm2876, %v2875, %v2869
    %vm2878 = vcmask 785408
    %v2879 = vsel %vm2878, %v2877, %v2873
    %v2880 = vpack.c.bf16 %v2879, %v2879
    %v2881 = vld [vmem:[%s8] sm:$0xf]
    %v2882 = vld [vmem:[%s8 + $0x4] sm:$0xf]
    %v2883 = vld [vmem:[%s8 + $0x8] sm:$0xf]
    %v2884 = vld [vmem:[%s8 + $0xc] sm:$0xf]
    %v2885 = vld [vmem:[%s8 + $0x10] sm:$0xf]
    %v2886 = vld [vmem:[%s8 + $0x14] sm:$0xf]
    %v2887 = vld [vmem:[%s8 + $0x18] sm:$0xf]
    %v2888 = vld [vmem:[%s8 + $0x1c] sm:$0xf]
    %v2889 = vld [vmem:[%s8 + $0x20] sm:$0xf]
    %v2890 = vld [vmem:[%s8 + $0x24] sm:$0xf]
    %v2891 = vld [vmem:[%s8 + $0x28] sm:$0xf]
    %v2892 = vld [vmem:[%s8 + $0x2c] sm:$0xf]
    %v2893 = vld [vmem:[%s8 + $0x30] sm:$0xf]
    %v2894 = vld [vmem:[%s8 + $0x34] sm:$0xf]
    %v2895 = vld [vmem:[%s8 + $0x38] sm:$0xf]
    %v2896 = vld [vmem:[%s8 + $0x3c] sm:$0xf]
    %v2913 = vunpack.c.l.b16 %v2881
    %v2914 = vunpack.c.l.b16 %v2882
    %v2915 = vunpack.c.l.b16 %v2883
    %v2916 = vunpack.c.l.b16 %v2884
    %v2917 = vunpack.c.l.b16 %v2885
    %v2918 = vunpack.c.l.b16 %v2886
    %v2919 = vunpack.c.l.b16 %v2887
    %v2920 = vunpack.c.l.b16 %v2888
    %v2921 = vunpack.c.l.b16 %v2889
    %v2922 = vunpack.c.l.b16 %v2890
    %v2923 = vunpack.c.l.b16 %v2891
    %v2924 = vunpack.c.l.b16 %v2892
    %v2925 = vunpack.c.l.b16 %v2893
    %v2926 = vunpack.c.l.b16 %v2894
    %v2927 = vunpack.c.l.b16 %v2895
    %v2928 = vunpack.c.l.b16 %v2896
    %v2929 = vpack.c.b16 %v2914, %v2913
    %v2930 = vpack.c.b16 %v2916, %v2915
    %v2931 = vpack.c.b16 %v2918, %v2917
    %v2932 = vpack.c.b16 %v2920, %v2919
    %v2933 = vpack.c.b16 %v2922, %v2921
    %v2934 = vpack.c.b16 %v2924, %v2923
    %v2935 = vpack.c.b16 %v2926, %v2925
    %v2936 = vpack.c.b16 %v2928, %v2927
    %2945 = vmatprep.subr.bf16.mxu0 0
    %2946 = vmatpush1.bf16.msra.mxu0 %v2929
    %2947 = vmatprep.subr.bf16.mxu0 0
    %2948 = vmatpush1.bf16.msra.mxu0 %v2930
    %2949 = vmatprep.subr.bf16.mxu0 0
    %2950 = vmatpush1.bf16.msra.mxu0 %v2931
    %2951 = vmatprep.subr.bf16.mxu0 0
    %2952 = vmatpush1.bf16.msra.mxu0 %v2932
    %2953 = vmatprep.subr.bf16.mxu0 0
    %2954 = vmatpush1.bf16.msra.mxu0 %v2933
    %2955 = vmatprep.subr.bf16.mxu0 0
    %2956 = vmatpush1.bf16.msra.mxu0 %v2934
    %2957 = vmatprep.subr.bf16.mxu0 0
    %2958 = vmatpush1.bf16.msra.mxu0 %v2935
    %2959 = vmatprep.subr.bf16.mxu0 0
    %2960 = vmatpush1.bf16.msra.mxu0 %v2936
    %2961 = vmatprep.subr.bf16.mxu0 0
    %2962 = vmatpush1.bf16.msra.mxu0 0
    %2963 = vmatprep.subr.bf16.mxu0 0
    %2964 = vmatpush1.bf16.msra.mxu0 0
    %2965 = vmatprep.subr.bf16.mxu0 0
    %2966 = vmatpush1.bf16.msra.mxu0 0
    %2967 = vmatprep.subr.bf16.mxu0 0
    %2968 = vmatpush1.bf16.msra.mxu0 0
    %2969 = vmatprep.subr.bf16.mxu0 0
    %2970 = vmatpush1.bf16.msra.mxu0 0
    %2971 = vmatprep.subr.bf16.mxu0 0
    %2972 = vmatpush1.bf16.msra.mxu0 0
    %2973 = vmatprep.subr.bf16.mxu0 0
    %2974 = vmatpush1.bf16.msra.mxu0 0
    %2975 = vmatprep.subr.bf16.mxu0 0
    %2976 = vmatpush1.bf16.msra.mxu0 0
    %2977 = vmatprep.mubr.bf16.mxu0 0
    %2978 = vmatmul.mubr.bf16.gmra.mrb[0].mxu0 %v2880
    %v2979 = vpop.f32.mrb[0].mxu0
    %v2980 = vadd.f32 0.0, %v2979
    %v2981 = vpop.f32.mrb[0].mxu0
    %v2982 = vpop.f32.mrb[0].mxu0
    %v2983 = vpop.f32.mrb[0].mxu0
    %2984 = vdwg.mxu0
    %v2985 = vld [vmem:[%s9] sm:$0x1]
    %v2987 = vlaneseq
    %v2988 = vshrl.u32 %v2987, 7
    %v2989 = vsub.s32 0, %v2988
    %v2990 = vrot.slane %v2985, %v2989
    %v2992 = vadd.f32 %v2980, %v2990
    %v2993 = vmax.f32 %v2992, 0.0
    %v2994 = vld [vmem:[%s10] sm:$0x1]
    %v2996 = vlaneseq
    %v2997 = vshrl.u32 %v2996, 7
    %v2998 = vsub.s32 0, %v2997
    %v2999 = vrot.slane %v2994, %v2998
    %3000 = vrot.lane.b32.xlu0 %v2999, 32
    %v3001 = vpop.permute.xlu0 %3000
    %v3003 = vadd.f32 %v2980, %v3001
    %v3004 = vpack.c.bf16 %v2993, %v2993
    %v3005 = vld [vmem:[%s11] sm:$0xf]
    %v3006 = vld [vmem:[%s11 + $0x4] sm:$0xf]
    %v3007 = vld [vmem:[%s11 + $0x8] sm:$0xf]
    %v3008 = vld [vmem:[%s11 + $0xc] sm:$0xf]
    %v3013 = vunpack.c.l.b16 %v3005
    %v3014 = vunpack.c.l.b16 %v3006
    %v3015 = vunpack.c.l.b16 %v3007
    %v3016 = vunpack.c.l.b16 %v3008
    %v3017 = vpack.c.b16 %v3014, %v3013
    %v3018 = vpack.c.b16 %v3016, %v3015
    %v3022 = vsel %vm324, %v3004, 0
    %3024 = vmatprep.subr.bf16.mxu0 0
    %3025 = vmatpush1.bf16.msra.mxu0 %v3017
    %3026 = vmatprep.subr.bf16.mxu0 0
    %3027 = vmatpush1.bf16.msra.mxu0 %v3018
    %3028 = vmatprep.subr.bf16.mxu0 0
    %3029 = vmatpush1.bf16.msra.mxu0 0
    %3030 = vmatprep.subr.bf16.mxu0 0
    %3031 = vmatpush1.bf16.msra.mxu0 0
    %3032 = vmatprep.subr.bf16.mxu0 0
    %3033 = vmatpush1.bf16.msra.mxu0 0
    %3034 = vmatprep.subr.bf16.mxu0 0
    %3035 = vmatpush1.bf16.msra.mxu0 0
    %3036 = vmatprep.subr.bf16.mxu0 0
    %3037 = vmatpush1.bf16.msra.mxu0 0
    %3038 = vmatprep.subr.bf16.mxu0 0
    %3039 = vmatpush1.bf16.msra.mxu0 0
    %3040 = vmatprep.subr.bf16.mxu0 0
    %3041 = vmatpush1.bf16.msra.mxu0 0
    %3042 = vmatprep.subr.bf16.mxu0 0
    %3043 = vmatpush1.bf16.msra.mxu0 0
    %3044 = vmatprep.subr.bf16.mxu0 0
    %3045 = vmatpush1.bf16.msra.mxu0 0
    %3046 = vmatprep.subr.bf16.mxu0 0
    %3047 = vmatpush1.bf16.msra.mxu0 0
    %3048 = vmatprep.subr.bf16.mxu0 0
    %3049 = vmatpush1.bf16.msra.mxu0 0
    %3050 = vmatprep.subr.bf16.mxu0 0
    %3051 = vmatpush1.bf16.msra.mxu0 0
    %3052 = vmatprep.subr.bf16.mxu0 0
    %3053 = vmatpush1.bf16.msra.mxu0 0
    %3054 = vmatprep.subr.bf16.mxu0 0
    %3055 = vmatpush1.bf16.msra.mxu0 0
    %3056 = vmatprep.mubr.bf16.mxu0 0
    %3057 = vmatmul.mubr.bf16.gmra.mrb[0].mxu0 %v3022
    %v3058 = vpop.f32.mrb[0].mxu0
    %v3059 = vadd.f32 0.0, %v3058
    %v3060 = vpop.f32.mrb[0].mxu0
    %v3061 = vpop.f32.mrb[0].mxu0
    %v3062 = vpop.f32.mrb[0].mxu0
    %3063 = vdwg.mxu0
    %3065 = vrot.lane.b32.xlu0 %v3059, 32
    %v3066 = vpop.permute.xlu0 %3065
    %v3068 = vadd.f32 %v3003, %v3066
    %vm3069 = vcmask 386304
    %v3070 = vsel %vm3069, %v3068, -inf
    %3071 = vmax.xlane.f32.xlu0 %v3070
    %v3072 = vpop.xlane.xlu0 %3071
    %v3073 = vsub.f32 %v3068, %v3072
    %v3074 = vmul.f32 %v3073, 1.442695
    %v3075 = vpow.pop %v3074
    %3077 = vrot.lane.b32.xlu0 %v3075, 96
    %v3078 = vpop.permute.xlu0 %3077
    %vm3080 = vcmask 123904
    %v3081 = vsel %vm3080, %v3078, 0.0
    %3082 = vadd.xlane.f32.xlu0 %v3081
    %v3083 = vpop.xlane.xlu0 %3082
    %v3084 = vlog2.pop %v3083
    %v3085 = vmul.f32 %v3084, 0.6931472
    %v3086 = vsub.f32 %v3073, %v3085
    %3088 = vrot.lane.b32.xlu0 %v3086, 96
    %v3089 = vpop.permute.xlu0 %3088
    %3091 = vst.msk [vmem:[#allocation2] sm:$0x3] %vm3080, %v3089
    // Predicated region
    $region50: #{bootstrap_nn_forward.1} parent=1 // pred_check
      _
    $region51: #{bootstrap_nn_forward.1} parent=1 // pred_check_branch
      %3093 = sbr.rel (0) target = $region53
    $region52: #{bootstrap_nn_forward.1} parent=1 // pred_region
      %s3095 = ssub.s32 32, 32
      %3096 = vsyncadd [#allocation3], %s3095
      %s3098 = sshll.u32 [#allocation2], 4
      %s3099 = int_to_ptr.vmem [resolvable:$true] %s3098
      %3101 = dma.vmem_to_hbm [thread:$0]  %s3099, 32, %s12, [#allocation3]
    $region53: #{bootstrap_nn_forward.1} parent=1 // pred_fallthru
      _
    // Predicated region
    $region54: #{bootstrap_nn_forward.1} parent=1 // pred_check
      _
    $region55: #{bootstrap_nn_forward.1} parent=1 // pred_check_branch
      %3103 = sbr.rel (0) target = $region57
    $region56: #{bootstrap_nn_forward.1} parent=1 // pred_region
      %3104 = dma.done [#allocation3], 32
    $region57: #{bootstrap_nn_forward.1} parent=1 // pred_fallthru
      _
    %3105 = vsyncpa [#allocation3], 1

</llo_original>
